<compile_context>
chip_gen: v7x
topology: tpu7x:2x2x1
jax: 0.10.0
libtpu: 0.0.40
codegen_flags: <defaults>
</compile_context>

<pallas_src>
import numpy as np
import jax
import jax.numpy as jnp
from jax.experimental import pallas as pl
from jax.experimental.pallas import tpu as pltpu


def _gaussian_kernel1d(ks: int, sigma: float) -> np.ndarray:
    """Normalized 1-D Gaussian; outer(g, g) is the separable 2-D filter."""
    r = ks // 2
    ax = np.arange(-r, r + 1, dtype=np.float64)
    g = np.exp(-(ax ** 2) / (2.0 * float(sigma) ** 2))
    return (g / g.sum()).astype(np.float32)


def _toeplitz_taps(kernel_sizes, kern1d, pad, tile_h, w):
    """Banded-Toeplitz matrices that realize the separable filter passes on the MXU.

    Horizontal pass:  (slab @ th[f])[r, w] = sum_b g[b] * slab[r, o_f + w + b]
    Vertical pass:    (tv[f] @ z)[h, w]    = sum_b g[b] * z[o_f + h + b, w]
    with o_f = pad - ks_f//2 the offset of filter f inside the globally padded image.
    """
    f_n = len(kernel_sizes)
    wp = w + 2 * pad
    slab_h = tile_h + 2 * pad
    th = np.zeros((f_n, wp, w), np.float32)
    tv = np.zeros((f_n, tile_h, slab_h), np.float32)
    wout = np.arange(w)
    hout = np.arange(tile_h)
    for f, (ks, g) in enumerate(zip(kernel_sizes, kern1d)):
        o = pad - ks // 2
        g = np.asarray(g, np.float32)
        for b in range(ks):
            th[f, o + wout + b, wout] = g[b]
            tv[f, hout, o + hout + b] = g[b]
    return th, tv


def _build_kernel(n_blocks, n_filters, C, K, TH, W, pad):
    slab_h = TH + 2 * pad

    def kernel(x_ref, u_ref, *rest):
        out_ref = rest[-1]
        prefs = rest[:-1]                       # 6 refs per CRF block
        row0 = pl.multiple_of(pl.program_id(1) * TH, TH)

        # Channel slabs (with halo) loaded once, full lane extent, aligned offset.
        xs = [x_ref[0, c, pl.ds(row0, slab_h), :] for c in range(C)]   # (slab_h, Wp) f32

        for blk in range(n_blocks):
            w3d_ref, b3d_ref, bc_ref, wexp_ref, th_ref, tv_ref = prefs[6 * blk: 6 * blk + 6]

            # ---- message passing fused with the 1x1x1 Conv3d channel fold ----------
            # M[h,w] = sum_f filter_f (*) ( sum_c w3d[f*C+c] * x[c] ); each separable
            # pass is a bf16 Toeplitz matmul on the MXU with f32 accumulation.
            M = None
            for f in range(n_filters[blk]):
                y = w3d_ref[f * C] * xs[0]
                for c in range(1, C):
                    y = y + w3d_ref[f * C + c] * xs[c]                 # (slab_h, Wp) f32
                h1 = jnp.dot(y.astype(jnp.bfloat16), th_ref[f],
                             preferred_element_type=jnp.float32)       # (slab_h, W)
                v = jnp.dot(tv_ref[f], h1.astype(jnp.bfloat16),
                            preferred_element_type=jnp.float32)        # (TH, W)
                M = v if M is None else M + v

            # ---- Q_init = softmax over the (leading) class axis: pure VPU ----------
            src = u_ref if blk == 0 else out_ref
            u = src[0]                                                 # (K, TH, W)
            m = jnp.max(u, axis=0, keepdims=True)
            e = jnp.exp(u - m)
            inv = pl.reciprocal(jnp.sum(e, axis=0, keepdims=True), approx=True)
            q = e * inv

            # ---- Conv3d bias + ReLU -------------------------------------------------
            qw = jnp.maximum(q * M[None, :, :] + b3d_ref[0], 0.0)      # (K, TH, W)

            # ---- 1x1 Conv2d compatibility transform: one bf16 MXU matmul -----------
            qw_flat = qw.reshape(K * TH, W).astype(jnp.bfloat16)       # free leading merge
            comp = jnp.dot(wexp_ref[...], qw_flat,
                           preferred_element_type=jnp.float32)         # (K*TH, W) f32

            # ---- unary update; unary re-read per class right before the store ------
            for k in range(K):
                uk = src[0, k]
                out_ref[0, k] = uk - (comp[k * TH:(k + 1) * TH, :] + bc_ref[k])

    return kernel


def crf_rnn_forward(x, unary_potentials, block_params_list, return_logits=True, tile_h=None):
    B, C, H, W = x.shape
    _, K, _, _ = unary_potentials.shape
    n_blocks = len(block_params_list)
    pad = max(max(p["kernel_sizes"]) for p in block_params_list) // 2
    TH = tile_h if tile_h is not None else min(H, 128)
    assert H % TH == 0 and TH % 8 == 0, "tile height must divide H and be a multiple of 8"
    assert W % 128 == 0, "W must be lane-dense (multiple of 128)"

    # Single global reflect pad (consistent with each filter's own smaller reflect pad).
    x_pad = jnp.pad(x.astype(jnp.float32),
                    ((0, 0), (0, 0), (pad, pad), (pad, pad)), mode="reflect")
    Hp, Wp = H + 2 * pad, W + 2 * pad
    slab_h = TH + 2 * pad

    smem = pl.BlockSpec(memory_space=pltpu.MemorySpace.SMEM)
    inputs = [x_pad, unary_potentials.astype(jnp.float32)]
    in_specs = [
        pl.BlockSpec((1, C, Hp, Wp), lambda b, h: (b, 0, 0, 0)),   # image: resident per batch
        pl.BlockSpec((1, K, TH, W), lambda b, h: (b, 0, h, 0)),    # unary tile (halo-free)
    ]
    n_filters = []
    for p in block_params_list:
        ksz = p["kernel_sizes"]
        n_filters.append(len(ksz))
        th_np, tv_np = _toeplitz_taps(ksz, p["kern1d"], pad, TH, W)
        # Kronecker-expanded compatibility matrix: comp = (wc (x) I_TH) @ qw_flat.
        wexp = jnp.kron(p["wc"], jnp.eye(TH, dtype=jnp.float32)).astype(jnp.bfloat16)
        inputs += [p["w3d"], p["b3d"], p["bc"], wexp,
                   jnp.asarray(th_np, dtype=jnp.bfloat16),
                   jnp.asarray(tv_np, dtype=jnp.bfloat16)]
        in_specs += [smem, smem, smem,
                     pl.BlockSpec((K * TH, K * TH), lambda b, h: (0, 0)),
                     pl.BlockSpec((len(ksz), Wp, W), lambda b, h: (0, 0, 0)),
                     pl.BlockSpec((len(ksz), TH, slab_h), lambda b, h: (0, 0, 0))]

    kernel = _build_kernel(n_blocks, tuple(n_filters), C, K, TH, W, pad)
    out = pl.pallas_call(
        kernel,
        out_shape=jax.ShapeDtypeStruct((B, K, H, W), jnp.float32),
        grid_spec=pl.GridSpec(
            grid=(B, H // TH),
            in_specs=in_specs,
            out_specs=pl.BlockSpec((1, K, TH, W), lambda b, h: (b, 0, h, 0)),
        ),
        compiler_params=pltpu.CompilerParams(
            dimension_semantics=("parallel", "parallel"),
            vmem_limit_bytes=48 * 1024 * 1024),
    )(*inputs)

    if return_logits:
        return out
    return jax.nn.softmax(out, axis=1)


def init_crf_block_params(key, n_classes, channels,
                          gaussian_kernel_sizes, gaussian_sigmas,
                          bilateral_kernel_sizes, bilateral_sigmas):
    # NOTE: the reference zips (sigmas, kernel_sizes) for the gaussian filters, so the
    # kernel size is drawn from the sigmas tuple and vice versa; reproduced literally.
    g_specs = list(zip(gaussian_sigmas, gaussian_kernel_sizes))        # (ks, sigma)
    b_specs = list(zip(bilateral_kernel_sizes, bilateral_sigmas))      # (ks, (s_space, s_color))

    kernel_sizes, kern1d = [], []
    for ks, sigma in g_specs:
        # TODO(synk): scipy.ndimage.gaussian_filter impulse-response init (incl. its
        # reflect-boundary energy) replaced by an analytic normalized separable Gaussian.
        kernel_sizes.append(int(ks))
        kern1d.append(tuple(float(v) for v in _gaussian_kernel1d(int(ks), sigma)))
    for ks, (sigma_space, _sigma_color) in b_specs:
        # TODO(synk): cv2.bilateralFilter impulse-response init not reproduced; a
        # deterministic spatial Gaussian with sigma_space is used as a stand-in.
        kernel_sizes.append(int(ks))
        kern1d.append(tuple(float(v) for v in _gaussian_kernel1d(int(ks), sigma_space)))

    F_ = len(kernel_sizes)
    CF = F_ * channels
    k1, k2, k3, k4 = jax.random.split(key, 4)
    bound3d = 1.0 / np.sqrt(CF)
    w3d = jax.random.uniform(k1, (CF,), jnp.float32, -bound3d, bound3d)       # Conv3d weight
    b3d = jax.random.uniform(k2, (1,), jnp.float32, -bound3d, bound3d)        # Conv3d bias
    boundc = 1.0 / np.sqrt(n_classes)
    wc = jax.random.uniform(k3, (n_classes, n_classes), jnp.float32, -boundc, boundc)
    bc = jax.random.uniform(k4, (n_classes,), jnp.float32, -boundc, boundc)

    return dict(kernel_sizes=tuple(kernel_sizes), kern1d=tuple(kern1d),
                w3d=w3d, b3d=b3d, wc=wc, bc=bc)


if __name__ == "__main__":
    # Small lane/sublane-friendly demo: W=128 (one full lane tile), K=8 classes,
    # H=32 with TILE_H=16 so the halo H-tiling path is actually exercised.
    B, C, H, W = 2, 3, 32, 128
    K = 8
    n_crf_blocks = 2

    key = jax.random.PRNGKey(0)
    kx, ku, kp = jax.random.split(key, 3)
    x = jax.random.normal(kx, (B, C, H, W), jnp.float32)
    unary = jax.random.normal(ku, (B, K, H, W), jnp.float32)

    cfg = dict(
        gaussian_filter_kernel_sizes=((3, 7),) * n_crf_blocks,
        gaussian_filter_sigmas=((3, 3),) * n_crf_blocks,
        bilateral_filter_kernel_sizes=((5, 9),) * n_crf_blocks,
        bilateral_filter_sigmas=(((3, 10.0), (3, 30.0)),) * n_crf_blocks,
    )
    block_keys = jax.random.split(kp, n_crf_blocks)
    block_params = [
        init_crf_block_params(
            block_keys[i], K, C,
            cfg["gaussian_filter_kernel_sizes"][i],
            cfg["gaussian_filter_sigmas"][i],
            cfg["bilateral_filter_kernel_sizes"][i],
            cfg["bilateral_filter_sigmas"][i],
        )
        for i in range(n_crf_blocks)
    ]

    out = crf_rnn_forward(x, unary, block_params, return_logits=True, tile_h=16)
    jax.block_until_ready(out)
    assert out.shape == (B, K, H, W)
    assert bool(jnp.all(jnp.isfinite(out)))
    print("KERNEL_OK")
</pallas_src>

<mosaic_0001>
module attributes {stable_mosaic.version = 11 : i64} {
  func.func @kernel(%arg0: i32, %arg1: i32, %arg2: memref<1x3x40x136xf32, #tpu.memory_space<vmem>>, %arg3: memref<1x8x16x128xf32, #tpu.memory_space<vmem>>, %arg4: memref<12xf32, #tpu.memory_space<smem>>, %arg5: memref<1xf32, #tpu.memory_space<smem>>, %arg6: memref<8xf32, #tpu.memory_space<smem>>, %arg7: memref<128x128xbf16, #tpu.memory_space<vmem>>, %arg8: memref<4x136x128xbf16, #tpu.memory_space<vmem>>, %arg9: memref<4x16x24xbf16, #tpu.memory_space<vmem>>, %arg10: memref<12xf32, #tpu.memory_space<smem>>, %arg11: memref<1xf32, #tpu.memory_space<smem>>, %arg12: memref<8xf32, #tpu.memory_space<smem>>, %arg13: memref<128x128xbf16, #tpu.memory_space<vmem>>, %arg14: memref<4x136x128xbf16, #tpu.memory_space<vmem>>, %arg15: memref<4x16x24xbf16, #tpu.memory_space<vmem>>, %arg16: memref<1x8x16x128xf32, #tpu.memory_space<vmem>>) attributes {dimension_semantics = [#tpu.dimension_semantics<parallel>, #tpu.dimension_semantics<parallel>], iteration_bounds = array<i64: 2, 2>, scalar_prefetch = 0 : i64, scratch_operands = 0 : i64, tpu.core_type = #tpu.core_type<tc>, window_params = [{transform_indices = @transform_0, window_bounds = array<i64: 1, 3, 40, 136>}, {transform_indices = @transform_1, window_bounds = array<i64: 1, 8, 16, 128>}, {transform_indices = @transform_2, window_bounds = array<i64: 12>}, {transform_indices = @transform_3, window_bounds = array<i64: 1>}, {transform_indices = @transform_4, window_bounds = array<i64: 8>}, {pipeline_mode = #tpu.pipeline_mode<synchronous>, transform_indices = @transform_5, window_bounds = array<i64: 128, 128>}, {pipeline_mode = #tpu.pipeline_mode<synchronous>, transform_indices = @transform_6, window_bounds = array<i64: 4, 136, 128>}, {pipeline_mode = #tpu.pipeline_mode<synchronous>, transform_indices = @transform_7, window_bounds = array<i64: 4, 16, 24>}, {transform_indices = @transform_8, window_bounds = array<i64: 12>}, {transform_indices = @transform_9, window_bounds = array<i64: 1>}, {transform_indices = @transform_10, window_bounds = array<i64: 8>}, {pipeline_mode = #tpu.pipeline_mode<synchronous>, transform_indices = @transform_11, window_bounds = array<i64: 128, 128>}, {pipeline_mode = #tpu.pipeline_mode<synchronous>, transform_indices = @transform_12, window_bounds = array<i64: 4, 136, 128>}, {pipeline_mode = #tpu.pipeline_mode<synchronous>, transform_indices = @transform_13, window_bounds = array<i64: 4, 16, 24>}, {transform_indices = @transform_14, window_bounds = array<i64: 1, 8, 16, 128>}]} {
    %c16_i32 = arith.constant 16 : i32
    %0 = arith.muli %arg1, %c16_i32 : i32
    %1 = tpu.assume_multiple %0, 16 : i32
    %c0 = arith.constant 0 : index
    %c0_0 = arith.constant 0 : index
    %2 = arith.index_cast %1 : i32 to index
    %c0_1 = arith.constant 0 : index
    %3 = vector.load %arg2[%c0, %c0_0, %2, %c0_1] : memref<1x3x40x136xf32, #tpu.memory_space<vmem>>, vector<1x1x24x136xf32>
    %4 = vector.shape_cast %3 : vector<1x1x24x136xf32> to vector<24x136xf32>
    %c0_2 = arith.constant 0 : index
    %c1 = arith.constant 1 : index
    %5 = arith.index_cast %1 : i32 to index
    %c0_3 = arith.constant 0 : index
    %6 = vector.load %arg2[%c0_2, %c1, %5, %c0_3] : memref<1x3x40x136xf32, #tpu.memory_space<vmem>>, vector<1x1x24x136xf32>
    %7 = vector.shape_cast %6 : vector<1x1x24x136xf32> to vector<24x136xf32>
    %c0_4 = arith.constant 0 : index
    %c2 = arith.constant 2 : index
    %8 = arith.index_cast %1 : i32 to index
    %c0_5 = arith.constant 0 : index
    %9 = vector.load %arg2[%c0_4, %c2, %8, %c0_5] : memref<1x3x40x136xf32, #tpu.memory_space<vmem>>, vector<1x1x24x136xf32>
    %10 = vector.shape_cast %9 : vector<1x1x24x136xf32> to vector<24x136xf32>
    %c0_6 = arith.constant 0 : index
    %11 = memref.load %arg4[%c0_6] : memref<12xf32, #tpu.memory_space<smem>>
    %12 = vector.broadcast %11 : f32 to vector<24x136xf32>
    %13 = arith.mulf %12, %4 : vector<24x136xf32>
    %c1_7 = arith.constant 1 : index
    %14 = memref.load %arg4[%c1_7] : memref<12xf32, #tpu.memory_space<smem>>
    %15 = vector.broadcast %14 : f32 to vector<24x136xf32>
    %16 = arith.mulf %15, %7 : vector<24x136xf32>
    %17 = arith.addf %13, %16 : vector<24x136xf32>
    %c2_8 = arith.constant 2 : index
    %18 = memref.load %arg4[%c2_8] : memref<12xf32, #tpu.memory_space<smem>>
    %19 = vector.broadcast %18 : f32 to vector<24x136xf32>
    %20 = arith.mulf %19, %10 : vector<24x136xf32>
    %21 = arith.addf %17, %20 : vector<24x136xf32>
    %22 = arith.truncf %21 : vector<24x136xf32> to vector<24x136xbf16>
    %c0_9 = arith.constant 0 : index
    %c0_10 = arith.constant 0 : index
    %c0_11 = arith.constant 0 : index
    %23 = vector.load %arg8[%c0_9, %c0_10, %c0_11] : memref<4x136x128xbf16, #tpu.memory_space<vmem>>, vector<1x136x128xbf16>
    %24 = vector.shape_cast %23 : vector<1x136x128xbf16> to vector<136x128xbf16>
    %cst = arith.constant dense<0.000000e+00> : vector<24x128xf32>
    %25 = tpu.matmul %22, %24, %cst {dimension_numbers = #tpu.dot_dimension_numbers<[1], [0], [0], [1], [0, 0, 1, 1], [], []>} : vector<24x136xbf16>, vector<136x128xbf16>, vector<24x128xf32> -> vector<24x128xf32>
    %c0_12 = arith.constant 0 : index
    %c0_13 = arith.constant 0 : index
    %c0_14 = arith.constant 0 : index
    %26 = vector.load %arg9[%c0_12, %c0_13, %c0_14] : memref<4x16x24xbf16, #tpu.memory_space<vmem>>, vector<1x16x24xbf16>
    %27 = vector.shape_cast %26 : vector<1x16x24xbf16> to vector<16x24xbf16>
    %28 = arith.truncf %25 : vector<24x128xf32> to vector<24x128xbf16>
    %cst_15 = arith.constant dense<0.000000e+00> : vector<16x128xf32>
    %29 = tpu.matmul %27, %28, %cst_15 {dimension_numbers = #tpu.dot_dimension_numbers<[1], [0], [0], [1], [0, 0, 1, 1], [], []>} : vector<16x24xbf16>, vector<24x128xbf16>, vector<16x128xf32> -> vector<16x128xf32>
    %c3 = arith.constant 3 : index
    %30 = memref.load %arg4[%c3] : memref<12xf32, #tpu.memory_space<smem>>
    %31 = vector.broadcast %30 : f32 to vector<24x136xf32>
    %32 = arith.mulf %31, %4 : vector<24x136xf32>
    %c4 = arith.constant 4 : index
    %33 = memref.load %arg4[%c4] : memref<12xf32, #tpu.memory_space<smem>>
    %34 = vector.broadcast %33 : f32 to vector<24x136xf32>
    %35 = arith.mulf %34, %7 : vector<24x136xf32>
    %36 = arith.addf %32, %35 : vector<24x136xf32>
    %c5 = arith.constant 5 : index
    %37 = memref.load %arg4[%c5] : memref<12xf32, #tpu.memory_space<smem>>
    %38 = vector.broadcast %37 : f32 to vector<24x136xf32>
    %39 = arith.mulf %38, %10 : vector<24x136xf32>
    %40 = arith.addf %36, %39 : vector<24x136xf32>
    %41 = arith.truncf %40 : vector<24x136xf32> to vector<24x136xbf16>
    %c1_16 = arith.constant 1 : index
    %c0_17 = arith.constant 0 : index
    %c0_18 = arith.constant 0 : index
    %42 = vector.load %arg8[%c1_16, %c0_17, %c0_18] : memref<4x136x128xbf16, #tpu.memory_space<vmem>>, vector<1x136x128xbf16>
    %43 = vector.shape_cast %42 : vector<1x136x128xbf16> to vector<136x128xbf16>
    %cst_19 = arith.constant dense<0.000000e+00> : vector<24x128xf32>
    %44 = tpu.matmul %41, %43, %cst_19 {dimension_numbers = #tpu.dot_dimension_numbers<[1], [0], [0], [1], [0, 0, 1, 1], [], []>} : vector<24x136xbf16>, vector<136x128xbf16>, vector<24x128xf32> -> vector<24x128xf32>
    %c1_20 = arith.constant 1 : index
    %c0_21 = arith.constant 0 : index
    %c0_22 = arith.constant 0 : index
    %45 = vector.load %arg9[%c1_20, %c0_21, %c0_22] : memref<4x16x24xbf16, #tpu.memory_space<vmem>>, vector<1x16x24xbf16>
    %46 = vector.shape_cast %45 : vector<1x16x24xbf16> to vector<16x24xbf16>
    %47 = arith.truncf %44 : vector<24x128xf32> to vector<24x128xbf16>
    %cst_23 = arith.constant dense<0.000000e+00> : vector<16x128xf32>
    %48 = tpu.matmul %46, %47, %cst_23 {dimension_numbers = #tpu.dot_dimension_numbers<[1], [0], [0], [1], [0, 0, 1, 1], [], []>} : vector<16x24xbf16>, vector<24x128xbf16>, vector<16x128xf32> -> vector<16x128xf32>
    %49 = arith.addf %29, %48 : vector<16x128xf32>
    %c6 = arith.constant 6 : index
    %50 = memref.load %arg4[%c6] : memref<12xf32, #tpu.memory_space<smem>>
    %51 = vector.broadcast %50 : f32 to vector<24x136xf32>
    %52 = arith.mulf %51, %4 : vector<24x136xf32>
    %c7 = arith.constant 7 : index
    %53 = memref.load %arg4[%c7] : memref<12xf32, #tpu.memory_space<smem>>
    %54 = vector.broadcast %53 : f32 to vector<24x136xf32>
    %55 = arith.mulf %54, %7 : vector<24x136xf32>
    %56 = arith.addf %52, %55 : vector<24x136xf32>
    %c8 = arith.constant 8 : index
    %57 = memref.load %arg4[%c8] : memref<12xf32, #tpu.memory_space<smem>>
    %58 = vector.broadcast %57 : f32 to vector<24x136xf32>
    %59 = arith.mulf %58, %10 : vector<24x136xf32>
    %60 = arith.addf %56, %59 : vector<24x136xf32>
    %61 = arith.truncf %60 : vector<24x136xf32> to vector<24x136xbf16>
    %c2_24 = arith.constant 2 : index
    %c0_25 = arith.constant 0 : index
    %c0_26 = arith.constant 0 : index
    %62 = vector.load %arg8[%c2_24, %c0_25, %c0_26] : memref<4x136x128xbf16, #tpu.memory_space<vmem>>, vector<1x136x128xbf16>
    %63 = vector.shape_cast %62 : vector<1x136x128xbf16> to vector<136x128xbf16>
    %cst_27 = arith.constant dense<0.000000e+00> : vector<24x128xf32>
    %64 = tpu.matmul %61, %63, %cst_27 {dimension_numbers = #tpu.dot_dimension_numbers<[1], [0], [0], [1], [0, 0, 1, 1], [], []>} : vector<24x136xbf16>, vector<136x128xbf16>, vector<24x128xf32> -> vector<24x128xf32>
    %c2_28 = arith.constant 2 : index
    %c0_29 = arith.constant 0 : index
    %c0_30 = arith.constant 0 : index
    %65 = vector.load %arg9[%c2_28, %c0_29, %c0_30] : memref<4x16x24xbf16, #tpu.memory_space<vmem>>, vector<1x16x24xbf16>
    %66 = vector.shape_cast %65 : vector<1x16x24xbf16> to vector<16x24xbf16>
    %67 = arith.truncf %64 : vector<24x128xf32> to vector<24x128xbf16>
    %cst_31 = arith.constant dense<0.000000e+00> : vector<16x128xf32>
    %68 = tpu.matmul %66, %67, %cst_31 {dimension_numbers = #tpu.dot_dimension_numbers<[1], [0], [0], [1], [0, 0, 1, 1], [], []>} : vector<16x24xbf16>, vector<24x128xbf16>, vector<16x128xf32> -> vector<16x128xf32>
    %69 = arith.addf %49, %68 : vector<16x128xf32>
    %c9 = arith.constant 9 : index
    %70 = memref.load %arg4[%c9] : memref<12xf32, #tpu.memory_space<smem>>
    %71 = vector.broadcast %70 : f32 to vector<24x136xf32>
    %72 = arith.mulf %71, %4 : vector<24x136xf32>
    %c10 = arith.constant 10 : index
    %73 = memref.load %arg4[%c10] : memref<12xf32, #tpu.memory_space<smem>>
    %74 = vector.broadcast %73 : f32 to vector<24x136xf32>
    %75 = arith.mulf %74, %7 : vector<24x136xf32>
    %76 = arith.addf %72, %75 : vector<24x136xf32>
    %c11 = arith.constant 11 : index
    %77 = memref.load %arg4[%c11] : memref<12xf32, #tpu.memory_space<smem>>
    %78 = vector.broadcast %77 : f32 to vector<24x136xf32>
    %79 = arith.mulf %78, %10 : vector<24x136xf32>
    %80 = arith.addf %76, %79 : vector<24x136xf32>
    %81 = arith.truncf %80 : vector<24x136xf32> to vector<24x136xbf16>
    %c3_32 = arith.constant 3 : index
    %c0_33 = arith.constant 0 : index
    %c0_34 = arith.constant 0 : index
    %82 = vector.load %arg8[%c3_32, %c0_33, %c0_34] : memref<4x136x128xbf16, #tpu.memory_space<vmem>>, vector<1x136x128xbf16>
    %83 = vector.shape_cast %82 : vector<1x136x128xbf16> to vector<136x128xbf16>
    %cst_35 = arith.constant dense<0.000000e+00> : vector<24x128xf32>
    %84 = tpu.matmul %81, %83, %cst_35 {dimension_numbers = #tpu.dot_dimension_numbers<[1], [0], [0], [1], [0, 0, 1, 1], [], []>} : vector<24x136xbf16>, vector<136x128xbf16>, vector<24x128xf32> -> vector<24x128xf32>
    %c3_36 = arith.constant 3 : index
    %c0_37 = arith.constant 0 : index
    %c0_38 = arith.constant 0 : index
    %85 = vector.load %arg9[%c3_36, %c0_37, %c0_38] : memref<4x16x24xbf16, #tpu.memory_space<vmem>>, vector<1x16x24xbf16>
    %86 = vector.shape_cast %85 : vector<1x16x24xbf16> to vector<16x24xbf16>
    %87 = arith.truncf %84 : vector<24x128xf32> to vector<24x128xbf16>
    %cst_39 = arith.constant dense<0.000000e+00> : vector<16x128xf32>
    %88 = tpu.matmul %86, %87, %cst_39 {dimension_numbers = #tpu.dot_dimension_numbers<[1], [0], [0], [1], [0, 0, 1, 1], [], []>} : vector<16x24xbf16>, vector<24x128xbf16>, vector<16x128xf32> -> vector<16x128xf32>
    %89 = arith.addf %69, %88 : vector<16x128xf32>
    %c0_40 = arith.constant 0 : index
    %c0_41 = arith.constant 0 : index
    %c0_42 = arith.constant 0 : index
    %c0_43 = arith.constant 0 : index
    %90 = vector.load %arg3[%c0_40, %c0_41, %c0_42, %c0_43] : memref<1x8x16x128xf32, #tpu.memory_space<vmem>>, vector<1x8x16x128xf32>
    %91 = vector.shape_cast %90 : vector<1x8x16x128xf32> to vector<8x16x128xf32>
    %cst_44 = arith.constant dense<0xFF800000> : vector<16x128xf32>
    %92 = vector.multi_reduction <maximumf>, %91, %cst_44 [0] : vector<8x16x128xf32> to vector<16x128xf32>
    %93 = vector.shape_cast %92 : vector<16x128xf32> to vector<1x16x128xf32>
    %94 = vector.broadcast %93 : vector<1x16x128xf32> to vector<8x16x128xf32>
    %95 = arith.subf %91, %94 : vector<8x16x128xf32>
    %96 = math.exp %95 : vector<8x16x128xf32>
    %cst_45 = arith.constant dense<0.000000e+00> : vector<16x128xf32>
    %97 = vector.multi_reduction <add>, %96, %cst_45 [0] : vector<8x16x128xf32> to vector<16x128xf32>
    %98 = vector.shape_cast %97 : vector<16x128xf32> to vector<1x16x128xf32>
    %99 = tpu.reciprocal %98 {approx = true} : vector<1x16x128xf32> -> vector<1x16x128xf32>
    %100 = vector.broadcast %99 : vector<1x16x128xf32> to vector<8x16x128xf32>
    %101 = arith.mulf %96, %100 : vector<8x16x128xf32>
    %102 = vector.shape_cast %89 : vector<16x128xf32> to vector<1x16x128xf32>
    %103 = vector.broadcast %102 : vector<1x16x128xf32> to vector<8x16x128xf32>
    %104 = arith.mulf %101, %103 : vector<8x16x128xf32>
    %c0_46 = arith.constant 0 : index
    %105 = memref.load %arg5[%c0_46] : memref<1xf32, #tpu.memory_space<smem>>
    %106 = vector.broadcast %105 : f32 to vector<8x16x128xf32>
    %107 = arith.addf %104, %106 : vector<8x16x128xf32>
    %cst_47 = arith.constant 0.000000e+00 : f32
    %108 = vector.broadcast %cst_47 : f32 to vector<8x16x128xf32>
    %109 = arith.maximumf %107, %108 : vector<8x16x128xf32>
    %110 = vector.shape_cast %109 : vector<8x16x128xf32> to vector<128x128xf32>
    %111 = arith.truncf %110 : vector<128x128xf32> to vector<128x128xbf16>
    %c0_48 = arith.constant 0 : index
    %c0_49 = arith.constant 0 : index
    %112 = vector.load %arg7[%c0_48, %c0_49] : memref<128x128xbf16, #tpu.memory_space<vmem>>, vector<128x128xbf16>
    %cst_50 = arith.constant dense<0.000000e+00> : vector<128x128xf32>
    %113 = tpu.matmul %112, %111, %cst_50 {dimension_numbers = #tpu.dot_dimension_numbers<[1], [0], [0], [1], [0, 0, 1, 1], [], []>} : vector<128x128xbf16>, vector<128x128xbf16>, vector<128x128xf32> -> vector<128x128xf32>
    %c0_51 = arith.constant 0 : index
    %c0_52 = arith.constant 0 : index
    %c0_53 = arith.constant 0 : index
    %c0_54 = arith.constant 0 : index
    %114 = vector.load %arg3[%c0_51, %c0_52, %c0_53, %c0_54] : memref<1x8x16x128xf32, #tpu.memory_space<vmem>>, vector<1x1x16x128xf32>
    %115 = vector.shape_cast %114 : vector<1x1x16x128xf32> to vector<16x128xf32>
    %116 = vector.extract_strided_slice %113 {offsets = [0, 0], sizes = [16, 128], strides = [1, 1]} : vector<128x128xf32> to vector<16x128xf32>
    %c0_55 = arith.constant 0 : index
    %117 = memref.load %arg6[%c0_55] : memref<8xf32, #tpu.memory_space<smem>>
    %118 = vector.broadcast %117 : f32 to vector<16x128xf32>
    %119 = arith.addf %116, %118 : vector<16x128xf32>
    %120 = arith.subf %115, %119 : vector<16x128xf32>
    %c0_56 = arith.constant 0 : index
    %c0_57 = arith.constant 0 : index
    %c0_58 = arith.constant 0 : index
    %c0_59 = arith.constant 0 : index
    %121 = vector.load %arg16[%c0_56, %c0_57, %c0_58, %c0_59] : memref<1x8x16x128xf32, #tpu.memory_space<vmem>>, vector<1x1x16x128xf32>
    %122 = vector.shape_cast %121 : vector<1x1x16x128xf32> to vector<16x128xf32>
    %123 = vector.shape_cast %120 : vector<16x128xf32> to vector<1x1x16x128xf32>
    tpu.vector_store %arg16[%c0_56, %c0_57, %c0_58, %c0_59], %123 {strides = array<i32>} : memref<1x8x16x128xf32, #tpu.memory_space<vmem>>, vector<1x1x16x128xf32>,
    %c0_60 = arith.constant 0 : index
    %c1_61 = arith.constant 1 : index
    %c0_62 = arith.constant 0 : index
    %c0_63 = arith.constant 0 : index
    %124 = vector.load %arg3[%c0_60, %c1_61, %c0_62, %c0_63] : memref<1x8x16x128xf32, #tpu.memory_space<vmem>>, vector<1x1x16x128xf32>
    %125 = vector.shape_cast %124 : vector<1x1x16x128xf32> to vector<16x128xf32>
    %126 = vector.extract_strided_slice %113 {offsets = [16, 0], sizes = [16, 128], strides = [1, 1]} : vector<128x128xf32> to vector<16x128xf32>
    %c1_64 = arith.constant 1 : index
    %127 = memref.load %arg6[%c1_64] : memref<8xf32, #tpu.memory_space<smem>>
    %128 = vector.broadcast %127 : f32 to vector<16x128xf32>
    %129 = arith.addf %126, %128 : vector<16x128xf32>
    %130 = arith.subf %125, %129 : vector<16x128xf32>
    %c0_65 = arith.constant 0 : index
    %c1_66 = arith.constant 1 : index
    %c0_67 = arith.constant 0 : index
    %c0_68 = arith.constant 0 : index
    %131 = vector.load %arg16[%c0_65, %c1_66, %c0_67, %c0_68] : memref<1x8x16x128xf32, #tpu.memory_space<vmem>>, vector<1x1x16x128xf32>
    %132 = vector.shape_cast %131 : vector<1x1x16x128xf32> to vector<16x128xf32>
    %133 = vector.shape_cast %130 : vector<16x128xf32> to vector<1x1x16x128xf32>
    tpu.vector_store %arg16[%c0_65, %c1_66, %c0_67, %c0_68], %133 {strides = array<i32>} : memref<1x8x16x128xf32, #tpu.memory_space<vmem>>, vector<1x1x16x128xf32>,
    %c0_69 = arith.constant 0 : index
    %c2_70 = arith.constant 2 : index
    %c0_71 = arith.constant 0 : index
    %c0_72 = arith.constant 0 : index
    %134 = vector.load %arg3[%c0_69, %c2_70, %c0_71, %c0_72] : memref<1x8x16x128xf32, #tpu.memory_space<vmem>>, vector<1x1x16x128xf32>
    %135 = vector.shape_cast %134 : vector<1x1x16x128xf32> to vector<16x128xf32>
    %136 = vector.extract_strided_slice %113 {offsets = [32, 0], sizes = [16, 128], strides = [1, 1]} : vector<128x128xf32> to vector<16x128xf32>
    %c2_73 = arith.constant 2 : index
    %137 = memref.load %arg6[%c2_73] : memref<8xf32, #tpu.memory_space<smem>>
    %138 = vector.broadcast %137 : f32 to vector<16x128xf32>
    %139 = arith.addf %136, %138 : vector<16x128xf32>
    %140 = arith.subf %135, %139 : vector<16x128xf32>
    %c0_74 = arith.constant 0 : index
    %c2_75 = arith.constant 2 : index
    %c0_76 = arith.constant 0 : index
    %c0_77 = arith.constant 0 : index
    %141 = vector.load %arg16[%c0_74, %c2_75, %c0_76, %c0_77] : memref<1x8x16x128xf32, #tpu.memory_space<vmem>>, vector<1x1x16x128xf32>
    %142 = vector.shape_cast %141 : vector<1x1x16x128xf32> to vector<16x128xf32>
    %143 = vector.shape_cast %140 : vector<16x128xf32> to vector<1x1x16x128xf32>
    tpu.vector_store %arg16[%c0_74, %c2_75, %c0_76, %c0_77], %143 {strides = array<i32>} : memref<1x8x16x128xf32, #tpu.memory_space<vmem>>, vector<1x1x16x128xf32>,
    %c0_78 = arith.constant 0 : index
    %c3_79 = arith.constant 3 : index
    %c0_80 = arith.constant 0 : index
    %c0_81 = arith.constant 0 : index
    %144 = vector.load %arg3[%c0_78, %c3_79, %c0_80, %c0_81] : memref<1x8x16x128xf32, #tpu.memory_space<vmem>>, vector<1x1x16x128xf32>
    %145 = vector.shape_cast %144 : vector<1x1x16x128xf32> to vector<16x128xf32>
    %146 = vector.extract_strided_slice %113 {offsets = [48, 0], sizes = [16, 128], strides = [1, 1]} : vector<128x128xf32> to vector<16x128xf32>
    %c3_82 = arith.constant 3 : index
    %147 = memref.load %arg6[%c3_82] : memref<8xf32, #tpu.memory_space<smem>>
    %148 = vector.broadcast %147 : f32 to vector<16x128xf32>
    %149 = arith.addf %146, %148 : vector<16x128xf32>
    %150 = arith.subf %145, %149 : vector<16x128xf32>
    %c0_83 = arith.constant 0 : index
    %c3_84 = arith.constant 3 : index
    %c0_85 = arith.constant 0 : index
    %c0_86 = arith.constant 0 : index
    %151 = vector.load %arg16[%c0_83, %c3_84, %c0_85, %c0_86] : memref<1x8x16x128xf32, #tpu.memory_space<vmem>>, vector<1x1x16x128xf32>
    %152 = vector.shape_cast %151 : vector<1x1x16x128xf32> to vector<16x128xf32>
    %153 = vector.shape_cast %150 : vector<16x128xf32> to vector<1x1x16x128xf32>
    tpu.vector_store %arg16[%c0_83, %c3_84, %c0_85, %c0_86], %153 {strides = array<i32>} : memref<1x8x16x128xf32, #tpu.memory_space<vmem>>, vector<1x1x16x128xf32>,
    %c0_87 = arith.constant 0 : index
    %c4_88 = arith.constant 4 : index
    %c0_89 = arith.constant 0 : index
    %c0_90 = arith.constant 0 : index
    %154 = vector.load %arg3[%c0_87, %c4_88, %c0_89, %c0_90] : memref<1x8x16x128xf32, #tpu.memory_space<vmem>>, vector<1x1x16x128xf32>
    %155 = vector.shape_cast %154 : vector<1x1x16x128xf32> to vector<16x128xf32>
    %156 = vector.extract_strided_slice %113 {offsets = [64, 0], sizes = [16, 128], strides = [1, 1]} : vector<128x128xf32> to vector<16x128xf32>
    %c4_91 = arith.constant 4 : index
    %157 = memref.load %arg6[%c4_91] : memref<8xf32, #tpu.memory_space<smem>>
    %158 = vector.broadcast %157 : f32 to vector<16x128xf32>
    %159 = arith.addf %156, %158 : vector<16x128xf32>
    %160 = arith.subf %155, %159 : vector<16x128xf32>
    %c0_92 = arith.constant 0 : index
    %c4_93 = arith.constant 4 : index
    %c0_94 = arith.constant 0 : index
    %c0_95 = arith.constant 0 : index
    %161 = vector.load %arg16[%c0_92, %c4_93, %c0_94, %c0_95] : memref<1x8x16x128xf32, #tpu.memory_space<vmem>>, vector<1x1x16x128xf32>
    %162 = vector.shape_cast %161 : vector<1x1x16x128xf32> to vector<16x128xf32>
    %163 = vector.shape_cast %160 : vector<16x128xf32> to vector<1x1x16x128xf32>
    tpu.vector_store %arg16[%c0_92, %c4_93, %c0_94, %c0_95], %163 {strides = array<i32>} : memref<1x8x16x128xf32, #tpu.memory_space<vmem>>, vector<1x1x16x128xf32>,
    %c0_96 = arith.constant 0 : index
    %c5_97 = arith.constant 5 : index
    %c0_98 = arith.constant 0 : index
    %c0_99 = arith.constant 0 : index
    %164 = vector.load %arg3[%c0_96, %c5_97, %c0_98, %c0_99] : memref<1x8x16x128xf32, #tpu.memory_space<vmem>>, vector<1x1x16x128xf32>
    %165 = vector.shape_cast %164 : vector<1x1x16x128xf32> to vector<16x128xf32>
    %166 = vector.extract_strided_slice %113 {offsets = [80, 0], sizes = [16, 128], strides = [1, 1]} : vector<128x128xf32> to vector<16x128xf32>
    %c5_100 = arith.constant 5 : index
    %167 = memref.load %arg6[%c5_100] : memref<8xf32, #tpu.memory_space<smem>>
    %168 = vector.broadcast %167 : f32 to vector<16x128xf32>
    %169 = arith.addf %166, %168 : vector<16x128xf32>
    %170 = arith.subf %165, %169 : vector<16x128xf32>
    %c0_101 = arith.constant 0 : index
    %c5_102 = arith.constant 5 : index
    %c0_103 = arith.constant 0 : index
    %c0_104 = arith.constant 0 : index
    %171 = vector.load %arg16[%c0_101, %c5_102, %c0_103, %c0_104] : memref<1x8x16x128xf32, #tpu.memory_space<vmem>>, vector<1x1x16x128xf32>
    %172 = vector.shape_cast %171 : vector<1x1x16x128xf32> to vector<16x128xf32>
    %173 = vector.shape_cast %170 : vector<16x128xf32> to vector<1x1x16x128xf32>
    tpu.vector_store %arg16[%c0_101, %c5_102, %c0_103, %c0_104], %173 {strides = array<i32>} : memref<1x8x16x128xf32, #tpu.memory_space<vmem>>, vector<1x1x16x128xf32>,
    %c0_105 = arith.constant 0 : index
    %c6_106 = arith.constant 6 : index
    %c0_107 = arith.constant 0 : index
    %c0_108 = arith.constant 0 : index
    %174 = vector.load %arg3[%c0_105, %c6_106, %c0_107, %c0_108] : memref<1x8x16x128xf32, #tpu.memory_space<vmem>>, vector<1x1x16x128xf32>
    %175 = vector.shape_cast %174 : vector<1x1x16x128xf32> to vector<16x128xf32>
    %176 = vector.extract_strided_slice %113 {offsets = [96, 0], sizes = [16, 128], strides = [1, 1]} : vector<128x128xf32> to vector<16x128xf32>
    %c6_109 = arith.constant 6 : index
    %177 = memref.load %arg6[%c6_109] : memref<8xf32, #tpu.memory_space<smem>>
    %178 = vector.broadcast %177 : f32 to vector<16x128xf32>
    %179 = arith.addf %176, %178 : vector<16x128xf32>
    %180 = arith.subf %175, %179 : vector<16x128xf32>
    %c0_110 = arith.constant 0 : index
    %c6_111 = arith.constant 6 : index
    %c0_112 = arith.constant 0 : index
    %c0_113 = arith.constant 0 : index
    %181 = vector.load %arg16[%c0_110, %c6_111, %c0_112, %c0_113] : memref<1x8x16x128xf32, #tpu.memory_space<vmem>>, vector<1x1x16x128xf32>
    %182 = vector.shape_cast %181 : vector<1x1x16x128xf32> to vector<16x128xf32>
    %183 = vector.shape_cast %180 : vector<16x128xf32> to vector<1x1x16x128xf32>
    tpu.vector_store %arg16[%c0_110, %c6_111, %c0_112, %c0_113], %183 {strides = array<i32>} : memref<1x8x16x128xf32, #tpu.memory_space<vmem>>, vector<1x1x16x128xf32>,
    %c0_114 = arith.constant 0 : index
    %c7_115 = arith.constant 7 : index
    %c0_116 = arith.constant 0 : index
    %c0_117 = arith.constant 0 : index
    %184 = vector.load %arg3[%c0_114, %c7_115, %c0_116, %c0_117] : memref<1x8x16x128xf32, #tpu.memory_space<vmem>>, vector<1x1x16x128xf32>
    %185 = vector.shape_cast %184 : vector<1x1x16x128xf32> to vector<16x128xf32>
    %186 = vector.extract_strided_slice %113 {offsets = [112, 0], sizes = [16, 128], strides = [1, 1]} : vector<128x128xf32> to vector<16x128xf32>
    %c7_118 = arith.constant 7 : index
    %187 = memref.load %arg6[%c7_118] : memref<8xf32, #tpu.memory_space<smem>>
    %188 = vector.broadcast %187 : f32 to vector<16x128xf32>
    %189 = arith.addf %186, %188 : vector<16x128xf32>
    %190 = arith.subf %185, %189 : vector<16x128xf32>
    %c0_119 = arith.constant 0 : index
    %c7_120 = arith.constant 7 : index
    %c0_121 = arith.constant 0 : index
    %c0_122 = arith.constant 0 : index
    %191 = vector.load %arg16[%c0_119, %c7_120, %c0_121, %c0_122] : memref<1x8x16x128xf32, #tpu.memory_space<vmem>>, vector<1x1x16x128xf32>
    %192 = vector.shape_cast %191 : vector<1x1x16x128xf32> to vector<16x128xf32>
    %193 = vector.shape_cast %190 : vector<16x128xf32> to vector<1x1x16x128xf32>
    tpu.vector_store %arg16[%c0_119, %c7_120, %c0_121, %c0_122], %193 {strides = array<i32>} : memref<1x8x16x128xf32, #tpu.memory_space<vmem>>, vector<1x1x16x128xf32>,
    %c0_123 = arith.constant 0 : index
    %194 = memref.load %arg10[%c0_123] : memref<12xf32, #tpu.memory_space<smem>>
    %195 = vector.broadcast %194 : f32 to vector<24x136xf32>
    %196 = arith.mulf %195, %4 : vector<24x136xf32>
    %c1_124 = arith.constant 1 : index
    %197 = memref.load %arg10[%c1_124] : memref<12xf32, #tpu.memory_space<smem>>
    %198 = vector.broadcast %197 : f32 to vector<24x136xf32>
    %199 = arith.mulf %198, %7 : vector<24x136xf32>
    %200 = arith.addf %196, %199 : vector<24x136xf32>
    %c2_125 = arith.constant 2 : index
    %201 = memref.load %arg10[%c2_125] : memref<12xf32, #tpu.memory_space<smem>>
    %202 = vector.broadcast %201 : f32 to vector<24x136xf32>
    %203 = arith.mulf %202, %10 : vector<24x136xf32>
    %204 = arith.addf %200, %203 : vector<24x136xf32>
    %205 = arith.truncf %204 : vector<24x136xf32> to vector<24x136xbf16>
    %c0_126 = arith.constant 0 : index
    %c0_127 = arith.constant 0 : index
    %c0_128 = arith.constant 0 : index
    %206 = vector.load %arg14[%c0_126, %c0_127, %c0_128] : memref<4x136x128xbf16, #tpu.memory_space<vmem>>, vector<1x136x128xbf16>
    %207 = vector.shape_cast %206 : vector<1x136x128xbf16> to vector<136x128xbf16>
    %cst_129 = arith.constant dense<0.000000e+00> : vector<24x128xf32>
    %208 = tpu.matmul %205, %207, %cst_129 {dimension_numbers = #tpu.dot_dimension_numbers<[1], [0], [0], [1], [0, 0, 1, 1], [], []>} : vector<24x136xbf16>, vector<136x128xbf16>, vector<24x128xf32> -> vector<24x128xf32>
    %c0_130 = arith.constant 0 : index
    %c0_131 = arith.constant 0 : index
    %c0_132 = arith.constant 0 : index
    %209 = vector.load %arg15[%c0_130, %c0_131, %c0_132] : memref<4x16x24xbf16, #tpu.memory_space<vmem>>, vector<1x16x24xbf16>
    %210 = vector.shape_cast %209 : vector<1x16x24xbf16> to vector<16x24xbf16>
    %211 = arith.truncf %208 : vector<24x128xf32> to vector<24x128xbf16>
    %cst_133 = arith.constant dense<0.000000e+00> : vector<16x128xf32>
    %212 = tpu.matmul %210, %211, %cst_133 {dimension_numbers = #tpu.dot_dimension_numbers<[1], [0], [0], [1], [0, 0, 1, 1], [], []>} : vector<16x24xbf16>, vector<24x128xbf16>, vector<16x128xf32> -> vector<16x128xf32>
    %c3_134 = arith.constant 3 : index
    %213 = memref.load %arg10[%c3_134] : memref<12xf32, #tpu.memory_space<smem>>
    %214 = vector.broadcast %213 : f32 to vector<24x136xf32>
    %215 = arith.mulf %214, %4 : vector<24x136xf32>
    %c4_135 = arith.constant 4 : index
    %216 = memref.load %arg10[%c4_135] : memref<12xf32, #tpu.memory_space<smem>>
    %217 = vector.broadcast %216 : f32 to vector<24x136xf32>
    %218 = arith.mulf %217, %7 : vector<24x136xf32>
    %219 = arith.addf %215, %218 : vector<24x136xf32>
    %c5_136 = arith.constant 5 : index
    %220 = memref.load %arg10[%c5_136] : memref<12xf32, #tpu.memory_space<smem>>
    %221 = vector.broadcast %220 : f32 to vector<24x136xf32>
    %222 = arith.mulf %221, %10 : vector<24x136xf32>
    %223 = arith.addf %219, %222 : vector<24x136xf32>
    %224 = arith.truncf %223 : vector<24x136xf32> to vector<24x136xbf16>
    %c1_137 = arith.constant 1 : index
    %c0_138 = arith.constant 0 : index
    %c0_139 = arith.constant 0 : index
    %225 = vector.load %arg14[%c1_137, %c0_138, %c0_139] : memref<4x136x128xbf16, #tpu.memory_space<vmem>>, vector<1x136x128xbf16>
    %226 = vector.shape_cast %225 : vector<1x136x128xbf16> to vector<136x128xbf16>
    %cst_140 = arith.constant dense<0.000000e+00> : vector<24x128xf32>
    %227 = tpu.matmul %224, %226, %cst_140 {dimension_numbers = #tpu.dot_dimension_numbers<[1], [0], [0], [1], [0, 0, 1, 1], [], []>} : vector<24x136xbf16>, vector<136x128xbf16>, vector<24x128xf32> -> vector<24x128xf32>
    %c1_141 = arith.constant 1 : index
    %c0_142 = arith.constant 0 : index
    %c0_143 = arith.constant 0 : index
    %228 = vector.load %arg15[%c1_141, %c0_142, %c0_143] : memref<4x16x24xbf16, #tpu.memory_space<vmem>>, vector<1x16x24xbf16>
    %229 = vector.shape_cast %228 : vector<1x16x24xbf16> to vector<16x24xbf16>
    %230 = arith.truncf %227 : vector<24x128xf32> to vector<24x128xbf16>
    %cst_144 = arith.constant dense<0.000000e+00> : vector<16x128xf32>
    %231 = tpu.matmul %229, %230, %cst_144 {dimension_numbers = #tpu.dot_dimension_numbers<[1], [0], [0], [1], [0, 0, 1, 1], [], []>} : vector<16x24xbf16>, vector<24x128xbf16>, vector<16x128xf32> -> vector<16x128xf32>
    %232 = arith.addf %212, %231 : vector<16x128xf32>
    %c6_145 = arith.constant 6 : index
    %233 = memref.load %arg10[%c6_145] : memref<12xf32, #tpu.memory_space<smem>>
    %234 = vector.broadcast %233 : f32 to vector<24x136xf32>
    %235 = arith.mulf %234, %4 : vector<24x136xf32>
    %c7_146 = arith.constant 7 : index
    %236 = memref.load %arg10[%c7_146] : memref<12xf32, #tpu.memory_space<smem>>
    %237 = vector.broadcast %236 : f32 to vector<24x136xf32>
    %238 = arith.mulf %237, %7 : vector<24x136xf32>
    %239 = arith.addf %235, %238 : vector<24x136xf32>
    %c8_147 = arith.constant 8 : index
    %240 = memref.load %arg10[%c8_147] : memref<12xf32, #tpu.memory_space<smem>>
    %241 = vector.broadcast %240 : f32 to vector<24x136xf32>
    %242 = arith.mulf %241, %10 : vector<24x136xf32>
    %243 = arith.addf %239, %242 : vector<24x136xf32>
    %244 = arith.truncf %243 : vector<24x136xf32> to vector<24x136xbf16>
    %c2_148 = arith.constant 2 : index
    %c0_149 = arith.constant 0 : index
    %c0_150 = arith.constant 0 : index
    %245 = vector.load %arg14[%c2_148, %c0_149, %c0_150] : memref<4x136x128xbf16, #tpu.memory_space<vmem>>, vector<1x136x128xbf16>
    %246 = vector.shape_cast %245 : vector<1x136x128xbf16> to vector<136x128xbf16>
    %cst_151 = arith.constant dense<0.000000e+00> : vector<24x128xf32>
    %247 = tpu.matmul %244, %246, %cst_151 {dimension_numbers = #tpu.dot_dimension_numbers<[1], [0], [0], [1], [0, 0, 1, 1], [], []>} : vector<24x136xbf16>, vector<136x128xbf16>, vector<24x128xf32> -> vector<24x128xf32>
    %c2_152 = arith.constant 2 : index
    %c0_153 = arith.constant 0 : index
    %c0_154 = arith.constant 0 : index
    %248 = vector.load %arg15[%c2_152, %c0_153, %c0_154] : memref<4x16x24xbf16, #tpu.memory_space<vmem>>, vector<1x16x24xbf16>
    %249 = vector.shape_cast %248 : vector<1x16x24xbf16> to vector<16x24xbf16>
    %250 = arith.truncf %247 : vector<24x128xf32> to vector<24x128xbf16>
    %cst_155 = arith.constant dense<0.000000e+00> : vector<16x128xf32>
    %251 = tpu.matmul %249, %250, %cst_155 {dimension_numbers = #tpu.dot_dimension_numbers<[1], [0], [0], [1], [0, 0, 1, 1], [], []>} : vector<16x24xbf16>, vector<24x128xbf16>, vector<16x128xf32> -> vector<16x128xf32>
    %252 = arith.addf %232, %251 : vector<16x128xf32>
    %c9_156 = arith.constant 9 : index
    %253 = memref.load %arg10[%c9_156] : memref<12xf32, #tpu.memory_space<smem>>
    %254 = vector.broadcast %253 : f32 to vector<24x136xf32>
    %255 = arith.mulf %254, %4 : vector<24x136xf32>
    %c10_157 = arith.constant 10 : index
    %256 = memref.load %arg10[%c10_157] : memref<12xf32, #tpu.memory_space<smem>>
    %257 = vector.broadcast %256 : f32 to vector<24x136xf32>
    %258 = arith.mulf %257, %7 : vector<24x136xf32>
    %259 = arith.addf %255, %258 : vector<24x136xf32>
    %c11_158 = arith.constant 11 : index
    %260 = memref.load %arg10[%c11_158] : memref<12xf32, #tpu.memory_space<smem>>
    %261 = vector.broadcast %260 : f32 to vector<24x136xf32>
    %262 = arith.mulf %261, %10 : vector<24x136xf32>
    %263 = arith.addf %259, %262 : vector<24x136xf32>
    %264 = arith.truncf %263 : vector<24x136xf32> to vector<24x136xbf16>
    %c3_159 = arith.constant 3 : index
    %c0_160 = arith.constant 0 : index
    %c0_161 = arith.constant 0 : index
    %265 = vector.load %arg14[%c3_159, %c0_160, %c0_161] : memref<4x136x128xbf16, #tpu.memory_space<vmem>>, vector<1x136x128xbf16>
    %266 = vector.shape_cast %265 : vector<1x136x128xbf16> to vector<136x128xbf16>
    %cst_162 = arith.constant dense<0.000000e+00> : vector<24x128xf32>
    %267 = tpu.matmul %264, %266, %cst_162 {dimension_numbers = #tpu.dot_dimension_numbers<[1], [0], [0], [1], [0, 0, 1, 1], [], []>} : vector<24x136xbf16>, vector<136x128xbf16>, vector<24x128xf32> -> vector<24x128xf32>
    %c3_163 = arith.constant 3 : index
    %c0_164 = arith.constant 0 : index
    %c0_165 = arith.constant 0 : index
    %268 = vector.load %arg15[%c3_163, %c0_164, %c0_165] : memref<4x16x24xbf16, #tpu.memory_space<vmem>>, vector<1x16x24xbf16>
    %269 = vector.shape_cast %268 : vector<1x16x24xbf16> to vector<16x24xbf16>
    %270 = arith.truncf %267 : vector<24x128xf32> to vector<24x128xbf16>
    %cst_166 = arith.constant dense<0.000000e+00> : vector<16x128xf32>
    %271 = tpu.matmul %269, %270, %cst_166 {dimension_numbers = #tpu.dot_dimension_numbers<[1], [0], [0], [1], [0, 0, 1, 1], [], []>} : vector<16x24xbf16>, vector<24x128xbf16>, vector<16x128xf32> -> vector<16x128xf32>
    %272 = arith.addf %252, %271 : vector<16x128xf32>
    %c0_167 = arith.constant 0 : index
    %c0_168 = arith.constant 0 : index
    %c0_169 = arith.constant 0 : index
    %c0_170 = arith.constant 0 : index
    %273 = vector.load %arg16[%c0_167, %c0_168, %c0_169, %c0_170] : memref<1x8x16x128xf32, #tpu.memory_space<vmem>>, vector<1x8x16x128xf32>
    %274 = vector.shape_cast %273 : vector<1x8x16x128xf32> to vector<8x16x128xf32>
    %cst_171 = arith.constant dense<0xFF800000> : vector<16x128xf32>
    %275 = vector.multi_reduction <maximumf>, %274, %cst_171 [0] : vector<8x16x128xf32> to vector<16x128xf32>
    %276 = vector.shape_cast %275 : vector<16x128xf32> to vector<1x16x128xf32>
    %277 = vector.broadcast %276 : vector<1x16x128xf32> to vector<8x16x128xf32>
    %278 = arith.subf %274, %277 : vector<8x16x128xf32>
    %279 = math.exp %278 : vector<8x16x128xf32>
    %cst_172 = arith.constant dense<0.000000e+00> : vector<16x128xf32>
    %280 = vector.multi_reduction <add>, %279, %cst_172 [0] : vector<8x16x128xf32> to vector<16x128xf32>
    %281 = vector.shape_cast %280 : vector<16x128xf32> to vector<1x16x128xf32>
    %282 = tpu.reciprocal %281 {approx = true} : vector<1x16x128xf32> -> vector<1x16x128xf32>
    %283 = vector.broadcast %282 : vector<1x16x128xf32> to vector<8x16x128xf32>
    %284 = arith.mulf %279, %283 : vector<8x16x128xf32>
    %285 = vector.shape_cast %272 : vector<16x128xf32> to vector<1x16x128xf32>
    %286 = vector.broadcast %285 : vector<1x16x128xf32> to vector<8x16x128xf32>
    %287 = arith.mulf %284, %286 : vector<8x16x128xf32>
    %c0_173 = arith.constant 0 : index
    %288 = memref.load %arg11[%c0_173] : memref<1xf32, #tpu.memory_space<smem>>
    %289 = vector.broadcast %288 : f32 to vector<8x16x128xf32>
    %290 = arith.addf %287, %289 : vector<8x16x128xf32>
    %cst_174 = arith.constant 0.000000e+00 : f32
    %291 = vector.broadcast %cst_174 : f32 to vector<8x16x128xf32>
    %292 = arith.maximumf %290, %291 : vector<8x16x128xf32>
    %293 = vector.shape_cast %292 : vector<8x16x128xf32> to vector<128x128xf32>
    %294 = arith.truncf %293 : vector<128x128xf32> to vector<128x128xbf16>
    %c0_175 = arith.constant 0 : index
    %c0_176 = arith.constant 0 : index
    %295 = vector.load %arg13[%c0_175, %c0_176] : memref<128x128xbf16, #tpu.memory_space<vmem>>, vector<128x128xbf16>
    %cst_177 = arith.constant dense<0.000000e+00> : vector<128x128xf32>
    %296 = tpu.matmul %295, %294, %cst_177 {dimension_numbers = #tpu.dot_dimension_numbers<[1], [0], [0], [1], [0, 0, 1, 1], [], []>} : vector<128x128xbf16>, vector<128x128xbf16>, vector<128x128xf32> -> vector<128x128xf32>
    %c0_178 = arith.constant 0 : index
    %c0_179 = arith.constant 0 : index
    %c0_180 = arith.constant 0 : index
    %c0_181 = arith.constant 0 : index
    %297 = vector.load %arg16[%c0_178, %c0_179, %c0_180, %c0_181] : memref<1x8x16x128xf32, #tpu.memory_space<vmem>>, vector<1x1x16x128xf32>
    %298 = vector.shape_cast %297 : vector<1x1x16x128xf32> to vector<16x128xf32>
    %299 = vector.extract_strided_slice %296 {offsets = [0, 0], sizes = [16, 128], strides = [1, 1]} : vector<128x128xf32> to vector<16x128xf32>
    %c0_182 = arith.constant 0 : index
    %300 = memref.load %arg12[%c0_182] : memref<8xf32, #tpu.memory_space<smem>>
    %301 = vector.broadcast %300 : f32 to vector<16x128xf32>
    %302 = arith.addf %299, %301 : vector<16x128xf32>
    %303 = arith.subf %298, %302 : vector<16x128xf32>
    %c0_183 = arith.constant 0 : index
    %c0_184 = arith.constant 0 : index
    %c0_185 = arith.constant 0 : index
    %c0_186 = arith.constant 0 : index
    %304 = vector.load %arg16[%c0_183, %c0_184, %c0_185, %c0_186] : memref<1x8x16x128xf32, #tpu.memory_space<vmem>>, vector<1x1x16x128xf32>
    %305 = vector.shape_cast %304 : vector<1x1x16x128xf32> to vector<16x128xf32>
    %306 = vector.shape_cast %303 : vector<16x128xf32> to vector<1x1x16x128xf32>
    tpu.vector_store %arg16[%c0_183, %c0_184, %c0_185, %c0_186], %306 {strides = array<i32>} : memref<1x8x16x128xf32, #tpu.memory_space<vmem>>, vector<1x1x16x128xf32>,
    %c0_187 = arith.constant 0 : index
    %c1_188 = arith.constant 1 : index
    %c0_189 = arith.constant 0 : index
    %c0_190 = arith.constant 0 : index
    %307 = vector.load %arg16[%c0_187, %c1_188, %c0_189, %c0_190] : memref<1x8x16x128xf32, #tpu.memory_space<vmem>>, vector<1x1x16x128xf32>
    %308 = vector.shape_cast %307 : vector<1x1x16x128xf32> to vector<16x128xf32>
    %309 = vector.extract_strided_slice %296 {offsets = [16, 0], sizes = [16, 128], strides = [1, 1]} : vector<128x128xf32> to vector<16x128xf32>
    %c1_191 = arith.constant 1 : index
    %310 = memref.load %arg12[%c1_191] : memref<8xf32, #tpu.memory_space<smem>>
    %311 = vector.broadcast %310 : f32 to vector<16x128xf32>
    %312 = arith.addf %309, %311 : vector<16x128xf32>
    %313 = arith.subf %308, %312 : vector<16x128xf32>
    %c0_192 = arith.constant 0 : index
    %c1_193 = arith.constant 1 : index
    %c0_194 = arith.constant 0 : index
    %c0_195 = arith.constant 0 : index
    %314 = vector.load %arg16[%c0_192, %c1_193, %c0_194, %c0_195] : memref<1x8x16x128xf32, #tpu.memory_space<vmem>>, vector<1x1x16x128xf32>
    %315 = vector.shape_cast %314 : vector<1x1x16x128xf32> to vector<16x128xf32>
    %316 = vector.shape_cast %313 : vector<16x128xf32> to vector<1x1x16x128xf32>
    tpu.vector_store %arg16[%c0_192, %c1_193, %c0_194, %c0_195], %316 {strides = array<i32>} : memref<1x8x16x128xf32, #tpu.memory_space<vmem>>, vector<1x1x16x128xf32>,
    %c0_196 = arith.constant 0 : index
    %c2_197 = arith.constant 2 : index
    %c0_198 = arith.constant 0 : index
    %c0_199 = arith.constant 0 : index
    %317 = vector.load %arg16[%c0_196, %c2_197, %c0_198, %c0_199] : memref<1x8x16x128xf32, #tpu.memory_space<vmem>>, vector<1x1x16x128xf32>
    %318 = vector.shape_cast %317 : vector<1x1x16x128xf32> to vector<16x128xf32>
    %319 = vector.extract_strided_slice %296 {offsets = [32, 0], sizes = [16, 128], strides = [1, 1]} : vector<128x128xf32> to vector<16x128xf32>
    %c2_200 = arith.constant 2 : index
    %320 = memref.load %arg12[%c2_200] : memref<8xf32, #tpu.memory_space<smem>>
    %321 = vector.broadcast %320 : f32 to vector<16x128xf32>
    %322 = arith.addf %319, %321 : vector<16x128xf32>
    %323 = arith.subf %318, %322 : vector<16x128xf32>
    %c0_201 = arith.constant 0 : index
    %c2_202 = arith.constant 2 : index
    %c0_203 = arith.constant 0 : index
    %c0_204 = arith.constant 0 : index
    %324 = vector.load %arg16[%c0_201, %c2_202, %c0_203, %c0_204] : memref<1x8x16x128xf32, #tpu.memory_space<vmem>>, vector<1x1x16x128xf32>
    %325 = vector.shape_cast %324 : vector<1x1x16x128xf32> to vector<16x128xf32>
    %326 = vector.shape_cast %323 : vector<16x128xf32> to vector<1x1x16x128xf32>
    tpu.vector_store %arg16[%c0_201, %c2_202, %c0_203, %c0_204], %326 {strides = array<i32>} : memref<1x8x16x128xf32, #tpu.memory_space<vmem>>, vector<1x1x16x128xf32>,
    %c0_205 = arith.constant 0 : index
    %c3_206 = arith.constant 3 : index
    %c0_207 = arith.constant 0 : index
    %c0_208 = arith.constant 0 : index
    %327 = vector.load %arg16[%c0_205, %c3_206, %c0_207, %c0_208] : memref<1x8x16x128xf32, #tpu.memory_space<vmem>>, vector<1x1x16x128xf32>
    %328 = vector.shape_cast %327 : vector<1x1x16x128xf32> to vector<16x128xf32>
    %329 = vector.extract_strided_slice %296 {offsets = [48, 0], sizes = [16, 128], strides = [1, 1]} : vector<128x128xf32> to vector<16x128xf32>
    %c3_209 = arith.constant 3 : index
    %330 = memref.load %arg12[%c3_209] : memref<8xf32, #tpu.memory_space<smem>>
    %331 = vector.broadcast %330 : f32 to vector<16x128xf32>
    %332 = arith.addf %329, %331 : vector<16x128xf32>
    %333 = arith.subf %328, %332 : vector<16x128xf32>
    %c0_210 = arith.constant 0 : index
    %c3_211 = arith.constant 3 : index
    %c0_212 = arith.constant 0 : index
    %c0_213 = arith.constant 0 : index
    %334 = vector.load %arg16[%c0_210, %c3_211, %c0_212, %c0_213] : memref<1x8x16x128xf32, #tpu.memory_space<vmem>>, vector<1x1x16x128xf32>
    %335 = vector.shape_cast %334 : vector<1x1x16x128xf32> to vector<16x128xf32>
    %336 = vector.shape_cast %333 : vector<16x128xf32> to vector<1x1x16x128xf32>
    tpu.vector_store %arg16[%c0_210, %c3_211, %c0_212, %c0_213], %336 {strides = array<i32>} : memref<1x8x16x128xf32, #tpu.memory_space<vmem>>, vector<1x1x16x128xf32>,
    %c0_214 = arith.constant 0 : index
    %c4_215 = arith.constant 4 : index
    %c0_216 = arith.constant 0 : index
    %c0_217 = arith.constant 0 : index
    %337 = vector.load %arg16[%c0_214, %c4_215, %c0_216, %c0_217] : memref<1x8x16x128xf32, #tpu.memory_space<vmem>>, vector<1x1x16x128xf32>
    %338 = vector.shape_cast %337 : vector<1x1x16x128xf32> to vector<16x128xf32>
    %339 = vector.extract_strided_slice %296 {offsets = [64, 0], sizes = [16, 128], strides = [1, 1]} : vector<128x128xf32> to vector<16x128xf32>
    %c4_218 = arith.constant 4 : index
    %340 = memref.load %arg12[%c4_218] : memref<8xf32, #tpu.memory_space<smem>>
    %341 = vector.broadcast %340 : f32 to vector<16x128xf32>
    %342 = arith.addf %339, %341 : vector<16x128xf32>
    %343 = arith.subf %338, %342 : vector<16x128xf32>
    %c0_219 = arith.constant 0 : index
    %c4_220 = arith.constant 4 : index
    %c0_221 = arith.constant 0 : index
    %c0_222 = arith.constant 0 : index
    %344 = vector.load %arg16[%c0_219, %c4_220, %c0_221, %c0_222] : memref<1x8x16x128xf32, #tpu.memory_space<vmem>>, vector<1x1x16x128xf32>
    %345 = vector.shape_cast %344 : vector<1x1x16x128xf32> to vector<16x128xf32>
    %346 = vector.shape_cast %343 : vector<16x128xf32> to vector<1x1x16x128xf32>
    tpu.vector_store %arg16[%c0_219, %c4_220, %c0_221, %c0_222], %346 {strides = array<i32>} : memref<1x8x16x128xf32, #tpu.memory_space<vmem>>, vector<1x1x16x128xf32>,
    %c0_223 = arith.constant 0 : index
    %c5_224 = arith.constant 5 : index
    %c0_225 = arith.constant 0 : index
    %c0_226 = arith.constant 0 : index
    %347 = vector.load %arg16[%c0_223, %c5_224, %c0_225, %c0_226] : memref<1x8x16x128xf32, #tpu.memory_space<vmem>>, vector<1x1x16x128xf32>
    %348 = vector.shape_cast %347 : vector<1x1x16x128xf32> to vector<16x128xf32>
    %349 = vector.extract_strided_slice %296 {offsets = [80, 0], sizes = [16, 128], strides = [1, 1]} : vector<128x128xf32> to vector<16x128xf32>
    %c5_227 = arith.constant 5 : index
    %350 = memref.load %arg12[%c5_227] : memref<8xf32, #tpu.memory_space<smem>>
    %351 = vector.broadcast %350 : f32 to vector<16x128xf32>
    %352 = arith.addf %349, %351 : vector<16x128xf32>
    %353 = arith.subf %348, %352 : vector<16x128xf32>
    %c0_228 = arith.constant 0 : index
    %c5_229 = arith.constant 5 : index
    %c0_230 = arith.constant 0 : index
    %c0_231 = arith.constant 0 : index
    %354 = vector.load %arg16[%c0_228, %c5_229, %c0_230, %c0_231] : memref<1x8x16x128xf32, #tpu.memory_space<vmem>>, vector<1x1x16x128xf32>
    %355 = vector.shape_cast %354 : vector<1x1x16x128xf32> to vector<16x128xf32>
    %356 = vector.shape_cast %353 : vector<16x128xf32> to vector<1x1x16x128xf32>
    tpu.vector_store %arg16[%c0_228, %c5_229, %c0_230, %c0_231], %356 {strides = array<i32>} : memref<1x8x16x128xf32, #tpu.memory_space<vmem>>, vector<1x1x16x128xf32>,
    %c0_232 = arith.constant 0 : index
    %c6_233 = arith.constant 6 : index
    %c0_234 = arith.constant 0 : index
    %c0_235 = arith.constant 0 : index
    %357 = vector.load %arg16[%c0_232, %c6_233, %c0_234, %c0_235] : memref<1x8x16x128xf32, #tpu.memory_space<vmem>>, vector<1x1x16x128xf32>
    %358 = vector.shape_cast %357 : vector<1x1x16x128xf32> to vector<16x128xf32>
    %359 = vector.extract_strided_slice %296 {offsets = [96, 0], sizes = [16, 128], strides = [1, 1]} : vector<128x128xf32> to vector<16x128xf32>
    %c6_236 = arith.constant 6 : index
    %360 = memref.load %arg12[%c6_236] : memref<8xf32, #tpu.memory_space<smem>>
    %361 = vector.broadcast %360 : f32 to vector<16x128xf32>
    %362 = arith.addf %359, %361 : vector<16x128xf32>
    %363 = arith.subf %358, %362 : vector<16x128xf32>
    %c0_237 = arith.constant 0 : index
    %c6_238 = arith.constant 6 : index
    %c0_239 = arith.constant 0 : index
    %c0_240 = arith.constant 0 : index
    %364 = vector.load %arg16[%c0_237, %c6_238, %c0_239, %c0_240] : memref<1x8x16x128xf32, #tpu.memory_space<vmem>>, vector<1x1x16x128xf32>
    %365 = vector.shape_cast %364 : vector<1x1x16x128xf32> to vector<16x128xf32>
    %366 = vector.shape_cast %363 : vector<16x128xf32> to vector<1x1x16x128xf32>
    tpu.vector_store %arg16[%c0_237, %c6_238, %c0_239, %c0_240], %366 {strides = array<i32>} : memref<1x8x16x128xf32, #tpu.memory_space<vmem>>, vector<1x1x16x128xf32>,
    %c0_241 = arith.constant 0 : index
    %c7_242 = arith.constant 7 : index
    %c0_243 = arith.constant 0 : index
    %c0_244 = arith.constant 0 : index
    %367 = vector.load %arg16[%c0_241, %c7_242, %c0_243, %c0_244] : memref<1x8x16x128xf32, #tpu.memory_space<vmem>>, vector<1x1x16x128xf32>
    %368 = vector.shape_cast %367 : vector<1x1x16x128xf32> to vector<16x128xf32>
    %369 = vector.extract_strided_slice %296 {offsets = [112, 0], sizes = [16, 128], strides = [1, 1]} : vector<128x128xf32> to vector<16x128xf32>
    %c7_245 = arith.constant 7 : index
    %370 = memref.load %arg12[%c7_245] : memref<8xf32, #tpu.memory_space<smem>>
    %371 = vector.broadcast %370 : f32 to vector<16x128xf32>
    %372 = arith.addf %369, %371 : vector<16x128xf32>
    %373 = arith.subf %368, %372 : vector<16x128xf32>
    %c0_246 = arith.constant 0 : index
    %c7_247 = arith.constant 7 : index
    %c0_248 = arith.constant 0 : index
    %c0_249 = arith.constant 0 : index
    %374 = vector.load %arg16[%c0_246, %c7_247, %c0_248, %c0_249] : memref<1x8x16x128xf32, #tpu.memory_space<vmem>>, vector<1x1x16x128xf32>
    %375 = vector.shape_cast %374 : vector<1x1x16x128xf32> to vector<16x128xf32>
    %376 = vector.shape_cast %373 : vector<16x128xf32> to vector<1x1x16x128xf32>
    tpu.vector_store %arg16[%c0_246, %c7_247, %c0_248, %c0_249], %376 {strides = array<i32>} : memref<1x8x16x128xf32, #tpu.memory_space<vmem>>, vector<1x1x16x128xf32>,
    return
  }
  func.func @transform_0(%arg0: i32, %arg1: i32) -> (i32, i32, i32, i32) {
    %c0_i32 = arith.constant 0 : i32
    %c0_i32_0 = arith.constant 0 : i32
    %c0_i32_1 = arith.constant 0 : i32
    %c0_i32_2 = arith.constant 0 : i32
    return %arg0, %c0_i32, %c0_i32_0, %c0_i32_1 : i32, i32, i32, i32
  }
  func.func @transform_1(%arg0: i32, %arg1: i32) -> (i32, i32, i32, i32) {
    %c0_i32 = arith.constant 0 : i32
    %c0_i32_0 = arith.constant 0 : i32
    %c0_i32_1 = arith.constant 0 : i32
    return %arg0, %c0_i32, %arg1, %c0_i32_0 : i32, i32, i32, i32
  }
  func.func @transform_2(%arg0: i32, %arg1: i32) -> i32 {
    %c0_i32 = arith.constant 0 : i32
    %c0_i32_0 = arith.constant 0 : i32
    return %c0_i32 : i32
  }
  func.func @transform_3(%arg0: i32, %arg1: i32) -> i32 {
    %c0_i32 = arith.constant 0 : i32
    %c0_i32_0 = arith.constant 0 : i32
    return %c0_i32 : i32
  }
  func.func @transform_4(%arg0: i32, %arg1: i32) -> i32 {
    %c0_i32 = arith.constant 0 : i32
    %c0_i32_0 = arith.constant 0 : i32
    return %c0_i32 : i32
  }
  func.func @transform_5(%arg0: i32, %arg1: i32) -> (i32, i32) {
    %c0_i32 = arith.constant 0 : i32
    %c0_i32_0 = arith.constant 0 : i32
    %c0_i32_1 = arith.constant 0 : i32
    return %c0_i32, %c0_i32_0 : i32, i32
  }
  func.func @transform_6(%arg0: i32, %arg1: i32) -> (i32, i32, i32) {
    %c0_i32 = arith.constant 0 : i32
    %c0_i32_0 = arith.constant 0 : i32
    %c0_i32_1 = arith.constant 0 : i32
    %c0_i32_2 = arith.constant 0 : i32
    return %c0_i32, %c0_i32_0, %c0_i32_1 : i32, i32, i32
  }
  func.func @transform_7(%arg0: i32, %arg1: i32) -> (i32, i32, i32) {
    %c0_i32 = arith.constant 0 : i32
    %c0_i32_0 = arith.constant 0 : i32
    %c0_i32_1 = arith.constant 0 : i32
    %c0_i32_2 = arith.constant 0 : i32
    return %c0_i32, %c0_i32_0, %c0_i32_1 : i32, i32, i32
  }
  func.func @transform_8(%arg0: i32, %arg1: i32) -> i32 {
    %c0_i32 = arith.constant 0 : i32
    %c0_i32_0 = arith.constant 0 : i32
    return %c0_i32 : i32
  }
  func.func @transform_9(%arg0: i32, %arg1: i32) -> i32 {
    %c0_i32 = arith.constant 0 : i32
    %c0_i32_0 = arith.constant 0 : i32
    return %c0_i32 : i32
  }
  func.func @transform_10(%arg0: i32, %arg1: i32) -> i32 {
    %c0_i32 = arith.constant 0 : i32
    %c0_i32_0 = arith.constant 0 : i32
    return %c0_i32 : i32
  }
  func.func @transform_11(%arg0: i32, %arg1: i32) -> (i32, i32) {
    %c0_i32 = arith.constant 0 : i32
    %c0_i32_0 = arith.constant 0 : i32
    %c0_i32_1 = arith.constant 0 : i32
    return %c0_i32, %c0_i32_0 : i32, i32
  }
  func.func @transform_12(%arg0: i32, %arg1: i32) -> (i32, i32, i32) {
    %c0_i32 = arith.constant 0 : i32
    %c0_i32_0 = arith.constant 0 : i32
    %c0_i32_1 = arith.constant 0 : i32
    %c0_i32_2 = arith.constant 0 : i32
    return %c0_i32, %c0_i32_0, %c0_i32_1 : i32, i32, i32
  }
  func.func @transform_13(%arg0: i32, %arg1: i32) -> (i32, i32, i32) {
    %c0_i32 = arith.constant 0 : i32
    %c0_i32_0 = arith.constant 0 : i32
    %c0_i32_1 = arith.constant 0 : i32
    %c0_i32_2 = arith.constant 0 : i32
    return %c0_i32, %c0_i32_0, %c0_i32_1 : i32, i32, i32
  }
  func.func @transform_14(%arg0: i32, %arg1: i32) -> (i32, i32, i32, i32) {
    %c0_i32 = arith.constant 0 : i32
    %c0_i32_0 = arith.constant 0 : i32
    %c0_i32_1 = arith.constant 0 : i32
    return %arg0, %c0_i32, %arg1, %c0_i32_0 : i32, i32, i32, i32
  }
}

</mosaic_0001>

<llo_original>
// kernel: tpu_custom_call.1
$region0: #{tpu_custom_call.1}
  #allocation0 [shape = 'u32[]', space=smem, size = 0x4, offset = 0x4, fixed_abs, tag = 'smem constant byte address 0x4 - core index']
  #allocation1 [shape = 'u32[144,128]{1,0:T(1,128)}', space=vmem, size = 0x12000, scoped, tag = 'internal scratch']
  #allocation2 [shape = 'f32[1]{0:T(128)S(6)}', space=smem, size = 0x200, scoped, tag = 'scoped memory for tpu_custom_call.1']
  #allocation3 [shape = 'f32[1]{0:T(128)S(6)}', space=smem, size = 0x200, scoped, tag = 'scoped memory for tpu_custom_call.1']
  #allocation24 [shape = 's32[]', space=sflag, size = 0x4, offset = 0, fixed_abs, tag = 'sflag constant byte address 0x0 - dummy sync flag']
  #allocation26 [shape = 's32[]', space=sflag, size = 0x4, offset = 0, fixed_abs, tag = 'sflag constant byte address 0x0 - dummy sync flag']
  %s0 = inlined_call_operand.hbm [shape: f32[2,3,40,136], index: 0, kind: input, shape index: {}]
  %s1 = inlined_call_operand.hbm [shape: f32[2,8,32,128], index: 1, kind: input, shape index: {}]
  %s2 = inlined_call_operand.vmem [shape: f32[12], index: 2, kind: input, shape index: {}]
  %s3 = inlined_call_operand.<no memory space> [shape: f32[1], index: 3, kind: input, shape index: {}]
  %s4 = inlined_call_operand.vmem [shape: f32[8], index: 4, kind: input, shape index: {}]
  %s5 = inlined_call_operand.hbm [shape: bf16[128,128], index: 5, kind: input, shape index: {}]
  %s6 = inlined_call_operand.hbm [shape: bf16[4,136,128], index: 6, kind: input, shape index: {}]
  %s7 = inlined_call_operand.hbm [shape: bf16[4,16,24], index: 7, kind: input, shape index: {}]
  %s8 = inlined_call_operand.vmem [shape: f32[12], index: 8, kind: input, shape index: {}]
  %s9 = inlined_call_operand.<no memory space> [shape: f32[1], index: 9, kind: input, shape index: {}]
  %s10 = inlined_call_operand.vmem [shape: f32[8], index: 10, kind: input, shape index: {}]
  %s11 = inlined_call_operand.hbm [shape: bf16[128,128], index: 11, kind: input, shape index: {}]
  %s12 = inlined_call_operand.hbm [shape: bf16[4,136,128], index: 12, kind: input, shape index: {}]
  %s13 = inlined_call_operand.vmem [shape: bf16[4,16,24], index: 13, kind: input, shape index: {}]
  %s14 = inlined_call_operand.hbm [shape: f32[2,8,32,128], index: 14, kind: output, shape index: {}]
  %s15 = sld [smem:[#allocation0]]
  $region133: #{tpu_custom_call.1} parent=0
    _
  %s17 = ssub.s32 1, %s15
  %s18 = scalar_select 0, %s17, %s15
  %19 = sst [smem:[#allocation2]] %s3
  %20 = sst [smem:[#allocation3]] %s9
  $region1: #{tpu_custom_call.1} parent=0
    #allocation4 [shape = 'u8[245760]{0}', space=vmem, size = 0x3c000, scoped, tag = 'input window, operand 0']
    #allocation5 [shape = 's32[2]{0}', space=sflag, size = 0x8, scoped, tag = 'scoped memory for tpu_custom_call.1']
    #allocation6 [shape = 's32[2]{0}', space=sflag, size = 0x8, scoped, tag = 'scoped memory for tpu_custom_call.1']
    #allocation7 [shape = 's32[2]{0}', space=sflag, size = 0x8, scoped, tag = 'scoped memory for tpu_custom_call.1']
    #allocation8 [shape = 'u8[131072]{0}', space=vmem, size = 0x20000, scoped, tag = 'input window, operand 1']
    #allocation9 [shape = 's32[2]{0}', space=sflag, size = 0x8, scoped, tag = 'scoped memory for tpu_custom_call.1']
    #allocation10 [shape = 'u8[512]{0}', space=smem, size = 0x200, scoped, tag = 'input window, operand 2, single buffered']
    #allocation11 [shape = 'u8[512]{0}', space=smem, size = 0x200, scoped, tag = 'input window, operand 4, single buffered']
    #allocation12 [shape = 's32[1]{0}', space=sflag, size = 0x4, scoped, tag = 'scoped memory for tpu_custom_call.1']
    #allocation13 [shape = 'u8[32768]{0}', space=vmem, size = 0x8000, scoped, tag = 'input window, operand 5, single buffered']
    #allocation14 [shape = 'u8[139264]{0}', space=vmem, size = 0x22000, scoped, tag = 'input window, operand 6, single buffered']
    #allocation15 [shape = 's32[1]{0}', space=sflag, size = 0x4, scoped, tag = 'scoped memory for tpu_custom_call.1']
    #allocation16 [shape = 'u8[16384]{0}', space=vmem, size = 0x4000, scoped, tag = 'input window, operand 7, single buffered']
    #allocation17 [shape = 'u8[512]{0}', space=smem, size = 0x200, scoped, tag = 'input window, operand 8, single buffered']
    #allocation18 [shape = 'u8[512]{0}', space=smem, size = 0x200, scoped, tag = 'input window, operand 10, single buffered']
    #allocation19 [shape = 's32[1]{0}', space=sflag, size = 0x4, scoped, tag = 'scoped memory for tpu_custom_call.1']
    #allocation20 [shape = 'u8[32768]{0}', space=vmem, size = 0x8000, scoped, tag = 'input window, operand 11, single buffered']
    #allocation21 [shape = 's32[1]{0}', space=sflag, size = 0x4, scoped, tag = 'scoped memory for tpu_custom_call.1']
    #allocation22 [shape = 'u8[139264]{0}', space=vmem, size = 0x22000, scoped, tag = 'input window, operand 12, single buffered']
    #allocation23 [shape = 'u8[131072]{0}', space=vmem, size = 0x20000, scoped, tag = 'output window, operand 0']
    %21 = vsyncpa [#allocation5], 0
    %s22 = scalar_lea.sflag [#allocation5], 1
    %23 = vsyncpa %s22, 0
    %24 = vsyncpa [#allocation9], 0
    %s25 = scalar_lea.sflag [#allocation9], 1
    %26 = vsyncpa %s25, 0
    %27 = vsyncpa [#allocation7], 0
    %28 = vsyncpa [#allocation12], 0
    %29 = vsyncpa [#allocation15], 0
    %30 = vsyncpa [#allocation19], 0
    %31 = vsyncpa [#allocation21], 0
    %32 = vsyncpa [#allocation6], 0
    %s33 = scalar_lea.sflag [#allocation6], 1
    %34 = vsyncpa %s33, 0
    loop: start=0, step=1, limit=6
    $region2: #{tpu_custom_call.1} parent=1 // loop_pre_header
      _
    $region3: #{tpu_custom_call.1} parent=1 // loop_header
      %s36 = sphi 0, %s40
      %p37 = scmp.ge.s32.totalorder %s36, 6
      %s43 = sphi 0, %s55
      %s44 = sphi 0, %s51
      %s45 = sphi 0, %s43
      %s46 = sphi 0, %s44
      %s47 = sphi 0, %s45
      %s48 = sphi 0, %s46
      %s58 = sphi 0, %s60
      %s61 = sphi 0, %s58
      %s62 = sphi 0, %s61
      %s78 = sphi 0, %s62
      %s86 = sphi 0, %s88
      %s89 = sphi 0, %s86
      %s90 = sphi 0, %s89
      %s106 = sphi 0, %s90
      %s110 = sphi 0, %s110
      %s112 = sphi 0, %s110
      %s113 = sphi 0, %s112
      %s127 = sphi 0, %s113
      %s131 = sphi 0, %s131
      %s133 = sphi 0, %s131
      %s134 = sphi 0, %s133
      %s148 = sphi 0, %s134
      %s152 = sphi 0, %s152
      %s154 = sphi 0, %s152
      %s155 = sphi 0, %s154
      %s169 = sphi 0, %s155
      %s173 = sphi 0, %s173
      %s175 = sphi 0, %s173
      %s176 = sphi 0, %s175
      %s190 = sphi 0, %s176
      %s194 = sphi 0, %s194
      %s196 = sphi 0, %s194
      %s197 = sphi 0, %s196
      %s211 = sphi 0, %s197
      %s215 = sphi 0, %s215
      %s217 = sphi 0, %s215
      %s218 = sphi 0, %s217
      %s232 = sphi 0, %s218
      %s236 = sphi 0, %s236
      %s238 = sphi 0, %s236
      %s239 = sphi 0, %s238
      %s253 = sphi 0, %s239
      %s257 = sphi 0, %s257
      %s259 = sphi 0, %s257
      %s260 = sphi 0, %s259
      %s274 = sphi 0, %s260
      %s278 = sphi 0, %s278
      %s280 = sphi 0, %s278
      %s281 = sphi 0, %s280
      %s295 = sphi 0, %s281
      %s299 = sphi 0, %s299
      %s301 = sphi 0, %s299
      %s302 = sphi 0, %s301
      %s316 = sphi 0, %s302
      %s320 = sphi 0, %s320
      %s322 = sphi 0, %s320
      %s323 = sphi 0, %s322
      %s337 = sphi 0, %s323
      %s341 = sphi 0, %s341
      %s343 = sphi 0, %s341
      %s344 = sphi 0, %s343
      %s358 = sphi 0, %s344
      %s366 = sphi 0, %s368
      %s369 = sphi 0, %s366
      %s370 = sphi 0, %s369
      %s386 = sphi 0, %s370
    $region4: #{tpu_custom_call.1} parent=1 // loop_header_branch
      %39 = sbr.rel (%p37) target = $region8
    $region5: #{tpu_custom_call.1} parent=1 // loop_body
      %s41 = ssub.s32 %s36, 1
      %s42 = ssub.s32 %s36, 2
      %s49 = sadd.s32 1, %s44
      %p50 = scmp.ge.s32.totalorder %s49, 2
      %s51 = scalar_select %p50, 0, %s49
      %s52 = sadd.s32 1, %s43
      %s53 = scalar_select %p50, %s52, %s43
      %p54 = scmp.ge.s32.totalorder %s53, 2
      %s55 = scalar_select %p54, 0, %s53
      %s56 = ssub.s32 %s43, %s55
      %p57 = scmp.eq.s32.totalorder %s56, 0
      %s59 = sadd.s32 %s58, 1
      %s60 = scalar_select %p57, %s58, %s59
      %p63 = pneg %p57
      %p64 = scmp.eq.s32.totalorder %s36, 3
      %p65 = por %p63, %p64
      %p66 = scmp.ne.s32.totalorder %s58, %s61
      %p67 = scmp.eq.s32.totalorder %s36, 0
      %p68 = por %p66, %p67
      %p69 = scmp.ne.s32.totalorder %s58, %s61
      %p70 = scmp.eq.s32.totalorder %s41, 3
      %p71 = por %p69, %p70
      %p72 = scmp.ne.s32.totalorder %s61, %s62
      %p73 = scmp.eq.s32.totalorder %s41, 0
      %p74 = por %p72, %p73
      %p75 = scmp.ne.s32.totalorder %s61, %s62
      %p76 = scmp.eq.s32.totalorder %s42, 3
      %p77 = por %p75, %p76
      %p79 = scmp.ne.s32.totalorder %s62, %s78
      %p80 = scmp.eq.s32.totalorder %s42, 0
      %p81 = por %p79, %p80
      %s82 = ssub.s32 %s43, %s55
      %s83 = ssub.s32 %s44, %s51
      %s84 = sor.u32 %s82, %s83
      %p85 = scmp.eq.s32.totalorder %s84, 0
      %s87 = sadd.s32 %s86, 1
      %s88 = scalar_select %p85, %s86, %s87
      %p91 = pneg %p85
      %p92 = scmp.eq.s32.totalorder %s36, 3
      %p93 = por %p91, %p92
      %p94 = scmp.ne.s32.totalorder %s86, %s89
      %p95 = scmp.eq.s32.totalorder %s36, 0
      %p96 = por %p94, %p95
      %p97 = scmp.ne.s32.totalorder %s86, %s89
      %p98 = scmp.eq.s32.totalorder %s41, 3
      %p99 = por %p97, %p98
      %p100 = scmp.ne.s32.totalorder %s89, %s90
      %p101 = scmp.eq.s32.totalorder %s41, 0
      %p102 = por %p100, %p101
      %p103 = scmp.ne.s32.totalorder %s89, %s90
      %p104 = scmp.eq.s32.totalorder %s42, 3
      %p105 = por %p103, %p104
      %p107 = scmp.ne.s32.totalorder %s90, %s106
      %p108 = scmp.eq.s32.totalorder %s42, 0
      %p109 = por %p107, %p108
      %s111 = sadd.s32 %s110, 1
      %p114 = scmp.eq.s32.totalorder %s36, 3
      %p115 = scmp.ne.s32.totalorder %s110, %s112
      %p116 = scmp.eq.s32.totalorder %s36, 0
      %p117 = por %p115, %p116
      %p118 = scmp.ne.s32.totalorder %s110, %s112
      %p119 = scmp.eq.s32.totalorder %s41, 3
      %p120 = por %p118, %p119
      %p121 = scmp.ne.s32.totalorder %s112, %s113
      %p122 = scmp.eq.s32.totalorder %s41, 0
      %p123 = por %p121, %p122
      %p124 = scmp.ne.s32.totalorder %s112, %s113
      %p125 = scmp.eq.s32.totalorder %s42, 3
      %p126 = por %p124, %p125
      %p128 = scmp.ne.s32.totalorder %s113, %s127
      %p129 = scmp.eq.s32.totalorder %s42, 0
      %p130 = por %p128, %p129
      %s132 = sadd.s32 %s131, 1
      %p135 = scmp.eq.s32.totalorder %s36, 3
      %p136 = scmp.ne.s32.totalorder %s131, %s133
      %p137 = scmp.eq.s32.totalorder %s36, 0
      %p138 = por %p136, %p137
      %p139 = scmp.ne.s32.totalorder %s131, %s133
      %p140 = scmp.eq.s32.totalorder %s41, 3
      %p141 = por %p139, %p140
      %p142 = scmp.ne.s32.totalorder %s133, %s134
      %p143 = scmp.eq.s32.totalorder %s41, 0
      %p144 = por %p142, %p143
      %p145 = scmp.ne.s32.totalorder %s133, %s134
      %p146 = scmp.eq.s32.totalorder %s42, 3
      %p147 = por %p145, %p146
      %p149 = scmp.ne.s32.totalorder %s134, %s148
      %p150 = scmp.eq.s32.totalorder %s42, 0
      %p151 = por %p149, %p150
      %s153 = sadd.s32 %s152, 1
      %p156 = scmp.eq.s32.totalorder %s36, 3
      %p157 = scmp.ne.s32.totalorder %s152, %s154
      %p158 = scmp.eq.s32.totalorder %s36, 0
      %p159 = por %p157, %p158
      %p160 = scmp.ne.s32.totalorder %s152, %s154
      %p161 = scmp.eq.s32.totalorder %s41, 3
      %p162 = por %p160, %p161
      %p163 = scmp.ne.s32.totalorder %s154, %s155
      %p164 = scmp.eq.s32.totalorder %s41, 0
      %p165 = por %p163, %p164
      %p166 = scmp.ne.s32.totalorder %s154, %s155
      %p167 = scmp.eq.s32.totalorder %s42, 3
      %p168 = por %p166, %p167
      %p170 = scmp.ne.s32.totalorder %s155, %s169
      %p171 = scmp.eq.s32.totalorder %s42, 0
      %p172 = por %p170, %p171
      %s174 = sadd.s32 %s173, 1
      %p177 = scmp.eq.s32.totalorder %s36, 3
      %p178 = scmp.ne.s32.totalorder %s173, %s175
      %p179 = scmp.eq.s32.totalorder %s36, 0
      %p180 = por %p178, %p179
      %p181 = scmp.ne.s32.totalorder %s173, %s175
      %p182 = scmp.eq.s32.totalorder %s41, 3
      %p183 = por %p181, %p182
      %p184 = scmp.ne.s32.totalorder %s175, %s176
      %p185 = scmp.eq.s32.totalorder %s41, 0
      %p186 = por %p184, %p185
      %p187 = scmp.ne.s32.totalorder %s175, %s176
      %p188 = scmp.eq.s32.totalorder %s42, 3
      %p189 = por %p187, %p188
      %p191 = scmp.ne.s32.totalorder %s176, %s190
      %p192 = scmp.eq.s32.totalorder %s42, 0
      %p193 = por %p191, %p192
      %s195 = sadd.s32 %s194, 1
      %p198 = scmp.eq.s32.totalorder %s36, 3
      %p199 = scmp.ne.s32.totalorder %s194, %s196
      %p200 = scmp.eq.s32.totalorder %s36, 0
      %p201 = por %p199, %p200
      %p202 = scmp.ne.s32.totalorder %s194, %s196
      %p203 = scmp.eq.s32.totalorder %s41, 3
      %p204 = por %p202, %p203
      %p205 = scmp.ne.s32.totalorder %s196, %s197
      %p206 = scmp.eq.s32.totalorder %s41, 0
      %p207 = por %p205, %p206
      %p208 = scmp.ne.s32.totalorder %s196, %s197
      %p209 = scmp.eq.s32.totalorder %s42, 3
      %p210 = por %p208, %p209
      %p212 = scmp.ne.s32.totalorder %s197, %s211
      %p213 = scmp.eq.s32.totalorder %s42, 0
      %p214 = por %p212, %p213
      %s216 = sadd.s32 %s215, 1
      %p219 = scmp.eq.s32.totalorder %s36, 3
      %p220 = scmp.ne.s32.totalorder %s215, %s217
      %p221 = scmp.eq.s32.totalorder %s36, 0
      %p222 = por %p220, %p221
      %p223 = scmp.ne.s32.totalorder %s215, %s217
      %p224 = scmp.eq.s32.totalorder %s41, 3
      %p225 = por %p223, %p224
      %p226 = scmp.ne.s32.totalorder %s217, %s218
      %p227 = scmp.eq.s32.totalorder %s41, 0
      %p228 = por %p226, %p227
      %p229 = scmp.ne.s32.totalorder %s217, %s218
      %p230 = scmp.eq.s32.totalorder %s42, 3
      %p231 = por %p229, %p230
      %p233 = scmp.ne.s32.totalorder %s218, %s232
      %p234 = scmp.eq.s32.totalorder %s42, 0
      %p235 = por %p233, %p234
      %s237 = sadd.s32 %s236, 1
      %p240 = scmp.eq.s32.totalorder %s36, 3
      %p241 = scmp.ne.s32.totalorder %s236, %s238
      %p242 = scmp.eq.s32.totalorder %s36, 0
      %p243 = por %p241, %p242
      %p244 = scmp.ne.s32.totalorder %s236, %s238
      %p245 = scmp.eq.s32.totalorder %s41, 3
      %p246 = por %p244, %p245
      %p247 = scmp.ne.s32.totalorder %s238, %s239
      %p248 = scmp.eq.s32.totalorder %s41, 0
      %p249 = por %p247, %p248
      %p250 = scmp.ne.s32.totalorder %s238, %s239
      %p251 = scmp.eq.s32.totalorder %s42, 3
      %p252 = por %p250, %p251
      %p254 = scmp.ne.s32.totalorder %s239, %s253
      %p255 = scmp.eq.s32.totalorder %s42, 0
      %p256 = por %p254, %p255
      %s258 = sadd.s32 %s257, 1
      %p261 = scmp.eq.s32.totalorder %s36, 3
      %p262 = scmp.ne.s32.totalorder %s257, %s259
      %p263 = scmp.eq.s32.totalorder %s36, 0
      %p264 = por %p262, %p263
      %p265 = scmp.ne.s32.totalorder %s257, %s259
      %p266 = scmp.eq.s32.totalorder %s41, 3
      %p267 = por %p265, %p266
      %p268 = scmp.ne.s32.totalorder %s259, %s260
      %p269 = scmp.eq.s32.totalorder %s41, 0
      %p270 = por %p268, %p269
      %p271 = scmp.ne.s32.totalorder %s259, %s260
      %p272 = scmp.eq.s32.totalorder %s42, 3
      %p273 = por %p271, %p272
      %p275 = scmp.ne.s32.totalorder %s260, %s274
      %p276 = scmp.eq.s32.totalorder %s42, 0
      %p277 = por %p275, %p276
      %s279 = sadd.s32 %s278, 1
      %p282 = scmp.eq.s32.totalorder %s36, 3
      %p283 = scmp.ne.s32.totalorder %s278, %s280
      %p284 = scmp.eq.s32.totalorder %s36, 0
      %p285 = por %p283, %p284
      %p286 = scmp.ne.s32.totalorder %s278, %s280
      %p287 = scmp.eq.s32.totalorder %s41, 3
      %p288 = por %p286, %p287
      %p289 = scmp.ne.s32.totalorder %s280, %s281
      %p290 = scmp.eq.s32.totalorder %s41, 0
      %p291 = por %p289, %p290
      %p292 = scmp.ne.s32.totalorder %s280, %s281
      %p293 = scmp.eq.s32.totalorder %s42, 3
      %p294 = por %p292, %p293
      %p296 = scmp.ne.s32.totalorder %s281, %s295
      %p297 = scmp.eq.s32.totalorder %s42, 0
      %p298 = por %p296, %p297
      %s300 = sadd.s32 %s299, 1
      %p303 = scmp.eq.s32.totalorder %s36, 3
      %p304 = scmp.ne.s32.totalorder %s299, %s301
      %p305 = scmp.eq.s32.totalorder %s36, 0
      %p306 = por %p304, %p305
      %p307 = scmp.ne.s32.totalorder %s299, %s301
      %p308 = scmp.eq.s32.totalorder %s41, 3
      %p309 = por %p307, %p308
      %p310 = scmp.ne.s32.totalorder %s301, %s302
      %p311 = scmp.eq.s32.totalorder %s41, 0
      %p312 = por %p310, %p311
      %p313 = scmp.ne.s32.totalorder %s301, %s302
      %p314 = scmp.eq.s32.totalorder %s42, 3
      %p315 = por %p313, %p314
      %p317 = scmp.ne.s32.totalorder %s302, %s316
      %p318 = scmp.eq.s32.totalorder %s42, 0
      %p319 = por %p317, %p318
      %s321 = sadd.s32 %s320, 1
      %p324 = scmp.eq.s32.totalorder %s36, 3
      %p325 = scmp.ne.s32.totalorder %s320, %s322
      %p326 = scmp.eq.s32.totalorder %s36, 0
      %p327 = por %p325, %p326
      %p328 = scmp.ne.s32.totalorder %s320, %s322
      %p329 = scmp.eq.s32.totalorder %s41, 3
      %p330 = por %p328, %p329
      %p331 = scmp.ne.s32.totalorder %s322, %s323
      %p332 = scmp.eq.s32.totalorder %s41, 0
      %p333 = por %p331, %p332
      %p334 = scmp.ne.s32.totalorder %s322, %s323
      %p335 = scmp.eq.s32.totalorder %s42, 3
      %p336 = por %p334, %p335
      %p338 = scmp.ne.s32.totalorder %s323, %s337
      %p339 = scmp.eq.s32.totalorder %s42, 0
      %p340 = por %p338, %p339
      %s342 = sadd.s32 %s341, 1
      %p345 = scmp.eq.s32.totalorder %s36, 3
      %p346 = scmp.ne.s32.totalorder %s341, %s343
      %p347 = scmp.eq.s32.totalorder %s36, 0
      %p348 = por %p346, %p347
      %p349 = scmp.ne.s32.totalorder %s341, %s343
      %p350 = scmp.eq.s32.totalorder %s41, 3
      %p351 = por %p349, %p350
      %p352 = scmp.ne.s32.totalorder %s343, %s344
      %p353 = scmp.eq.s32.totalorder %s41, 0
      %p354 = por %p352, %p353
      %p355 = scmp.ne.s32.totalorder %s343, %s344
      %p356 = scmp.eq.s32.totalorder %s42, 3
      %p357 = por %p355, %p356
      %p359 = scmp.ne.s32.totalorder %s344, %s358
      %p360 = scmp.eq.s32.totalorder %s42, 0
      %p361 = por %p359, %p360
      %s362 = ssub.s32 %s43, %s55
      %s363 = ssub.s32 %s44, %s51
      %s364 = sor.u32 %s362, %s363
      %p365 = scmp.eq.s32.totalorder %s364, 0
      %s367 = sadd.s32 %s366, 1
      %s368 = scalar_select %p365, %s366, %s367
      %p371 = pneg %p365
      %p372 = scmp.eq.s32.totalorder %s36, 3
      %p373 = por %p371, %p372
      %p374 = scmp.ne.s32.totalorder %s366, %s369
      %p375 = scmp.eq.s32.totalorder %s36, 0
      %p376 = por %p374, %p375
      %p377 = scmp.ne.s32.totalorder %s366, %s369
      %p378 = scmp.eq.s32.totalorder %s41, 3
      %p379 = por %p377, %p378
      %p380 = scmp.ne.s32.totalorder %s369, %s370
      %p381 = scmp.eq.s32.totalorder %s41, 0
      %p382 = por %p380, %p381
      %p383 = scmp.ne.s32.totalorder %s369, %s370
      %p384 = scmp.eq.s32.totalorder %s42, 3
      %p385 = por %p383, %p384
      %p387 = scmp.ne.s32.totalorder %s370, %s386
      %p388 = scmp.eq.s32.totalorder %s42, 0
      %p389 = por %p387, %p388
      %p390 = scmp.le.s32.totalorder 1, %s36
      %p391 = scmp.lt.s32.totalorder %s36, 5
      %p392 = pnand %p390, %p391
      %p393 = pneg %p392
      // Predicated region
      $region9: #{tpu_custom_call.1} parent=5 // pred_check
        _
      $region10: #{tpu_custom_call.1} parent=5 // pred_check_branch
        %395 = sbr.rel (%p392) target = $region12
      $region11: #{tpu_custom_call.1} parent=5 // pred_region
        %s396 = ssub.s32 %s36, 1
        // Predicated region
        $region13: #{tpu_custom_call.1} parent=11 // pred_check
          %p397 = pneg %p123
        $region14: #{tpu_custom_call.1} parent=11 // pred_check_branch
          %399 = sbr.rel (%p397) target = $region16
        $region15: #{tpu_custom_call.1} parent=11 // pred_region
          %s401 = ssub.s32 16, 16
          %402 = vsyncadd [#allocation7], %s401
          %s404 = sshll.u32 %s2, 4
          %s405 = int_to_ptr.vmem [resolvable:$true] %s404
          %407 = dma.vmem_to_smem %s405, 16, [#allocation10], [#allocation7]
        $region16: #{tpu_custom_call.1} parent=11 // pred_fallthru
          _
        // Predicated region
        $region17: #{tpu_custom_call.1} parent=11 // pred_check
          %p408 = pneg %p144
        $region18: #{tpu_custom_call.1} parent=11 // pred_check_branch
          %410 = sbr.rel (%p408) target = $region20
        $region19: #{tpu_custom_call.1} parent=11 // pred_region
          _
        $region20: #{tpu_custom_call.1} parent=11 // pred_fallthru
          _
        // Predicated region
        $region21: #{tpu_custom_call.1} parent=11 // pred_check
          %p411 = pneg %p165
        $region22: #{tpu_custom_call.1} parent=11 // pred_check_branch
          %413 = sbr.rel (%p411) target = $region24
        $region23: #{tpu_custom_call.1} parent=11 // pred_region
          %s415 = ssub.s32 16, 16
          %416 = vsyncadd [#allocation12], %s415
          %s418 = sshll.u32 %s4, 4
          %s419 = int_to_ptr.vmem [resolvable:$true] %s418
          %421 = dma.vmem_to_smem %s419, 16, [#allocation11], [#allocation12]
        $region24: #{tpu_custom_call.1} parent=11 // pred_fallthru
          _
        // Predicated region
        $region25: #{tpu_custom_call.1} parent=11 // pred_check
          %p422 = pneg %p186
        $region26: #{tpu_custom_call.1} parent=11 // pred_check_branch
          %424 = sbr.rel (%p422) target = $region28
        $region27: #{tpu_custom_call.1} parent=11 // pred_region
          %s426 = ssub.s32 1024, 1024
          %427 = vsyncadd [#allocation9], %s426
          %s428 = sshll.u32 [#allocation13], 4
          %s429 = int_to_ptr.vmem [resolvable:$true] %s428
          %434 = dma.hbm_to_vmem [thread:$0]  %s5, 1024, %s429, [#allocation9], 64, 64, 4
        $region28: #{tpu_custom_call.1} parent=11 // pred_fallthru
          _
        // Predicated region
        $region29: #{tpu_custom_call.1} parent=11 // pred_check
          %p435 = pneg %p207
        $region30: #{tpu_custom_call.1} parent=11 // pred_check_branch
          %437 = sbr.rel (%p435) target = $region32
        $region31: #{tpu_custom_call.1} parent=11 // pred_region
          %s439 = ssub.s32 4352, 4352
          %440 = vsyncadd [#allocation15], %s439
          %s441 = sshll.u32 [#allocation14], 4
          %s442 = int_to_ptr.vmem [resolvable:$true] %s441
          %447 = dma.hbm_to_vmem [thread:$0]  %s6, 4352, %s442, [#allocation15], 64, 64, 4
        $region32: #{tpu_custom_call.1} parent=11 // pred_fallthru
          _
        // Predicated region
        $region33: #{tpu_custom_call.1} parent=11 // pred_check
          %p448 = pneg %p228
        $region34: #{tpu_custom_call.1} parent=11 // pred_check_branch
          %450 = sbr.rel (%p448) target = $region36
        $region35: #{tpu_custom_call.1} parent=11 // pred_region
          %s452 = ssub.s32 512, 512
          %453 = vsyncadd [#allocation15], %s452
          %s454 = sshll.u32 [#allocation16], 4
          %s455 = int_to_ptr.vmem [resolvable:$true] %s454
          %460 = dma.hbm_to_vmem [thread:$0]  %s7, 512, %s455, [#allocation15], 64, 64, 4
        $region36: #{tpu_custom_call.1} parent=11 // pred_fallthru
          _
        // Predicated region
        $region37: #{tpu_custom_call.1} parent=11 // pred_check
          %p461 = pneg %p249
        $region38: #{tpu_custom_call.1} parent=11 // pred_check_branch
          %463 = sbr.rel (%p461) target = $region40
        $region39: #{tpu_custom_call.1} parent=11 // pred_region
          %s465 = ssub.s32 16, 16
          %466 = vsyncadd [#allocation12], %s465
          %s468 = sshll.u32 %s8, 4
          %s469 = int_to_ptr.vmem [resolvable:$true] %s468
          %471 = dma.vmem_to_smem %s469, 16, [#allocation17], [#allocation12]
        $region40: #{tpu_custom_call.1} parent=11 // pred_fallthru
          _
        // Predicated region
        $region41: #{tpu_custom_call.1} parent=11 // pred_check
          %p472 = pneg %p270
        $region42: #{tpu_custom_call.1} parent=11 // pred_check_branch
          %474 = sbr.rel (%p472) target = $region44
        $region43: #{tpu_custom_call.1} parent=11 // pred_region
          _
        $region44: #{tpu_custom_call.1} parent=11 // pred_fallthru
          _
        // Predicated region
        $region45: #{tpu_custom_call.1} parent=11 // pred_check
          %p475 = pneg %p291
        $region46: #{tpu_custom_call.1} parent=11 // pred_check_branch
          %477 = sbr.rel (%p475) target = $region48
        $region47: #{tpu_custom_call.1} parent=11 // pred_region
          %s479 = ssub.s32 16, 16
          %480 = vsyncadd [#allocation19], %s479
          %s482 = sshll.u32 %s10, 4
          %s483 = int_to_ptr.vmem [resolvable:$true] %s482
          %485 = dma.vmem_to_smem %s483, 16, [#allocation18], [#allocation19]
        $region48: #{tpu_custom_call.1} parent=11 // pred_fallthru
          _
        // Predicated region
        $region49: #{tpu_custom_call.1} parent=11 // pred_check
          %p486 = pneg %p312
        $region50: #{tpu_custom_call.1} parent=11 // pred_check_branch
          %488 = sbr.rel (%p486) target = $region52
        $region51: #{tpu_custom_call.1} parent=11 // pred_region
          %s490 = ssub.s32 1024, 1024
          %491 = vsyncadd [#allocation21], %s490
          %s492 = sshll.u32 [#allocation20], 4
          %s493 = int_to_ptr.vmem [resolvable:$true] %s492
          %498 = dma.hbm_to_vmem [thread:$0]  %s11, 1024, %s493, [#allocation21], 64, 64, 4
        $region52: #{tpu_custom_call.1} parent=11 // pred_fallthru
          _
        // Predicated region
        $region53: #{tpu_custom_call.1} parent=11 // pred_check
          %p499 = pneg %p333
        $region54: #{tpu_custom_call.1} parent=11 // pred_check_branch
          %501 = sbr.rel (%p499) target = $region56
        $region55: #{tpu_custom_call.1} parent=11 // pred_region
          %s503 = ssub.s32 4352, 4352
          %504 = vsyncadd [#allocation21], %s503
          %s505 = sshll.u32 [#allocation22], 4
          %s506 = int_to_ptr.vmem [resolvable:$true] %s505
          %511 = dma.hbm_to_vmem [thread:$0]  %s12, 4352, %s506, [#allocation21], 64, 64, 4
        $region56: #{tpu_custom_call.1} parent=11 // pred_fallthru
          _
        // Predicated region
        $region57: #{tpu_custom_call.1} parent=11 // pred_check
          %p512 = pneg %p354
        $region58: #{tpu_custom_call.1} parent=11 // pred_check_branch
          %514 = sbr.rel (%p512) target = $region60
        $region59: #{tpu_custom_call.1} parent=11 // pred_region
          _
        $region60: #{tpu_custom_call.1} parent=11 // pred_fallthru
          _
      $region12: #{tpu_custom_call.1} parent=5 // pred_fallthru
        _
      %p515 = scmp.lt.s32.totalorder %s36, 4
      // Predicated region
      $region61: #{tpu_custom_call.1} parent=5 // pred_check
        %p516 = pneg %p515
      $region62: #{tpu_custom_call.1} parent=5 // pred_check_branch
        %518 = sbr.rel (%p516) target = $region64
      $region63: #{tpu_custom_call.1} parent=5 // pred_region
        // Predicated region
        $region65: #{tpu_custom_call.1} parent=63 // pred_check
          %p519 = pneg %p68
        $region66: #{tpu_custom_call.1} parent=63 // pred_check_branch
          %521 = sbr.rel (%p519) target = $region68
        $region67: #{tpu_custom_call.1} parent=63 // pred_region
          %s522 = sand.u32 %s58, 1
          %s523 = scalar_lea.sflag [#allocation5], %s522
          %s524 = sand.u32 %s58, 1
          %s525 = smul.addr %s524, 240
          %s526 = scalar_lea.vmem [#allocation4], %s525
          %s528 = ssub.s32 3840, 3840
          %529 = vsyncadd %s523, %s528
          %s530 = smul.addr %s43, 30
          %s531 = smul.addr %s530, 128
          %s532 = scalar_lea.hbm %s0, %s531
          %s533 = sshll.u32 %s526, 4
          %s534 = int_to_ptr.vmem [resolvable:$true] %s533
          %539 = dma.hbm_to_vmem [thread:$0]  %s532, 3840, %s534, %s523, 256, 256, 16
        $region68: #{tpu_custom_call.1} parent=63 // pred_fallthru
          _
        // Predicated region
        $region69: #{tpu_custom_call.1} parent=63 // pred_check
          %p540 = pneg %p96
        $region70: #{tpu_custom_call.1} parent=63 // pred_check_branch
          %542 = sbr.rel (%p540) target = $region72
        $region71: #{tpu_custom_call.1} parent=63 // pred_region
          #allocation25 [shape = 'u32[6]{0}', space=smem, size = 0x18, scoped, tag = 'DMA stride descriptor']
          %s543 = sand.u32 %s36, 1
          %s544 = scalar_lea.sflag [#allocation9], %s543
          %s545 = sand.u32 %s86, 1
          %s546 = smul.addr %s545, 128
          %s547 = scalar_lea.vmem [#allocation8], %s546
          %s548 = smul.u32 2, %s44
          %s550 = ssub.s32 2048, 2048
          %551 = vsyncadd %s544, %s550
          %s552 = smul.addr %s43, 32
          %s553 = sadd.s32 %s548, %s552
          %s554 = smul.addr %s553, 128
          %s555 = scalar_lea.hbm %s1, %s554
          %s557 = sshll.u32 1, 14
          %s558 = sxor.u32 4294967295, %s557
          %s560 = sld [smem:[#allocation0]]
          %s561 = sadd.s32 2, %s560
          %s563 = sshll.u32 7, 26
          %s564 = sxor.u32 4294967295, %s563
          %s565 = sand.u32 0, %s564
          %s566 = sshll.u32 %s561, 26
          %s567 = sor.u32 %s565, %s566
          %s568 = sshll.u32 %s547, 4
          %s569 = int_to_ptr.vmem [resolvable:$true] %s568
          %575 = sst [smem:[#allocation25]] 512
          %s576 = scalar_lea.smem [#allocation25], 1
          %577 = sst [smem:[%s576]] 256
          %s578 = scalar_lea.smem [#allocation25], 2
          %579 = sst [smem:[%s578]] 2
          %s580 = scalar_lea.smem [#allocation25], 3
          %581 = sst [smem:[%s580]] 128
          %s582 = scalar_lea.smem [#allocation25], 4
          %583 = sst [smem:[%s582]] 128
          %s584 = scalar_lea.smem [#allocation25], 5
          %585 = sst [smem:[%s584]] 8
          %587 = dma.general %s555, 2048, %s569, %s544, [#allocation24], [#allocation25], %s567, 0
        $region72: #{tpu_custom_call.1} parent=63 // pred_fallthru
          _
      $region64: #{tpu_custom_call.1} parent=5 // pred_fallthru
        _
      %p588 = scmp.le.s32.totalorder 1, %s36
      %p589 = scmp.lt.s32.totalorder %s36, 5
      %p590 = pnand %p588, %p589
      %p591 = pneg %p590
      // Predicated region
      $region73: #{tpu_custom_call.1} parent=5 // pred_check
        _
      $region74: #{tpu_custom_call.1} parent=5 // pred_check_branch
        %593 = sbr.rel (%p590) target = $region76
      $region75: #{tpu_custom_call.1} parent=5 // pred_region
        %s594 = ssub.s32 %s36, 1
        %s595 = sand.u32 %s61, 1
        %s596 = scalar_lea.sflag [#allocation5], %s595
        %s597 = sand.u32 %s61, 1
        %s598 = smul.addr %s597, 240
        %s599 = scalar_lea.vmem [#allocation4], %s598
        // Predicated region
        $region77: #{tpu_custom_call.1} parent=75 // pred_check
          %p600 = pneg %p74
        $region78: #{tpu_custom_call.1} parent=75 // pred_check_branch
          %602 = sbr.rel (%p600) target = $region80
        $region79: #{tpu_custom_call.1} parent=75 // pred_region
          %603 = dma.done %s596, 3840
        $region80: #{tpu_custom_call.1} parent=75 // pred_fallthru
          _
        %s604 = sand.u32 %s41, 1
        %s605 = scalar_lea.sflag [#allocation9], %s604
        %s606 = sand.u32 %s89, 1
        %s607 = smul.addr %s606, 128
        %s608 = scalar_lea.vmem [#allocation8], %s607
        // Predicated region
        $region81: #{tpu_custom_call.1} parent=75 // pred_check
          %p609 = pneg %p102
        $region82: #{tpu_custom_call.1} parent=75 // pred_check_branch
          %611 = sbr.rel (%p609) target = $region84
        $region83: #{tpu_custom_call.1} parent=75 // pred_region
          %612 = dma.done %s605, 2048
        $region84: #{tpu_custom_call.1} parent=75 // pred_fallthru
          _
        // Predicated region
        $region85: #{tpu_custom_call.1} parent=75 // pred_check
          %p613 = pneg %p123
        $region86: #{tpu_custom_call.1} parent=75 // pred_check_branch
          %615 = sbr.rel (%p613) target = $region88
        $region87: #{tpu_custom_call.1} parent=75 // pred_region
          %616 = dma.done [#allocation7], 16
        $region88: #{tpu_custom_call.1} parent=75 // pred_fallthru
          _
        // Predicated region
        $region89: #{tpu_custom_call.1} parent=75 // pred_check
          %p617 = pneg %p165
        $region90: #{tpu_custom_call.1} parent=75 // pred_check_branch
          %619 = sbr.rel (%p617) target = $region92
        $region91: #{tpu_custom_call.1} parent=75 // pred_region
          %620 = dma.done [#allocation12], 16
        $region92: #{tpu_custom_call.1} parent=75 // pred_fallthru
          _
        // Predicated region
        $region93: #{tpu_custom_call.1} parent=75 // pred_check
          %p621 = pneg %p186
        $region94: #{tpu_custom_call.1} parent=75 // pred_check_branch
          %623 = sbr.rel (%p621) target = $region96
        $region95: #{tpu_custom_call.1} parent=75 // pred_region
          %624 = dma.done [#allocation9], 1024
        $region96: #{tpu_custom_call.1} parent=75 // pred_fallthru
          _
        // Predicated region
        $region97: #{tpu_custom_call.1} parent=75 // pred_check
          %p625 = pneg %p207
        $region98: #{tpu_custom_call.1} parent=75 // pred_check_branch
          %627 = sbr.rel (%p625) target = $region100
        $region99: #{tpu_custom_call.1} parent=75 // pred_region
          %628 = dma.done [#allocation15], 4352
        $region100: #{tpu_custom_call.1} parent=75 // pred_fallthru
          _
        // Predicated region
        $region101: #{tpu_custom_call.1} parent=75 // pred_check
          %p629 = pneg %p228
        $region102: #{tpu_custom_call.1} parent=75 // pred_check_branch
          %631 = sbr.rel (%p629) target = $region104
        $region103: #{tpu_custom_call.1} parent=75 // pred_region
          %632 = dma.done [#allocation15], 512
        $region104: #{tpu_custom_call.1} parent=75 // pred_fallthru
          _
        // Predicated region
        $region105: #{tpu_custom_call.1} parent=75 // pred_check
          %p633 = pneg %p249
        $region106: #{tpu_custom_call.1} parent=75 // pred_check_branch
          %635 = sbr.rel (%p633) target = $region108
        $region107: #{tpu_custom_call.1} parent=75 // pred_region
          %636 = dma.done [#allocation12], 16
        $region108: #{tpu_custom_call.1} parent=75 // pred_fallthru
          _
        // Predicated region
        $region109: #{tpu_custom_call.1} parent=75 // pred_check
          %p637 = pneg %p291
        $region110: #{tpu_custom_call.1} parent=75 // pred_check_branch
          %639 = sbr.rel (%p637) target = $region112
        $region111: #{tpu_custom_call.1} parent=75 // pred_region
          %640 = dma.done [#allocation19], 16
        $region112: #{tpu_custom_call.1} parent=75 // pred_fallthru
          _
        // Predicated region
        $region113: #{tpu_custom_call.1} parent=75 // pred_check
          %p641 = pneg %p312
        $region114: #{tpu_custom_call.1} parent=75 // pred_check_branch
          %643 = sbr.rel (%p641) target = $region116
        $region115: #{tpu_custom_call.1} parent=75 // pred_region
          %644 = dma.done [#allocation21], 1024
        $region116: #{tpu_custom_call.1} parent=75 // pred_fallthru
          _
        // Predicated region
        $region117: #{tpu_custom_call.1} parent=75 // pred_check
          %p645 = pneg %p333
        $region118: #{tpu_custom_call.1} parent=75 // pred_check_branch
          %647 = sbr.rel (%p645) target = $region120
        $region119: #{tpu_custom_call.1} parent=75 // pred_region
          %648 = dma.done [#allocation21], 4352
        $region120: #{tpu_custom_call.1} parent=75 // pred_fallthru
          _
        %649 = sfence
        %s650 = sand.u32 %s61, 1
        %s651 = scalar_lea.sflag [#allocation5], %s650
        %s652 = sand.u32 %s61, 1
        %s653 = smul.addr %s652, 240
        %s654 = scalar_lea.vmem [#allocation4], %s653
        %p655 = pneg %p74
        %p656 = pneg %p71
        %s657 = sand.u32 %s41, 1
        %s658 = scalar_lea.sflag [#allocation9], %s657
        %s659 = sand.u32 %s89, 1
        %s660 = smul.addr %s659, 128
        %s661 = scalar_lea.vmem [#allocation8], %s660
        %p662 = pneg %p102
        %p663 = pneg %p99
        %p664 = pneg %p123
        %p665 = pneg %p120
        %p666 = pneg %p144
        %p667 = pneg %p141
        %p668 = pneg %p165
        %p669 = pneg %p162
        %p670 = pneg %p186
        %p671 = pneg %p183
        %p672 = pneg %p207
        %p673 = pneg %p204
        %p674 = pneg %p228
        %p675 = pneg %p225
        %p676 = pneg %p249
        %p677 = pneg %p246
        %p678 = pneg %p270
        %p679 = pneg %p267
        %p680 = pneg %p291
        %p681 = pneg %p288
        %p682 = pneg %p312
        %p683 = pneg %p309
        %p684 = pneg %p333
        %p685 = pneg %p330
        %p686 = pneg %p354
        %p687 = pneg %p351
        %p688 = pneg %p382
        %p689 = pneg %p379
        %s690 = sand.u32 %s369, 1
        %s691 = scalar_lea.sflag [#allocation6], %s690
        %s692 = sand.u32 %s369, 1
        %s693 = smul.addr %s692, 128
        %s694 = scalar_lea.vmem [#allocation23], %s693
        %s695 = smul.u32 2, %s46
        %s696 = smul.u32 2, %s46
        %s698 = smul.u32 %s46, 16
        %s699 = sshra.s32 %s698, 3
        %s700 = sand.u32 %s698, 7
        %s701 = smul.u32 %s699, 2
        %s702 = smul.addr %s701, 8
        %s703 = scalar_lea.vmem %s599, %s702 [#allocation4]
        %v704 = vld [vmem:[%s703] sm:$0xff]
        %v705 = vld [vmem:[%s703 + $0x8] sm:$0xff]
        %v706 = vld [vmem:[%s703 + $0x10] sm:$0xff]
        %v707 = vld [vmem:[%s703 + $0x18] sm:$0xff]
        %v708 = vld [vmem:[%s703 + $0x20] sm:$0xff]
        %v709 = vld [vmem:[%s703 + $0x28] sm:$0xff]
        %s710 = sadd.s32 %s701, 10
        %s711 = smul.addr %s710, 8
        %s712 = scalar_lea.vmem %s599, %s711 [#allocation4]
        %v713 = vld [vmem:[%s712] sm:$0xff]
        %v714 = vld [vmem:[%s712 + $0x8] sm:$0xff]
        %v715 = vld [vmem:[%s712 + $0x10] sm:$0xff]
        %v716 = vld [vmem:[%s712 + $0x18] sm:$0xff]
        %v717 = vld [vmem:[%s712 + $0x20] sm:$0xff]
        %v718 = vld [vmem:[%s712 + $0x28] sm:$0xff]
        %s719 = sadd.s32 %s701, 20
        %s720 = smul.addr %s719, 8
        %s721 = scalar_lea.vmem %s599, %s720 [#allocation4]
        %v722 = vld [vmem:[%s721] sm:$0xff]
        %v723 = vld [vmem:[%s721 + $0x8] sm:$0xff]
        %v724 = vld [vmem:[%s721 + $0x10] sm:$0xff]
        %v725 = vld [vmem:[%s721 + $0x18] sm:$0xff]
        %v726 = vld [vmem:[%s721 + $0x20] sm:$0xff]
        %v727 = vld [vmem:[%s721 + $0x28] sm:$0xff]
        %s728 = sld [smem:[#allocation10]]
        %v729 = vstv %s728
        %v730 = vmul.f32 %v729, %v704
        %v731 = vmul.f32 %v729, %v705
        %v732 = vmul.f32 %v729, %v706
        %v733 = vmul.f32 %v729, %v707
        %v734 = vmul.f32 %v729, %v708
        %v735 = vmul.f32 %v729, %v709
        %s736 = sld [smem:[#allocation10 + $0x1]]
        %v737 = vstv %s736
        %v738 = vmul.f32 %v737, %v713
        %v739 = vmul.f32 %v737, %v714
        %v740 = vmul.f32 %v737, %v715
        %v741 = vmul.f32 %v737, %v716
        %v742 = vmul.f32 %v737, %v717
        %v743 = vmul.f32 %v737, %v718
        %v744 = vadd.f32 %v730, %v738
        %v745 = vadd.f32 %v731, %v739
        %v746 = vadd.f32 %v732, %v740
        %v747 = vadd.f32 %v733, %v741
        %v748 = vadd.f32 %v734, %v742
        %v749 = vadd.f32 %v735, %v743
        %s750 = sld [smem:[#allocation10 + $0x2]]
        %v751 = vstv %s750
        %v752 = vmul.f32 %v751, %v722
        %v753 = vmul.f32 %v751, %v723
        %v754 = vmul.f32 %v751, %v724
        %v755 = vmul.f32 %v751, %v725
        %v756 = vmul.f32 %v751, %v726
        %v757 = vmul.f32 %v751, %v727
        %v758 = vadd.f32 %v744, %v752
        %v759 = vadd.f32 %v745, %v753
        %v760 = vadd.f32 %v746, %v754
        %v761 = vadd.f32 %v747, %v755
        %v762 = vadd.f32 %v748, %v756
        %v763 = vadd.f32 %v749, %v757
        %v764 = vpack.c.bf16 %v760, %v758
        %v765 = vpack.c.bf16 %v761, %v759
        %v766 = vpack.c.bf16 %v762, %v762
        %v767 = vpack.c.bf16 %v763, %v763
        %v768 = vld [vmem:[#allocation14] sm:$0xf]
        %v769 = vld [vmem:[#allocation14 + $0x4] sm:$0xf]
        %v770 = vld [vmem:[#allocation14 + $0x8] sm:$0xf]
        %v771 = vld [vmem:[#allocation14 + $0xc] sm:$0xf]
        %v772 = vld [vmem:[#allocation14 + $0x10] sm:$0xf]
        %v773 = vld [vmem:[#allocation14 + $0x14] sm:$0xf]
        %v774 = vld [vmem:[#allocation14 + $0x18] sm:$0xf]
        %v775 = vld [vmem:[#allocation14 + $0x1c] sm:$0xf]
        %v776 = vld [vmem:[#allocation14 + $0x20] sm:$0xf]
        %v777 = vld [vmem:[#allocation14 + $0x24] sm:$0xf]
        %v778 = vld [vmem:[#allocation14 + $0x28] sm:$0xf]
        %v779 = vld [vmem:[#allocation14 + $0x2c] sm:$0xf]
        %v780 = vld [vmem:[#allocation14 + $0x30] sm:$0xf]
        %v781 = vld [vmem:[#allocation14 + $0x34] sm:$0xf]
        %v782 = vld [vmem:[#allocation14 + $0x38] sm:$0xf]
        %v783 = vld [vmem:[#allocation14 + $0x3c] sm:$0xf]
        %v784 = vld [vmem:[#allocation14 + $0x40] sm:$0xf]
        %v802 = vunpack.c.l.b16 %v768
        %v803 = vunpack.c.l.b16 %v769
        %v804 = vunpack.c.l.b16 %v770
        %v805 = vunpack.c.l.b16 %v771
        %v806 = vunpack.c.l.b16 %v772
        %v807 = vunpack.c.l.b16 %v773
        %v808 = vunpack.c.l.b16 %v774
        %v809 = vunpack.c.l.b16 %v775
        %v810 = vunpack.c.l.b16 %v776
        %v811 = vunpack.c.l.b16 %v777
        %v812 = vunpack.c.l.b16 %v778
        %v813 = vunpack.c.l.b16 %v779
        %v814 = vunpack.c.l.b16 %v780
        %v815 = vunpack.c.l.b16 %v781
        %v816 = vunpack.c.l.b16 %v782
        %v817 = vunpack.c.l.b16 %v783
        %v818 = vunpack.c.l.b16 %v784
        %v819 = vpack.c.b16 %v803, %v802
        %v820 = vpack.c.b16 %v805, %v804
        %v821 = vpack.c.b16 %v807, %v806
        %v822 = vpack.c.b16 %v809, %v808
        %v823 = vpack.c.b16 %v811, %v810
        %v824 = vpack.c.b16 %v813, %v812
        %v825 = vpack.c.b16 %v815, %v814
        %v826 = vpack.c.b16 %v817, %v816
        %v827 = vpack.c.b16 %v818, %v818
        %vm836 = vcmask 64512
        %v838 = vsel %vm836, %v765, 0
        %v841 = vsel %vm836, %v767, 0
        %vm843 = vcmask 1043456
        %v845 = vsel %vm843, %v827, 0
        %847 = vmatprep.subr.bf16.mxu0 0
        %848 = vmatpush1.bf16.msra.mxu0 %v819
        %849 = vmatprep.subr.bf16.mxu0 0
        %850 = vmatpush1.bf16.msra.mxu0 %v820
        %851 = vmatprep.subr.bf16.mxu0 0
        %852 = vmatpush1.bf16.msra.mxu0 %v821
        %853 = vmatprep.subr.bf16.mxu0 0
        %854 = vmatpush1.bf16.msra.mxu0 %v822
        %855 = vmatprep.subr.bf16.mxu0 0
        %856 = vmatpush1.bf16.msra.mxu0 %v823
        %857 = vmatprep.subr.bf16.mxu0 0
        %858 = vmatpush1.bf16.msra.mxu0 %v824
        %859 = vmatprep.subr.bf16.mxu0 0
        %860 = vmatpush1.bf16.msra.mxu0 %v825
        %861 = vmatprep.subr.bf16.mxu0 0
        %862 = vmatpush1.bf16.msra.mxu0 %v826
        %863 = vmatprep.subr.bf16.mxu0 0
        %864 = vmatpush1.bf16.msra.mxu0 %v845
        %865 = vmatprep.subr.bf16.mxu0 0
        %866 = vmatpush1.bf16.msra.mxu0 0
        %867 = vmatprep.subr.bf16.mxu0 0
        %868 = vmatpush1.bf16.msra.mxu0 0
        %869 = vmatprep.subr.bf16.mxu0 0
        %870 = vmatpush1.bf16.msra.mxu0 0
        %871 = vmatprep.subr.bf16.mxu0 0
        %872 = vmatpush1.bf16.msra.mxu0 0
        %873 = vmatprep.subr.bf16.mxu0 0
        %874 = vmatpush1.bf16.msra.mxu0 0
        %875 = vmatprep.subr.bf16.mxu0 0
        %876 = vmatpush1.bf16.msra.mxu0 0
        %877 = vmatprep.subr.bf16.mxu0 0
        %878 = vmatpush1.bf16.msra.mxu0 0
        %879 = vmatprep.mubr.bf16.mxu0 %v838
        %880 = vmatmul.mubr.bf16.gmra.mrb[0].mxu0 %v764
        %v881 = vpop.f32.mrb[0].mxu0
        %v882 = vadd.f32 0.0, %v881
        %v883 = vpop.f32.mrb[0].mxu0
        %v884 = vpop.f32.mrb[0].mxu0
        %v885 = vadd.f32 0.0, %v884
        %v886 = vpop.f32.mrb[0].mxu0
        %887 = vmatprep.mubr.bf16.mxu0 %v841
        %888 = vmatmul.mubr.bf16.gmra.mrb[0].mxu0 %v766
        %v889 = vpop.f32.mrb[0].mxu0
        %v890 = vadd.f32 0.0, %v889
        %v891 = vpop.f32.mrb[0].mxu0
        %v892 = vpop.f32.mrb[0].mxu0
        %v893 = vpop.f32.mrb[0].mxu0
        %894 = vdwg.mxu0
        %v895 = vld [vmem:[#allocation16] sm:$0xf]
        %v896 = vld [vmem:[#allocation16 + $0x4] sm:$0xf]
        %v897 = vpack.c.bf16 %v885, %v882
        %v898 = vpack.c.bf16 %v890, %v890
        %s899 = sld [smem:[#allocation10 + $0x3]]
        %v900 = vstv %s899
        %v901 = vmul.f32 %v900, %v704
        %v902 = vmul.f32 %v900, %v705
        %v903 = vmul.f32 %v900, %v706
        %v904 = vmul.f32 %v900, %v707
        %v905 = vmul.f32 %v900, %v708
        %v906 = vmul.f32 %v900, %v709
        %s907 = sld [smem:[#allocation10 + $0x4]]
        %v908 = vstv %s907
        %v909 = vmul.f32 %v908, %v713
        %v910 = vmul.f32 %v908, %v714
        %v911 = vmul.f32 %v908, %v715
        %v912 = vmul.f32 %v908, %v716
        %v913 = vmul.f32 %v908, %v717
        %v914 = vmul.f32 %v908, %v718
        %v915 = vadd.f32 %v901, %v909
        %v916 = vadd.f32 %v902, %v910
        %v917 = vadd.f32 %v903, %v911
        %v918 = vadd.f32 %v904, %v912
        %v919 = vadd.f32 %v905, %v913
        %v920 = vadd.f32 %v906, %v914
        %s921 = sld [smem:[#allocation10 + $0x5]]
        %v922 = vstv %s921
        %v923 = vmul.f32 %v922, %v722
        %v924 = vmul.f32 %v922, %v723
        %v925 = vmul.f32 %v922, %v724
        %v926 = vmul.f32 %v922, %v725
        %v927 = vmul.f32 %v922, %v726
        %v928 = vmul.f32 %v922, %v727
        %v929 = vadd.f32 %v915, %v923
        %v930 = vadd.f32 %v916, %v924
        %v931 = vadd.f32 %v917, %v925
        %v932 = vadd.f32 %v918, %v926
        %v933 = vadd.f32 %v919, %v927
        %v934 = vadd.f32 %v920, %v928
        %v935 = vpack.c.bf16 %v931, %v929
        %v936 = vpack.c.bf16 %v932, %v930
        %v937 = vpack.c.bf16 %v933, %v933
        %v938 = vpack.c.bf16 %v934, %v934
        %s939 = scalar_lea.vmem [#allocation14], 68
        %v940 = vld [vmem:[%s939] sm:$0xf]
        %v941 = vld [vmem:[%s939 + $0x4] sm:$0xf]
        %v942 = vld [vmem:[%s939 + $0x8] sm:$0xf]
        %v943 = vld [vmem:[%s939 + $0xc] sm:$0xf]
        %v944 = vld [vmem:[%s939 + $0x10] sm:$0xf]
        %v945 = vld [vmem:[%s939 + $0x14] sm:$0xf]
        %v946 = vld [vmem:[%s939 + $0x18] sm:$0xf]
        %v947 = vld [vmem:[%s939 + $0x1c] sm:$0xf]
        %v948 = vld [vmem:[%s939 + $0x20] sm:$0xf]
        %v949 = vld [vmem:[%s939 + $0x24] sm:$0xf]
        %v950 = vld [vmem:[%s939 + $0x28] sm:$0xf]
        %v951 = vld [vmem:[%s939 + $0x2c] sm:$0xf]
        %v952 = vld [vmem:[%s939 + $0x30] sm:$0xf]
        %v953 = vld [vmem:[%s939 + $0x34] sm:$0xf]
        %v954 = vld [vmem:[%s939 + $0x38] sm:$0xf]
        %v955 = vld [vmem:[%s939 + $0x3c] sm:$0xf]
        %v956 = vld [vmem:[%s939 + $0x40] sm:$0xf]
        %v974 = vunpack.c.l.b16 %v940
        %v975 = vunpack.c.l.b16 %v941
        %v976 = vunpack.c.l.b16 %v942
        %v977 = vunpack.c.l.b16 %v943
        %v978 = vunpack.c.l.b16 %v944
        %v979 = vunpack.c.l.b16 %v945
        %v980 = vunpack.c.l.b16 %v946
        %v981 = vunpack.c.l.b16 %v947
        %v982 = vunpack.c.l.b16 %v948
        %v983 = vunpack.c.l.b16 %v949
        %v984 = vunpack.c.l.b16 %v950
        %v985 = vunpack.c.l.b16 %v951
        %v986 = vunpack.c.l.b16 %v952
        %v987 = vunpack.c.l.b16 %v953
        %v988 = vunpack.c.l.b16 %v954
        %v989 = vunpack.c.l.b16 %v955
        %v990 = vunpack.c.l.b16 %v956
        %v991 = vpack.c.b16 %v975, %v974
        %v992 = vpack.c.b16 %v977, %v976
        %v993 = vpack.c.b16 %v979, %v978
        %v994 = vpack.c.b16 %v981, %v980
        %v995 = vpack.c.b16 %v983, %v982
        %v996 = vpack.c.b16 %v985, %v984
        %v997 = vpack.c.b16 %v987, %v986
        %v998 = vpack.c.b16 %v989, %v988
        %v999 = vpack.c.b16 %v990, %v990
        %v1009 = vsel %vm836, %v936, 0
        %v1012 = vsel %vm836, %v938, 0
        %v1015 = vsel %vm843, %v999, 0
        %1017 = vmatprep.subr.bf16.mxu0 0
        %1018 = vmatpush1.bf16.msra.mxu0 %v991
        %1019 = vmatprep.subr.bf16.mxu0 0
        %1020 = vmatpush1.bf16.msra.mxu0 %v992
        %1021 = vmatprep.subr.bf16.mxu0 0
        %1022 = vmatpush1.bf16.msra.mxu0 %v993
        %1023 = vmatprep.subr.bf16.mxu0 0
        %1024 = vmatpush1.bf16.msra.mxu0 %v994
        %1025 = vmatprep.subr.bf16.mxu0 0
        %1026 = vmatpush1.bf16.msra.mxu0 %v995
        %1027 = vmatprep.subr.bf16.mxu0 0
        %1028 = vmatpush1.bf16.msra.mxu0 %v996
        %1029 = vmatprep.subr.bf16.mxu0 0
        %1030 = vmatpush1.bf16.msra.mxu0 %v997
        %1031 = vmatprep.subr.bf16.mxu0 0
        %1032 = vmatpush1.bf16.msra.mxu0 %v998
        %1033 = vmatprep.subr.bf16.mxu0 0
        %1034 = vmatpush1.bf16.msra.mxu0 %v1015
        %1035 = vmatprep.subr.bf16.mxu0 0
        %1036 = vmatpush1.bf16.msra.mxu0 0
        %1037 = vmatprep.subr.bf16.mxu0 0
        %1038 = vmatpush1.bf16.msra.mxu0 0
        %1039 = vmatprep.subr.bf16.mxu0 0
        %1040 = vmatpush1.bf16.msra.mxu0 0
        %1041 = vmatprep.subr.bf16.mxu0 0
        %1042 = vmatpush1.bf16.msra.mxu0 0
        %1043 = vmatprep.subr.bf16.mxu0 0
        %1044 = vmatpush1.bf16.msra.mxu0 0
        %1045 = vmatprep.subr.bf16.mxu0 0
        %1046 = vmatpush1.bf16.msra.mxu0 0
        %1047 = vmatprep.subr.bf16.mxu0 0
        %1048 = vmatpush1.bf16.msra.mxu0 0
        %1049 = vmatprep.mubr.bf16.mxu0 %v1009
        %1050 = vmatmul.mubr.bf16.gmra.mrb[0].mxu0 %v935
        %v1051 = vpop.f32.mrb[0].mxu0
        %v1052 = vadd.f32 0.0, %v1051
        %v1053 = vpop.f32.mrb[0].mxu0
        %v1054 = vpop.f32.mrb[0].mxu0
        %v1055 = vadd.f32 0.0, %v1054
        %v1056 = vpop.f32.mrb[0].mxu0
        %1057 = vmatprep.mubr.bf16.mxu0 %v1012
        %1058 = vmatmul.mubr.bf16.gmra.mrb[0].mxu0 %v937
        %v1059 = vpop.f32.mrb[0].mxu0
        %v1060 = vadd.f32 0.0, %v1059
        %v1061 = vpop.f32.mrb[0].mxu0
        %v1062 = vpop.f32.mrb[0].mxu0
        %v1063 = vpop.f32.mrb[0].mxu0
        %1064 = vdwg.mxu0
        %s1065 = scalar_lea.vmem [#allocation16], 8
        %v1066 = vld [vmem:[%s1065] sm:$0xf]
        %v1067 = vld [vmem:[%s1065 + $0x4] sm:$0xf]
        %v1068 = vpack.c.bf16 %v1055, %v1052
        %v1069 = vpack.c.bf16 %v1060, %v1060
        %v1072 = vunpack.c.l.b16 %v1066
        %v1073 = vunpack.c.l.b16 %v1067
        %v1074 = vpack.c.b16 %v1073, %v1072
        %vm1075 = vcmask 195584
        %v1077 = vsel %vm1075, %v1074, 0
        %v1080 = vsel %vm843, %v1069, 0
        %1082 = vmatprep.subr.bf16.mxu0 0
        %1083 = vmatpush1.bf16.msra.mxu0 %v1068
        %1084 = vmatprep.subr.bf16.mxu0 0
        %1085 = vmatpush1.bf16.msra.mxu0 %v1080
        %1086 = vmatprep.subr.bf16.mxu0 0
        %1087 = vmatpush1.bf16.msra.mxu0 0
        %1088 = vmatprep.subr.bf16.mxu0 0
        %1089 = vmatpush1.bf16.msra.mxu0 0
        %1090 = vmatprep.subr.bf16.mxu0 0
        %1091 = vmatpush1.bf16.msra.mxu0 0
        %1092 = vmatprep.subr.bf16.mxu0 0
        %1093 = vmatpush1.bf16.msra.mxu0 0
        %1094 = vmatprep.subr.bf16.mxu0 0
        %1095 = vmatpush1.bf16.msra.mxu0 0
        %1096 = vmatprep.subr.bf16.mxu0 0
        %1097 = vmatpush1.bf16.msra.mxu0 0
        %1098 = vmatprep.subr.bf16.mxu0 0
        %1099 = vmatpush1.bf16.msra.mxu0 0
        %1100 = vmatprep.subr.bf16.mxu0 0
        %1101 = vmatpush1.bf16.msra.mxu0 0
        %1102 = vmatprep.subr.bf16.mxu0 0
        %1103 = vmatpush1.bf16.msra.mxu0 0
        %1104 = vmatprep.subr.bf16.mxu0 0
        %1105 = vmatpush1.bf16.msra.mxu0 0
        %1106 = vmatprep.subr.bf16.mxu0 0
        %1107 = vmatpush1.bf16.msra.mxu0 0
        %1108 = vmatprep.subr.bf16.mxu0 0
        %1109 = vmatpush1.bf16.msra.mxu0 0
        %1110 = vmatprep.subr.bf16.mxu0 0
        %1111 = vmatpush1.bf16.msra.mxu0 0
        %1112 = vmatprep.subr.bf16.mxu0 0
        %1113 = vmatpush1.bf16.msra.mxu0 0
        %1114 = vmatprep.mubr.bf16.mxu0 0
        %1115 = vmatmul.mubr.bf16.gmra.mrb[0].mxu0 %v1077
        %v1116 = vpop.f32.mrb[0].mxu0
        %v1117 = vadd.f32 0.0, %v1116
        %v1118 = vpop.f32.mrb[0].mxu0
        %v1119 = vpop.f32.mrb[0].mxu0
        %v1120 = vadd.f32 0.0, %v1119
        %v1121 = vpop.f32.mrb[0].mxu0
        %1122 = vdwg.mxu0
        %v1125 = vunpack.c.l.b16 %v895
        %v1126 = vunpack.c.l.b16 %v896
        %v1127 = vpack.c.b16 %v1126, %v1125
        %v1129 = vsel %vm1075, %v1127, 0
        %v1132 = vsel %vm843, %v898, 0
        %1134 = vmatprep.subr.bf16.mxu0 0
        %1135 = vmatpush1.bf16.msra.mxu0 %v897
        %1136 = vmatprep.subr.bf16.mxu0 0
        %1137 = vmatpush1.bf16.msra.mxu0 %v1132
        %1138 = vmatprep.subr.bf16.mxu0 0
        %1139 = vmatpush1.bf16.msra.mxu0 0
        %1140 = vmatprep.subr.bf16.mxu0 0
        %1141 = vmatpush1.bf16.msra.mxu0 0
        %1142 = vmatprep.subr.bf16.mxu0 0
        %1143 = vmatpush1.bf16.msra.mxu0 0
        %1144 = vmatprep.subr.bf16.mxu0 0
        %1145 = vmatpush1.bf16.msra.mxu0 0
        %1146 = vmatprep.subr.bf16.mxu0 0
        %1147 = vmatpush1.bf16.msra.mxu0 0
        %1148 = vmatprep.subr.bf16.mxu0 0
        %1149 = vmatpush1.bf16.msra.mxu0 0
        %1150 = vmatprep.subr.bf16.mxu0 0
        %1151 = vmatpush1.bf16.msra.mxu0 0
        %1152 = vmatprep.subr.bf16.mxu0 0
        %1153 = vmatpush1.bf16.msra.mxu0 0
        %1154 = vmatprep.subr.bf16.mxu0 0
        %1155 = vmatpush1.bf16.msra.mxu0 0
        %1156 = vmatprep.subr.bf16.mxu0 0
        %1157 = vmatpush1.bf16.msra.mxu0 0
        %1158 = vmatprep.subr.bf16.mxu0 0
        %1159 = vmatpush1.bf16.msra.mxu0 0
        %1160 = vmatprep.subr.bf16.mxu0 0
        %1161 = vmatpush1.bf16.msra.mxu0 0
        %1162 = vmatprep.subr.bf16.mxu0 0
        %1163 = vmatpush1.bf16.msra.mxu0 0
        %1164 = vmatprep.subr.bf16.mxu0 0
        %1165 = vmatpush1.bf16.msra.mxu0 0
        %1166 = vmatprep.mubr.bf16.mxu0 0
        %1167 = vmatmul.mubr.bf16.gmra.mrb[0].mxu0 %v1129
        %v1168 = vpop.f32.mrb[0].mxu0
        %v1169 = vadd.f32 %v1117, %v1168
        %v1170 = vpop.f32.mrb[0].mxu0
        %v1171 = vpop.f32.mrb[0].mxu0
        %v1172 = vadd.f32 %v1120, %v1171
        %v1173 = vpop.f32.mrb[0].mxu0
        %1174 = vdwg.mxu0
        %s1175 = sld [smem:[#allocation10 + $0x6]]
        %v1176 = vstv %s1175
        %v1177 = vmul.f32 %v1176, %v704
        %v1178 = vmul.f32 %v1176, %v705
        %v1179 = vmul.f32 %v1176, %v706
        %v1180 = vmul.f32 %v1176, %v707
        %v1181 = vmul.f32 %v1176, %v708
        %v1182 = vmul.f32 %v1176, %v709
        %s1183 = sld [smem:[#allocation10 + $0x7]]
        %v1184 = vstv %s1183
        %v1185 = vmul.f32 %v1184, %v713
        %v1186 = vmul.f32 %v1184, %v714
        %v1187 = vmul.f32 %v1184, %v715
        %v1188 = vmul.f32 %v1184, %v716
        %v1189 = vmul.f32 %v1184, %v717
        %v1190 = vmul.f32 %v1184, %v718
        %v1191 = vadd.f32 %v1177, %v1185
        %v1192 = vadd.f32 %v1178, %v1186
        %v1193 = vadd.f32 %v1179, %v1187
        %v1194 = vadd.f32 %v1180, %v1188
        %v1195 = vadd.f32 %v1181, %v1189
        %v1196 = vadd.f32 %v1182, %v1190
        %s1197 = sld [smem:[#allocation10 + $0x8]]
        %v1198 = vstv %s1197
        %v1199 = vmul.f32 %v1198, %v722
        %v1200 = vmul.f32 %v1198, %v723
        %v1201 = vmul.f32 %v1198, %v724
        %v1202 = vmul.f32 %v1198, %v725
        %v1203 = vmul.f32 %v1198, %v726
        %v1204 = vmul.f32 %v1198, %v727
        %v1205 = vadd.f32 %v1191, %v1199
        %v1206 = vadd.f32 %v1192, %v1200
        %v1207 = vadd.f32 %v1193, %v1201
        %v1208 = vadd.f32 %v1194, %v1202
        %v1209 = vadd.f32 %v1195, %v1203
        %v1210 = vadd.f32 %v1196, %v1204
        %v1211 = vpack.c.bf16 %v1207, %v1205
        %v1212 = vpack.c.bf16 %v1208, %v1206
        %v1213 = vpack.c.bf16 %v1209, %v1209
        %v1214 = vpack.c.bf16 %v1210, %v1210
        %s1215 = scalar_lea.vmem [#allocation14], 136
        %v1216 = vld [vmem:[%s1215] sm:$0xf]
        %v1217 = vld [vmem:[%s1215 + $0x4] sm:$0xf]
        %v1218 = vld [vmem:[%s1215 + $0x8] sm:$0xf]
        %v1219 = vld [vmem:[%s1215 + $0xc] sm:$0xf]
        %v1220 = vld [vmem:[%s1215 + $0x10] sm:$0xf]
        %v1221 = vld [vmem:[%s1215 + $0x14] sm:$0xf]
        %v1222 = vld [vmem:[%s1215 + $0x18] sm:$0xf]
        %v1223 = vld [vmem:[%s1215 + $0x1c] sm:$0xf]
        %v1224 = vld [vmem:[%s1215 + $0x20] sm:$0xf]
        %v1225 = vld [vmem:[%s1215 + $0x24] sm:$0xf]
        %v1226 = vld [vmem:[%s1215 + $0x28] sm:$0xf]
        %v1227 = vld [vmem:[%s1215 + $0x2c] sm:$0xf]
        %v1228 = vld [vmem:[%s1215 + $0x30] sm:$0xf]
        %v1229 = vld [vmem:[%s1215 + $0x34] sm:$0xf]
        %v1230 = vld [vmem:[%s1215 + $0x38] sm:$0xf]
        %v1231 = vld [vmem:[%s1215 + $0x3c] sm:$0xf]
        %v1232 = vld [vmem:[%s1215 + $0x40] sm:$0xf]
        %v1250 = vunpack.c.l.b16 %v1216
        %v1251 = vunpack.c.l.b16 %v1217
        %v1252 = vunpack.c.l.b16 %v1218
        %v1253 = vunpack.c.l.b16 %v1219
        %v1254 = vunpack.c.l.b16 %v1220
        %v1255 = vunpack.c.l.b16 %v1221
        %v1256 = vunpack.c.l.b16 %v1222
        %v1257 = vunpack.c.l.b16 %v1223
        %v1258 = vunpack.c.l.b16 %v1224
        %v1259 = vunpack.c.l.b16 %v1225
        %v1260 = vunpack.c.l.b16 %v1226
        %v1261 = vunpack.c.l.b16 %v1227
        %v1262 = vunpack.c.l.b16 %v1228
        %v1263 = vunpack.c.l.b16 %v1229
        %v1264 = vunpack.c.l.b16 %v1230
        %v1265 = vunpack.c.l.b16 %v1231
        %v1266 = vunpack.c.l.b16 %v1232
        %v1267 = vpack.c.b16 %v1251, %v1250
        %v1268 = vpack.c.b16 %v1253, %v1252
        %v1269 = vpack.c.b16 %v1255, %v1254
        %v1270 = vpack.c.b16 %v1257, %v1256
        %v1271 = vpack.c.b16 %v1259, %v1258
        %v1272 = vpack.c.b16 %v1261, %v1260
        %v1273 = vpack.c.b16 %v1263, %v1262
        %v1274 = vpack.c.b16 %v1265, %v1264
        %v1275 = vpack.c.b16 %v1266, %v1266
        %v1285 = vsel %vm836, %v1212, 0
        %v1288 = vsel %vm836, %v1214, 0
        %v1291 = vsel %vm843, %v1275, 0
        %1293 = vmatprep.subr.bf16.mxu0 0
        %1294 = vmatpush1.bf16.msra.mxu0 %v1267
        %1295 = vmatprep.subr.bf16.mxu0 0
        %1296 = vmatpush1.bf16.msra.mxu0 %v1268
        %1297 = vmatprep.subr.bf16.mxu0 0
        %1298 = vmatpush1.bf16.msra.mxu0 %v1269
        %1299 = vmatprep.subr.bf16.mxu0 0
        %1300 = vmatpush1.bf16.msra.mxu0 %v1270
        %1301 = vmatprep.subr.bf16.mxu0 0
        %1302 = vmatpush1.bf16.msra.mxu0 %v1271
        %1303 = vmatprep.subr.bf16.mxu0 0
        %1304 = vmatpush1.bf16.msra.mxu0 %v1272
        %1305 = vmatprep.subr.bf16.mxu0 0
        %1306 = vmatpush1.bf16.msra.mxu0 %v1273
        %1307 = vmatprep.subr.bf16.mxu0 0
        %1308 = vmatpush1.bf16.msra.mxu0 %v1274
        %1309 = vmatprep.subr.bf16.mxu0 0
        %1310 = vmatpush1.bf16.msra.mxu0 %v1291
        %1311 = vmatprep.subr.bf16.mxu0 0
        %1312 = vmatpush1.bf16.msra.mxu0 0
        %1313 = vmatprep.subr.bf16.mxu0 0
        %1314 = vmatpush1.bf16.msra.mxu0 0
        %1315 = vmatprep.subr.bf16.mxu0 0
        %1316 = vmatpush1.bf16.msra.mxu0 0
        %1317 = vmatprep.subr.bf16.mxu0 0
        %1318 = vmatpush1.bf16.msra.mxu0 0
        %1319 = vmatprep.subr.bf16.mxu0 0
        %1320 = vmatpush1.bf16.msra.mxu0 0
        %1321 = vmatprep.subr.bf16.mxu0 0
        %1322 = vmatpush1.bf16.msra.mxu0 0
        %1323 = vmatprep.subr.bf16.mxu0 0
        %1324 = vmatpush1.bf16.msra.mxu0 0
        %1325 = vmatprep.mubr.bf16.mxu0 %v1285
        %1326 = vmatmul.mubr.bf16.gmra.mrb[0].mxu0 %v1211
        %v1327 = vpop.f32.mrb[0].mxu0
        %v1328 = vadd.f32 0.0, %v1327
        %v1329 = vpop.f32.mrb[0].mxu0
        %v1330 = vpop.f32.mrb[0].mxu0
        %v1331 = vadd.f32 0.0, %v1330
        %v1332 = vpop.f32.mrb[0].mxu0
        %1333 = vmatprep.mubr.bf16.mxu0 %v1288
        %1334 = vmatmul.mubr.bf16.gmra.mrb[0].mxu0 %v1213
        %v1335 = vpop.f32.mrb[0].mxu0
        %v1336 = vadd.f32 0.0, %v1335
        %v1337 = vpop.f32.mrb[0].mxu0
        %v1338 = vpop.f32.mrb[0].mxu0
        %v1339 = vpop.f32.mrb[0].mxu0
        %1340 = vdwg.mxu0
        %s1341 = scalar_lea.vmem [#allocation16], 16
        %v1342 = vld [vmem:[%s1341] sm:$0xf]
        %v1343 = vld [vmem:[%s1341 + $0x4] sm:$0xf]
        %v1344 = vpack.c.bf16 %v1331, %v1328
        %v1345 = vpack.c.bf16 %v1336, %v1336
        %v1348 = vunpack.c.l.b16 %v1342
        %v1349 = vunpack.c.l.b16 %v1343
        %v1350 = vpack.c.b16 %v1349, %v1348
        %v1352 = vsel %vm1075, %v1350, 0
        %v1355 = vsel %vm843, %v1345, 0
        %1357 = vmatprep.subr.bf16.mxu0 0
        %1358 = vmatpush1.bf16.msra.mxu0 %v1344
        %1359 = vmatprep.subr.bf16.mxu0 0
        %1360 = vmatpush1.bf16.msra.mxu0 %v1355
        %1361 = vmatprep.subr.bf16.mxu0 0
        %1362 = vmatpush1.bf16.msra.mxu0 0
        %1363 = vmatprep.subr.bf16.mxu0 0
        %1364 = vmatpush1.bf16.msra.mxu0 0
        %1365 = vmatprep.subr.bf16.mxu0 0
        %1366 = vmatpush1.bf16.msra.mxu0 0
        %1367 = vmatprep.subr.bf16.mxu0 0
        %1368 = vmatpush1.bf16.msra.mxu0 0
        %1369 = vmatprep.subr.bf16.mxu0 0
        %1370 = vmatpush1.bf16.msra.mxu0 0
        %1371 = vmatprep.subr.bf16.mxu0 0
        %1372 = vmatpush1.bf16.msra.mxu0 0
        %1373 = vmatprep.subr.bf16.mxu0 0
        %1374 = vmatpush1.bf16.msra.mxu0 0
        %1375 = vmatprep.subr.bf16.mxu0 0
        %1376 = vmatpush1.bf16.msra.mxu0 0
        %1377 = vmatprep.subr.bf16.mxu0 0
        %1378 = vmatpush1.bf16.msra.mxu0 0
        %1379 = vmatprep.subr.bf16.mxu0 0
        %1380 = vmatpush1.bf16.msra.mxu0 0
        %1381 = vmatprep.subr.bf16.mxu0 0
        %1382 = vmatpush1.bf16.msra.mxu0 0
        %1383 = vmatprep.subr.bf16.mxu0 0
        %1384 = vmatpush1.bf16.msra.mxu0 0
        %1385 = vmatprep.subr.bf16.mxu0 0
        %1386 = vmatpush1.bf16.msra.mxu0 0
        %1387 = vmatprep.subr.bf16.mxu0 0
        %1388 = vmatpush1.bf16.msra.mxu0 0
        %1389 = vmatprep.mubr.bf16.mxu0 0
        %1390 = vmatmul.mubr.bf16.gmra.mrb[0].mxu0 %v1352
        %v1391 = vpop.f32.mrb[0].mxu0
        %v1392 = vadd.f32 0.0, %v1391
        %v1393 = vpop.f32.mrb[0].mxu0
        %v1394 = vpop.f32.mrb[0].mxu0
        %v1395 = vadd.f32 0.0, %v1394
        %v1396 = vpop.f32.mrb[0].mxu0
        %1397 = vdwg.mxu0
        %v1398 = vadd.f32 %v1169, %v1392
        %v1399 = vadd.f32 %v1172, %v1395
        %s1400 = sld [smem:[#allocation10 + $0x9]]
        %v1401 = vstv %s1400
        %v1402 = vmul.f32 %v1401, %v704
        %v1403 = vmul.f32 %v1401, %v705
        %v1404 = vmul.f32 %v1401, %v706
        %v1405 = vmul.f32 %v1401, %v707
        %v1406 = vmul.f32 %v1401, %v708
        %v1407 = vmul.f32 %v1401, %v709
        %s1408 = sld [smem:[#allocation10 + $0xa]]
        %v1409 = vstv %s1408
        %v1410 = vmul.f32 %v1409, %v713
        %v1411 = vmul.f32 %v1409, %v714
        %v1412 = vmul.f32 %v1409, %v715
        %v1413 = vmul.f32 %v1409, %v716
        %v1414 = vmul.f32 %v1409, %v717
        %v1415 = vmul.f32 %v1409, %v718
        %v1416 = vadd.f32 %v1402, %v1410
        %v1417 = vadd.f32 %v1403, %v1411
        %v1418 = vadd.f32 %v1404, %v1412
        %v1419 = vadd.f32 %v1405, %v1413
        %v1420 = vadd.f32 %v1406, %v1414
        %v1421 = vadd.f32 %v1407, %v1415
        %s1422 = sld [smem:[#allocation10 + $0xb]]
        %v1423 = vstv %s1422
        %v1424 = vmul.f32 %v1423, %v722
        %v1425 = vmul.f32 %v1423, %v723
        %v1426 = vmul.f32 %v1423, %v724
        %v1427 = vmul.f32 %v1423, %v725
        %v1428 = vmul.f32 %v1423, %v726
        %v1429 = vmul.f32 %v1423, %v727
        %v1430 = vadd.f32 %v1416, %v1424
        %v1431 = vadd.f32 %v1417, %v1425
        %v1432 = vadd.f32 %v1418, %v1426
        %v1433 = vadd.f32 %v1419, %v1427
        %v1434 = vadd.f32 %v1420, %v1428
        %v1435 = vadd.f32 %v1421, %v1429
        %v1436 = vpack.c.bf16 %v1432, %v1430
        %v1437 = vpack.c.bf16 %v1433, %v1431
        %v1438 = vpack.c.bf16 %v1434, %v1434
        %v1439 = vpack.c.bf16 %v1435, %v1435
        %s1440 = scalar_lea.vmem [#allocation14], 204
        %v1441 = vld [vmem:[%s1440] sm:$0xf]
        %v1442 = vld [vmem:[%s1440 + $0x4] sm:$0xf]
        %v1443 = vld [vmem:[%s1440 + $0x8] sm:$0xf]
        %v1444 = vld [vmem:[%s1440 + $0xc] sm:$0xf]
        %v1445 = vld [vmem:[%s1440 + $0x10] sm:$0xf]
        %v1446 = vld [vmem:[%s1440 + $0x14] sm:$0xf]
        %v1447 = vld [vmem:[%s1440 + $0x18] sm:$0xf]
        %v1448 = vld [vmem:[%s1440 + $0x1c] sm:$0xf]
        %v1449 = vld [vmem:[%s1440 + $0x20] sm:$0xf]
        %v1450 = vld [vmem:[%s1440 + $0x24] sm:$0xf]
        %v1451 = vld [vmem:[%s1440 + $0x28] sm:$0xf]
        %v1452 = vld [vmem:[%s1440 + $0x2c] sm:$0xf]
        %v1453 = vld [vmem:[%s1440 + $0x30] sm:$0xf]
        %v1454 = vld [vmem:[%s1440 + $0x34] sm:$0xf]
        %v1455 = vld [vmem:[%s1440 + $0x38] sm:$0xf]
        %v1456 = vld [vmem:[%s1440 + $0x3c] sm:$0xf]
        %v1457 = vld [vmem:[%s1440 + $0x40] sm:$0xf]
        %v1475 = vunpack.c.l.b16 %v1441
        %v1476 = vunpack.c.l.b16 %v1442
        %v1477 = vunpack.c.l.b16 %v1443
        %v1478 = vunpack.c.l.b16 %v1444
        %v1479 = vunpack.c.l.b16 %v1445
        %v1480 = vunpack.c.l.b16 %v1446
        %v1481 = vunpack.c.l.b16 %v1447
        %v1482 = vunpack.c.l.b16 %v1448
        %v1483 = vunpack.c.l.b16 %v1449
        %v1484 = vunpack.c.l.b16 %v1450
        %v1485 = vunpack.c.l.b16 %v1451
        %v1486 = vunpack.c.l.b16 %v1452
        %v1487 = vunpack.c.l.b16 %v1453
        %v1488 = vunpack.c.l.b16 %v1454
        %v1489 = vunpack.c.l.b16 %v1455
        %v1490 = vunpack.c.l.b16 %v1456
        %v1491 = vunpack.c.l.b16 %v1457
        %v1492 = vpack.c.b16 %v1476, %v1475
        %v1493 = vpack.c.b16 %v1478, %v1477
        %v1494 = vpack.c.b16 %v1480, %v1479
        %v1495 = vpack.c.b16 %v1482, %v1481
        %v1496 = vpack.c.b16 %v1484, %v1483
        %v1497 = vpack.c.b16 %v1486, %v1485
        %v1498 = vpack.c.b16 %v1488, %v1487
        %v1499 = vpack.c.b16 %v1490, %v1489
        %v1500 = vpack.c.b16 %v1491, %v1491
        %v1510 = vsel %vm836, %v1437, 0
        %v1513 = vsel %vm836, %v1439, 0
        %v1516 = vsel %vm843, %v1500, 0
        %1518 = vmatprep.subr.bf16.mxu0 0
        %1519 = vmatpush1.bf16.msra.mxu0 %v1492
        %1520 = vmatprep.subr.bf16.mxu0 0
        %1521 = vmatpush1.bf16.msra.mxu0 %v1493
        %1522 = vmatprep.subr.bf16.mxu0 0
        %1523 = vmatpush1.bf16.msra.mxu0 %v1494
        %1524 = vmatprep.subr.bf16.mxu0 0
        %1525 = vmatpush1.bf16.msra.mxu0 %v1495
        %1526 = vmatprep.subr.bf16.mxu0 0
        %1527 = vmatpush1.bf16.msra.mxu0 %v1496
        %1528 = vmatprep.subr.bf16.mxu0 0
        %1529 = vmatpush1.bf16.msra.mxu0 %v1497
        %1530 = vmatprep.subr.bf16.mxu0 0
        %1531 = vmatpush1.bf16.msra.mxu0 %v1498
        %1532 = vmatprep.subr.bf16.mxu0 0
        %1533 = vmatpush1.bf16.msra.mxu0 %v1499
        %1534 = vmatprep.subr.bf16.mxu0 0
        %1535 = vmatpush1.bf16.msra.mxu0 %v1516
        %1536 = vmatprep.subr.bf16.mxu0 0
        %1537 = vmatpush1.bf16.msra.mxu0 0
        %1538 = vmatprep.subr.bf16.mxu0 0
        %1539 = vmatpush1.bf16.msra.mxu0 0
        %1540 = vmatprep.subr.bf16.mxu0 0
        %1541 = vmatpush1.bf16.msra.mxu0 0
        %1542 = vmatprep.subr.bf16.mxu0 0
        %1543 = vmatpush1.bf16.msra.mxu0 0
        %1544 = vmatprep.subr.bf16.mxu0 0
        %1545 = vmatpush1.bf16.msra.mxu0 0
        %1546 = vmatprep.subr.bf16.mxu0 0
        %1547 = vmatpush1.bf16.msra.mxu0 0
        %1548 = vmatprep.subr.bf16.mxu0 0
        %1549 = vmatpush1.bf16.msra.mxu0 0
        %1550 = vmatprep.mubr.bf16.mxu0 %v1510
        %1551 = vmatmul.mubr.bf16.gmra.mrb[0].mxu0 %v1436
        %v1552 = vpop.f32.mrb[0].mxu0
        %v1553 = vadd.f32 0.0, %v1552
        %v1554 = vpop.f32.mrb[0].mxu0
        %v1555 = vpop.f32.mrb[0].mxu0
        %v1556 = vadd.f32 0.0, %v1555
        %v1557 = vpop.f32.mrb[0].mxu0
        %1558 = vmatprep.mubr.bf16.mxu0 %v1513
        %1559 = vmatmul.mubr.bf16.gmra.mrb[0].mxu0 %v1438
        %v1560 = vpop.f32.mrb[0].mxu0
        %v1561 = vadd.f32 0.0, %v1560
        %v1562 = vpop.f32.mrb[0].mxu0
        %v1563 = vpop.f32.mrb[0].mxu0
        %v1564 = vpop.f32.mrb[0].mxu0
        %1565 = vdwg.mxu0
        %s1566 = scalar_lea.vmem [#allocation16], 24
        %v1567 = vld [vmem:[%s1566] sm:$0xf]
        %v1568 = vld [vmem:[%s1566 + $0x4] sm:$0xf]
        %v1569 = vpack.c.bf16 %v1556, %v1553
        %v1570 = vpack.c.bf16 %v1561, %v1561
        %v1573 = vunpack.c.l.b16 %v1567
        %v1574 = vunpack.c.l.b16 %v1568
        %v1575 = vpack.c.b16 %v1574, %v1573
        %v1577 = vsel %vm1075, %v1575, 0
        %v1580 = vsel %vm843, %v1570, 0
        %1582 = vmatprep.subr.bf16.mxu0 0
        %1583 = vmatpush1.bf16.msra.mxu0 %v1569
        %1584 = vmatprep.subr.bf16.mxu0 0
        %1585 = vmatpush1.bf16.msra.mxu0 %v1580
        %1586 = vmatprep.subr.bf16.mxu0 0
        %1587 = vmatpush1.bf16.msra.mxu0 0
        %1588 = vmatprep.subr.bf16.mxu0 0
        %1589 = vmatpush1.bf16.msra.mxu0 0
        %1590 = vmatprep.subr.bf16.mxu0 0
        %1591 = vmatpush1.bf16.msra.mxu0 0
        %1592 = vmatprep.subr.bf16.mxu0 0
        %1593 = vmatpush1.bf16.msra.mxu0 0
        %1594 = vmatprep.subr.bf16.mxu0 0
        %1595 = vmatpush1.bf16.msra.mxu0 0
        %1596 = vmatprep.subr.bf16.mxu0 0
        %1597 = vmatpush1.bf16.msra.mxu0 0
        %1598 = vmatprep.subr.bf16.mxu0 0
        %1599 = vmatpush1.bf16.msra.mxu0 0
        %1600 = vmatprep.subr.bf16.mxu0 0
        %1601 = vmatpush1.bf16.msra.mxu0 0
        %1602 = vmatprep.subr.bf16.mxu0 0
        %1603 = vmatpush1.bf16.msra.mxu0 0
        %1604 = vmatprep.subr.bf16.mxu0 0
        %1605 = vmatpush1.bf16.msra.mxu0 0
        %1606 = vmatprep.subr.bf16.mxu0 0
        %1607 = vmatpush1.bf16.msra.mxu0 0
        %1608 = vmatprep.subr.bf16.mxu0 0
        %1609 = vmatpush1.bf16.msra.mxu0 0
        %1610 = vmatprep.subr.bf16.mxu0 0
        %1611 = vmatpush1.bf16.msra.mxu0 0
        %1612 = vmatprep.subr.bf16.mxu0 0
        %1613 = vmatpush1.bf16.msra.mxu0 0
        %1614 = vmatprep.mubr.bf16.mxu0 0
        %1615 = vmatmul.mubr.bf16.gmra.mrb[0].mxu0 %v1577
        %v1616 = vpop.f32.mrb[0].mxu0
        %v1617 = vadd.f32 0.0, %v1616
        %v1618 = vpop.f32.mrb[0].mxu0
        %v1619 = vpop.f32.mrb[0].mxu0
        %v1620 = vadd.f32 0.0, %v1619
        %v1621 = vpop.f32.mrb[0].mxu0
        %1622 = vdwg.mxu0
        %v1623 = vadd.f32 %v1398, %v1617
        %v1624 = vadd.f32 %v1399, %v1620
        %v1625 = vld [vmem:[%s608] sm:$0xff]
        %v1626 = vld [vmem:[%s608 + $0x8] sm:$0xff]
        %v1627 = vld [vmem:[%s608 + $0x10] sm:$0xff]
        %v1628 = vld [vmem:[%s608 + $0x18] sm:$0xff]
        %v1629 = vld [vmem:[%s608 + $0x20] sm:$0xff]
        %v1630 = vld [vmem:[%s608 + $0x28] sm:$0xff]
        %v1631 = vld [vmem:[%s608 + $0x30] sm:$0xff]
        %v1632 = vld [vmem:[%s608 + $0x38] sm:$0xff]
        %v1633 = vld [vmem:[%s608 + $0x40] sm:$0xff]
        %v1634 = vld [vmem:[%s608 + $0x48] sm:$0xff]
        %v1635 = vld [vmem:[%s608 + $0x50] sm:$0xff]
        %v1636 = vld [vmem:[%s608 + $0x58] sm:$0xff]
        %v1637 = vld [vmem:[%s608 + $0x60] sm:$0xff]
        %v1638 = vld [vmem:[%s608 + $0x68] sm:$0xff]
        %v1639 = vld [vmem:[%s608 + $0x70] sm:$0xff]
        %v1640 = vld [vmem:[%s608 + $0x78] sm:$0xff]
        %v1641 = vmax.f32 %v1625, %v1629
        %v1642 = vmax.f32 %v1627, %v1631
        %v1643 = vmax.f32 %v1641, %v1633
        %v1644 = vmax.f32 %v1642, %v1635
        %v1645 = vmax.f32 %v1643, %v1637
        %v1646 = vmax.f32 %v1644, %v1639
        %v1647 = vmax.f32 %v1645, %v1646
        %v1648 = vmax.f32 %v1626, %v1630
        %v1649 = vmax.f32 %v1628, %v1632
        %v1650 = vmax.f32 %v1648, %v1634
        %v1651 = vmax.f32 %v1649, %v1636
        %v1652 = vmax.f32 %v1650, %v1638
        %v1653 = vmax.f32 %v1651, %v1640
        %v1654 = vmax.f32 %v1652, %v1653
        %v1655 = vsub.f32 %v1625, %v1647
        %v1656 = vsub.f32 %v1626, %v1654
        %v1657 = vsub.f32 %v1627, %v1647
        %v1658 = vsub.f32 %v1628, %v1654
        %v1659 = vsub.f32 %v1629, %v1647
        %v1660 = vsub.f32 %v1630, %v1654
        %v1661 = vsub.f32 %v1631, %v1647
        %v1662 = vsub.f32 %v1632, %v1654
        %v1663 = vsub.f32 %v1633, %v1647
        %v1664 = vsub.f32 %v1634, %v1654
        %v1665 = vsub.f32 %v1635, %v1647
        %v1666 = vsub.f32 %v1636, %v1654
        %v1667 = vsub.f32 %v1637, %v1647
        %v1668 = vsub.f32 %v1638, %v1654
        %v1669 = vsub.f32 %v1639, %v1647
        %v1670 = vsub.f32 %v1640, %v1654
        %v1671 = vmul.f32 %v1655, 1.442695
        %v1672 = vpow.pop %v1671
        %v1673 = vmul.f32 %v1656, 1.442695
        %v1674 = vpow.pop %v1673
        %v1675 = vmul.f32 %v1657, 1.442695
        %v1676 = vpow.pop %v1675
        %v1677 = vmul.f32 %v1658, 1.442695
        %v1678 = vpow.pop %v1677
        %v1679 = vmul.f32 %v1659, 1.442695
        %v1680 = vpow.pop %v1679
        %v1681 = vmul.f32 %v1660, 1.442695
        %v1682 = vpow.pop %v1681
        %v1683 = vmul.f32 %v1661, 1.442695
        %v1684 = vpow.pop %v1683
        %v1685 = vmul.f32 %v1662, 1.442695
        %v1686 = vpow.pop %v1685
        %v1687 = vmul.f32 %v1663, 1.442695
        %v1688 = vpow.pop %v1687
        %v1689 = vmul.f32 %v1664, 1.442695
        %v1690 = vpow.pop %v1689
        %v1691 = vmul.f32 %v1665, 1.442695
        %v1692 = vpow.pop %v1691
        %v1693 = vmul.f32 %v1666, 1.442695
        %v1694 = vpow.pop %v1693
        %v1695 = vmul.f32 %v1667, 1.442695
        %v1696 = vpow.pop %v1695
        %v1697 = vmul.f32 %v1668, 1.442695
        %v1698 = vpow.pop %v1697
        %v1699 = vmul.f32 %v1669, 1.442695
        %v1700 = vpow.pop %v1699
        %v1701 = vmul.f32 %v1670, 1.442695
        %v1702 = vpow.pop %v1701
        %v1703 = vadd.f32 %v1672, %v1676
        %v1704 = vadd.f32 %v1703, %v1680
        %v1705 = vadd.f32 %v1704, %v1684
        %v1706 = vadd.f32 %v1705, %v1688
        %v1707 = vadd.f32 %v1706, %v1692
        %v1708 = vadd.f32 %v1707, %v1696
        %v1709 = vadd.f32 %v1708, %v1700
        %v1710 = vadd.f32 %v1674, %v1678
        %v1711 = vadd.f32 %v1710, %v1682
        %v1712 = vadd.f32 %v1711, %v1686
        %v1713 = vadd.f32 %v1712, %v1690
        %v1714 = vadd.f32 %v1713, %v1694
        %v1715 = vadd.f32 %v1714, %v1698
        %v1716 = vadd.f32 %v1715, %v1702
        %v1717 = vrcp.pop %v1709
        %v1718 = vrcp.pop %v1716
        %v1719 = vmul.f32 %v1672, %v1717
        %v1720 = vmul.f32 %v1674, %v1718
        %v1721 = vmul.f32 %v1676, %v1717
        %v1722 = vmul.f32 %v1678, %v1718
        %v1723 = vmul.f32 %v1680, %v1717
        %v1724 = vmul.f32 %v1682, %v1718
        %v1725 = vmul.f32 %v1684, %v1717
        %v1726 = vmul.f32 %v1686, %v1718
        %v1727 = vmul.f32 %v1688, %v1717
        %v1728 = vmul.f32 %v1690, %v1718
        %v1729 = vmul.f32 %v1692, %v1717
        %v1730 = vmul.f32 %v1694, %v1718
        %v1731 = vmul.f32 %v1696, %v1717
        %v1732 = vmul.f32 %v1698, %v1718
        %v1733 = vmul.f32 %v1700, %v1717
        %v1734 = vmul.f32 %v1702, %v1718
        %v1735 = vmul.f32 %v1719, %v1623
        %v1736 = vmul.f32 %v1720, %v1624
        %v1737 = vmul.f32 %v1721, %v1623
        %v1738 = vmul.f32 %v1722, %v1624
        %v1739 = vmul.f32 %v1723, %v1623
        %v1740 = vmul.f32 %v1724, %v1624
        %v1741 = vmul.f32 %v1725, %v1623
        %v1742 = vmul.f32 %v1726, %v1624
        %v1743 = vmul.f32 %v1727, %v1623
        %v1744 = vmul.f32 %v1728, %v1624
        %v1745 = vmul.f32 %v1729, %v1623
        %v1746 = vmul.f32 %v1730, %v1624
        %v1747 = vmul.f32 %v1731, %v1623
        %v1748 = vmul.f32 %v1732, %v1624
        %v1749 = vmul.f32 %v1733, %v1623
        %v1750 = vmul.f32 %v1734, %v1624
        %s1751 = sld [smem:[#allocation2]]
        %v1752 = vstv %s1751
        %v1753 = vadd.f32 %v1735, %v1752
        %v1754 = vadd.f32 %v1736, %v1752
        %v1755 = vadd.f32 %v1737, %v1752
        %v1756 = vadd.f32 %v1738, %v1752
        %v1757 = vadd.f32 %v1739, %v1752
        %v1758 = vadd.f32 %v1740, %v1752
        %v1759 = vadd.f32 %v1741, %v1752
        %v1760 = vadd.f32 %v1742, %v1752
        %v1761 = vadd.f32 %v1743, %v1752
        %v1762 = vadd.f32 %v1744, %v1752
        %v1763 = vadd.f32 %v1745, %v1752
        %v1764 = vadd.f32 %v1746, %v1752
        %v1765 = vadd.f32 %v1747, %v1752
        %v1766 = vadd.f32 %v1748, %v1752
        %v1767 = vadd.f32 %v1749, %v1752
        %v1768 = vadd.f32 %v1750, %v1752
        %v1769 = vmax.f32 %v1753, 0.0
        %v1770 = vmax.f32 %v1754, 0.0
        %v1771 = vmax.f32 %v1755, 0.0
        %v1772 = vmax.f32 %v1756, 0.0
        %v1773 = vmax.f32 %v1757, 0.0
        %v1774 = vmax.f32 %v1758, 0.0
        %v1775 = vmax.f32 %v1759, 0.0
        %v1776 = vmax.f32 %v1760, 0.0
        %v1777 = vmax.f32 %v1761, 0.0
        %v1778 = vmax.f32 %v1762, 0.0
        %v1779 = vmax.f32 %v1763, 0.0
        %v1780 = vmax.f32 %v1764, 0.0
        %v1781 = vmax.f32 %v1765, 0.0
        %v1782 = vmax.f32 %v1766, 0.0
        %v1783 = vmax.f32 %v1767, 0.0
        %v1784 = vmax.f32 %v1768, 0.0
        %v1785 = vpack.c.bf16 %v1770, %v1769
        %v1786 = vpack.c.bf16 %v1772, %v1771
        %v1787 = vpack.c.bf16 %v1774, %v1773
        %v1788 = vpack.c.bf16 %v1776, %v1775
        %v1789 = vpack.c.bf16 %v1778, %v1777
        %v1790 = vpack.c.bf16 %v1780, %v1779
        %v1791 = vpack.c.bf16 %v1782, %v1781
        %v1792 = vpack.c.bf16 %v1784, %v1783
        %v1793 = vld [vmem:[#allocation13] sm:$0xf]
        %v1794 = vld [vmem:[#allocation13 + $0x4] sm:$0xf]
        %v1795 = vld [vmem:[#allocation13 + $0x8] sm:$0xf]
        %v1796 = vld [vmem:[#allocation13 + $0xc] sm:$0xf]
        %v1797 = vld [vmem:[#allocation13 + $0x10] sm:$0xf]
        %v1798 = vld [vmem:[#allocation13 + $0x14] sm:$0xf]
        %v1799 = vld [vmem:[#allocation13 + $0x18] sm:$0xf]
        %v1800 = vld [vmem:[#allocation13 + $0x1c] sm:$0xf]
        %v1801 = vld [vmem:[#allocation13 + $0x20] sm:$0xf]
        %v1802 = vld [vmem:[#allocation13 + $0x24] sm:$0xf]
        %v1803 = vld [vmem:[#allocation13 + $0x28] sm:$0xf]
        %v1804 = vld [vmem:[#allocation13 + $0x2c] sm:$0xf]
        %v1805 = vld [vmem:[#allocation13 + $0x30] sm:$0xf]
        %v1806 = vld [vmem:[#allocation13 + $0x34] sm:$0xf]
        %v1807 = vld [vmem:[#allocation13 + $0x38] sm:$0xf]
        %v1808 = vld [vmem:[#allocation13 + $0x3c] sm:$0xf]
        %v1825 = vunpack.c.l.b16 %v1793
        %v1826 = vunpack.c.l.b16 %v1794
        %v1827 = vunpack.c.l.b16 %v1795
        %v1828 = vunpack.c.l.b16 %v1796
        %v1829 = vunpack.c.l.b16 %v1797
        %v1830 = vunpack.c.l.b16 %v1798
        %v1831 = vunpack.c.l.b16 %v1799
        %v1832 = vunpack.c.l.b16 %v1800
        %v1833 = vunpack.c.l.b16 %v1801
        %v1834 = vunpack.c.l.b16 %v1802
        %v1835 = vunpack.c.l.b16 %v1803
        %v1836 = vunpack.c.l.b16 %v1804
        %v1837 = vunpack.c.l.b16 %v1805
        %v1838 = vunpack.c.l.b16 %v1806
        %v1839 = vunpack.c.l.b16 %v1807
        %v1840 = vunpack.c.l.b16 %v1808
        %v1841 = vpack.c.b16 %v1826, %v1825
        %v1842 = vpack.c.b16 %v1828, %v1827
        %v1843 = vpack.c.b16 %v1830, %v1829
        %v1844 = vpack.c.b16 %v1832, %v1831
        %v1845 = vpack.c.b16 %v1834, %v1833
        %v1846 = vpack.c.b16 %v1836, %v1835
        %v1847 = vpack.c.b16 %v1838, %v1837
        %v1848 = vpack.c.b16 %v1840, %v1839
        %1857 = vmatprep.subr.bf16.mxu0 0
        %1858 = vmatpush1.bf16.msra.mxu0 %v1785
        %1859 = vmatprep.subr.bf16.mxu0 0
        %1860 = vmatpush1.bf16.msra.mxu0 %v1786
        %1861 = vmatprep.subr.bf16.mxu0 0
        %1862 = vmatpush1.bf16.msra.mxu0 %v1787
        %1863 = vmatprep.subr.bf16.mxu0 0
        %1864 = vmatpush1.bf16.msra.mxu0 %v1788
        %1865 = vmatprep.subr.bf16.mxu0 0
        %1866 = vmatpush1.bf16.msra.mxu0 %v1789
        %1867 = vmatprep.subr.bf16.mxu0 0
        %1868 = vmatpush1.bf16.msra.mxu0 %v1790
        %1869 = vmatprep.subr.bf16.mxu0 0
        %1870 = vmatpush1.bf16.msra.mxu0 %v1791
        %1871 = vmatprep.subr.bf16.mxu0 0
        %1872 = vmatpush1.bf16.msra.mxu0 %v1792
        %1873 = vmatprep.subr.bf16.mxu0 0
        %1874 = vmatpush1.bf16.msra.mxu0 0
        %1875 = vmatprep.subr.bf16.mxu0 0
        %1876 = vmatpush1.bf16.msra.mxu0 0
        %1877 = vmatprep.subr.bf16.mxu0 0
        %1878 = vmatpush1.bf16.msra.mxu0 0
        %1879 = vmatprep.subr.bf16.mxu0 0
        %1880 = vmatpush1.bf16.msra.mxu0 0
        %1881 = vmatprep.subr.bf16.mxu0 0
        %1882 = vmatpush1.bf16.msra.mxu0 0
        %1883 = vmatprep.subr.bf16.mxu0 0
        %1884 = vmatpush1.bf16.msra.mxu0 0
        %1885 = vmatprep.subr.bf16.mxu0 0
        %1886 = vmatpush1.bf16.msra.mxu0 0
        %1887 = vmatprep.subr.bf16.mxu0 0
        %1888 = vmatpush1.bf16.msra.mxu0 0
        %1889 = vmatprep.mubr.bf16.mxu0 0
        %1890 = vmatmul.mubr.bf16.gmra.mrb[0].mxu0 %v1841
        %v1891 = vpop.f32.mrb[0].mxu0
        %v1892 = vadd.f32 0.0, %v1891
        %v1893 = vpop.f32.mrb[0].mxu0
        %v1894 = vpop.f32.mrb[0].mxu0
        %v1895 = vadd.f32 0.0, %v1894
        %v1896 = vpop.f32.mrb[0].mxu0
        %1897 = vmatprep.mubr.bf16.mxu0 0
        %1898 = vmatmul.mubr.bf16.gmra.mrb[0].mxu0 %v1842
        %v1899 = vpop.f32.mrb[0].mxu0
        %v1900 = vadd.f32 0.0, %v1899
        %v1901 = vpop.f32.mrb[0].mxu0
        %v1902 = vpop.f32.mrb[0].mxu0
        %v1903 = vadd.f32 0.0, %v1902
        %v1904 = vpop.f32.mrb[0].mxu0
        %1905 = vmatprep.mubr.bf16.mxu0 0
        %1906 = vmatmul.mubr.bf16.gmra.mrb[0].mxu0 %v1843
        %v1907 = vpop.f32.mrb[0].mxu0
        %v1908 = vadd.f32 0.0, %v1907
        %v1909 = vpop.f32.mrb[0].mxu0
        %v1910 = vpop.f32.mrb[0].mxu0
        %v1911 = vadd.f32 0.0, %v1910
        %v1912 = vpop.f32.mrb[0].mxu0
        %1913 = vmatprep.mubr.bf16.mxu0 0
        %1914 = vmatmul.mubr.bf16.gmra.mrb[0].mxu0 %v1844
        %v1915 = vpop.f32.mrb[0].mxu0
        %v1916 = vadd.f32 0.0, %v1915
        %v1917 = vpop.f32.mrb[0].mxu0
        %v1918 = vpop.f32.mrb[0].mxu0
        %v1919 = vadd.f32 0.0, %v1918
        %v1920 = vpop.f32.mrb[0].mxu0
        %1921 = vmatprep.mubr.bf16.mxu0 0
        %1922 = vmatmul.mubr.bf16.gmra.mrb[0].mxu0 %v1845
        %v1923 = vpop.f32.mrb[0].mxu0
        %v1924 = vadd.f32 0.0, %v1923
        %v1925 = vpop.f32.mrb[0].mxu0
        %v1926 = vpop.f32.mrb[0].mxu0
        %v1927 = vadd.f32 0.0, %v1926
        %v1928 = vpop.f32.mrb[0].mxu0
        %1929 = vmatprep.mubr.bf16.mxu0 0
        %1930 = vmatmul.mubr.bf16.gmra.mrb[0].mxu0 %v1846
        %v1931 = vpop.f32.mrb[0].mxu0
        %v1932 = vadd.f32 0.0, %v1931
        %v1933 = vpop.f32.mrb[0].mxu0
        %v1934 = vpop.f32.mrb[0].mxu0
        %v1935 = vadd.f32 0.0, %v1934
        %v1936 = vpop.f32.mrb[0].mxu0
        %1937 = vmatprep.mubr.bf16.mxu0 0
        %1938 = vmatmul.mubr.bf16.gmra.mrb[0].mxu0 %v1847
        %v1939 = vpop.f32.mrb[0].mxu0
        %v1940 = vadd.f32 0.0, %v1939
        %v1941 = vpop.f32.mrb[0].mxu0
        %v1942 = vpop.f32.mrb[0].mxu0
        %v1943 = vadd.f32 0.0, %v1942
        %v1944 = vpop.f32.mrb[0].mxu0
        %1945 = vmatprep.mubr.bf16.mxu0 0
        %1946 = vmatmul.mubr.bf16.gmra.mrb[0].mxu0 %v1848
        %v1947 = vpop.f32.mrb[0].mxu0
        %v1948 = vadd.f32 0.0, %v1947
        %v1949 = vpop.f32.mrb[0].mxu0
        %v1950 = vpop.f32.mrb[0].mxu0
        %v1951 = vadd.f32 0.0, %v1950
        %v1952 = vpop.f32.mrb[0].mxu0
        %1953 = vdwg.mxu0
        %v1954 = vld [vmem:[%s608] sm:$0xff]
        %v1955 = vld [vmem:[%s608 + $0x8] sm:$0xff]
        %s1956 = sld [smem:[#allocation11]]
        %v1957 = vstv %s1956
        %v1958 = vadd.f32 %v1892, %v1957
        %v1959 = vadd.f32 %v1895, %v1957
        %v1960 = vsub.f32 %v1954, %v1958
        %v1961 = vsub.f32 %v1955, %v1959
        %1962 = vst [vmem:[%s694] sm:$0xff] %v1960
        %1963 = vst [vmem:[%s694 + $0x8] sm:$0xff] %v1961
        %s1964 = scalar_lea.vmem %s608, 16 [#allocation8]
        %v1965 = vld [vmem:[%s1964] sm:$0xff]
        %v1966 = vld [vmem:[%s1964 + $0x8] sm:$0xff]
        %s1967 = sld [smem:[#allocation11 + $0x1]]
        %v1968 = vstv %s1967
        %v1969 = vadd.f32 %v1900, %v1968
        %v1970 = vadd.f32 %v1903, %v1968
        %v1971 = vsub.f32 %v1965, %v1969
        %v1972 = vsub.f32 %v1966, %v1970
        %s1973 = scalar_lea.vmem %s694, 16 [#allocation23]
        %1974 = vst [vmem:[%s1973] sm:$0xff] %v1971
        %1975 = vst [vmem:[%s1973 + $0x8] sm:$0xff] %v1972
        %s1976 = scalar_lea.vmem %s608, 32 [#allocation8]
        %v1977 = vld [vmem:[%s1976] sm:$0xff]
        %v1978 = vld [vmem:[%s1976 + $0x8] sm:$0xff]
        %s1979 = sld [smem:[#allocation11 + $0x2]]
        %v1980 = vstv %s1979
        %v1981 = vadd.f32 %v1908, %v1980
        %v1982 = vadd.f32 %v1911, %v1980
        %v1983 = vsub.f32 %v1977, %v1981
        %v1984 = vsub.f32 %v1978, %v1982
        %s1985 = scalar_lea.vmem %s694, 32 [#allocation23]
        %1986 = vst [vmem:[%s1985] sm:$0xff] %v1983
        %1987 = vst [vmem:[%s1985 + $0x8] sm:$0xff] %v1984
        %s1988 = scalar_lea.vmem %s608, 48 [#allocation8]
        %v1989 = vld [vmem:[%s1988] sm:$0xff]
        %v1990 = vld [vmem:[%s1988 + $0x8] sm:$0xff]
        %s1991 = sld [smem:[#allocation11 + $0x3]]
        %v1992 = vstv %s1991
        %v1993 = vadd.f32 %v1916, %v1992
        %v1994 = vadd.f32 %v1919, %v1992
        %v1995 = vsub.f32 %v1989, %v1993
        %v1996 = vsub.f32 %v1990, %v1994
        %s1997 = scalar_lea.vmem %s694, 48 [#allocation23]
        %1998 = vst [vmem:[%s1997] sm:$0xff] %v1995
        %1999 = vst [vmem:[%s1997 + $0x8] sm:$0xff] %v1996
        %s2000 = scalar_lea.vmem %s608, 64 [#allocation8]
        %v2001 = vld [vmem:[%s2000] sm:$0xff]
        %v2002 = vld [vmem:[%s2000 + $0x8] sm:$0xff]
        %s2003 = sld [smem:[#allocation11 + $0x4]]
        %v2004 = vstv %s2003
        %v2005 = vadd.f32 %v1924, %v2004
        %v2006 = vadd.f32 %v1927, %v2004
        %v2007 = vsub.f32 %v2001, %v2005
        %v2008 = vsub.f32 %v2002, %v2006
        %s2009 = scalar_lea.vmem %s694, 64 [#allocation23]
        %2010 = vst [vmem:[%s2009] sm:$0xff] %v2007
        %2011 = vst [vmem:[%s2009 + $0x8] sm:$0xff] %v2008
        %s2012 = scalar_lea.vmem %s608, 80 [#allocation8]
        %v2013 = vld [vmem:[%s2012] sm:$0xff]
        %v2014 = vld [vmem:[%s2012 + $0x8] sm:$0xff]
        %s2015 = sld [smem:[#allocation11 + $0x5]]
        %v2016 = vstv %s2015
        %v2017 = vadd.f32 %v1932, %v2016
        %v2018 = vadd.f32 %v1935, %v2016
        %v2019 = vsub.f32 %v2013, %v2017
        %v2020 = vsub.f32 %v2014, %v2018
        %s2021 = scalar_lea.vmem %s694, 80 [#allocation23]
        %2022 = vst [vmem:[%s2021] sm:$0xff] %v2019
        %2023 = vst [vmem:[%s2021 + $0x8] sm:$0xff] %v2020
        %s2024 = scalar_lea.vmem %s608, 96 [#allocation8]
        %v2025 = vld [vmem:[%s2024] sm:$0xff]
        %v2026 = vld [vmem:[%s2024 + $0x8] sm:$0xff]
        %s2027 = sld [smem:[#allocation11 + $0x6]]
        %v2028 = vstv %s2027
        %v2029 = vadd.f32 %v1940, %v2028
        %v2030 = vadd.f32 %v1943, %v2028
        %v2031 = vsub.f32 %v2025, %v2029
        %v2032 = vsub.f32 %v2026, %v2030
        %s2033 = scalar_lea.vmem %s694, 96 [#allocation23]
        %2034 = vst [vmem:[%s2033] sm:$0xff] %v2031
        %2035 = vst [vmem:[%s2033 + $0x8] sm:$0xff] %v2032
        %s2036 = scalar_lea.vmem %s608, 112 [#allocation8]
        %v2037 = vld [vmem:[%s2036] sm:$0xff]
        %v2038 = vld [vmem:[%s2036 + $0x8] sm:$0xff]
        %s2039 = sld [smem:[#allocation11 + $0x7]]
        %v2040 = vstv %s2039
        %v2041 = vadd.f32 %v1948, %v2040
        %v2042 = vadd.f32 %v1951, %v2040
        %v2043 = vsub.f32 %v2037, %v2041
        %v2044 = vsub.f32 %v2038, %v2042
        %s2045 = scalar_lea.vmem %s694, 112 [#allocation23]
        %2046 = vst [vmem:[%s2045] sm:$0xff] %v2043
        %2047 = vst [vmem:[%s2045 + $0x8] sm:$0xff] %v2044
        %s2048 = sld [smem:[#allocation17]]
        %v2049 = vstv %s2048
        %v2050 = vmul.f32 %v2049, %v704
        %v2051 = vmul.f32 %v2049, %v705
        %v2052 = vmul.f32 %v2049, %v706
        %v2053 = vmul.f32 %v2049, %v707
        %v2054 = vmul.f32 %v2049, %v708
        %v2055 = vmul.f32 %v2049, %v709
        %s2056 = sld [smem:[#allocation17 + $0x1]]
        %v2057 = vstv %s2056
        %v2058 = vmul.f32 %v2057, %v713
        %v2059 = vmul.f32 %v2057, %v714
        %v2060 = vmul.f32 %v2057, %v715
        %v2061 = vmul.f32 %v2057, %v716
        %v2062 = vmul.f32 %v2057, %v717
        %v2063 = vmul.f32 %v2057, %v718
        %v2064 = vadd.f32 %v2050, %v2058
        %v2065 = vadd.f32 %v2051, %v2059
        %v2066 = vadd.f32 %v2052, %v2060
        %v2067 = vadd.f32 %v2053, %v2061
        %v2068 = vadd.f32 %v2054, %v2062
        %v2069 = vadd.f32 %v2055, %v2063
        %s2070 = sld [smem:[#allocation17 + $0x2]]
        %v2071 = vstv %s2070
        %v2072 = vmul.f32 %v2071, %v722
        %v2073 = vmul.f32 %v2071, %v723
        %v2074 = vmul.f32 %v2071, %v724
        %v2075 = vmul.f32 %v2071, %v725
        %v2076 = vmul.f32 %v2071, %v726
        %v2077 = vmul.f32 %v2071, %v727
        %v2078 = vadd.f32 %v2064, %v2072
        %v2079 = vadd.f32 %v2065, %v2073
        %v2080 = vadd.f32 %v2066, %v2074
        %v2081 = vadd.f32 %v2067, %v2075
        %v2082 = vadd.f32 %v2068, %v2076
        %v2083 = vadd.f32 %v2069, %v2077
        %v2084 = vpack.c.bf16 %v2080, %v2078
        %v2085 = vpack.c.bf16 %v2081, %v2079
        %v2086 = vpack.c.bf16 %v2082, %v2082
        %v2087 = vpack.c.bf16 %v2083, %v2083
        %v2088 = vld [vmem:[#allocation22] sm:$0xf]
        %v2089 = vld [vmem:[#allocation22 + $0x4] sm:$0xf]
        %v2090 = vld [vmem:[#allocation22 + $0x8] sm:$0xf]
        %v2091 = vld [vmem:[#allocation22 + $0xc] sm:$0xf]
        %v2092 = vld [vmem:[#allocation22 + $0x10] sm:$0xf]
        %v2093 = vld [vmem:[#allocation22 + $0x14] sm:$0xf]
        %v2094 = vld [vmem:[#allocation22 + $0x18] sm:$0xf]
        %v2095 = vld [vmem:[#allocation22 + $0x1c] sm:$0xf]
        %v2096 = vld [vmem:[#allocation22 + $0x20] sm:$0xf]
        %v2097 = vld [vmem:[#allocation22 + $0x24] sm:$0xf]
        %v2098 = vld [vmem:[#allocation22 + $0x28] sm:$0xf]
        %v2099 = vld [vmem:[#allocation22 + $0x2c] sm:$0xf]
        %v2100 = vld [vmem:[#allocation22 + $0x30] sm:$0xf]
        %v2101 = vld [vmem:[#allocation22 + $0x34] sm:$0xf]
        %v2102 = vld [vmem:[#allocation22 + $0x38] sm:$0xf]
        %v2103 = vld [vmem:[#allocation22 + $0x3c] sm:$0xf]
        %v2104 = vld [vmem:[#allocation22 + $0x40] sm:$0xf]
        %v2122 = vunpack.c.l.b16 %v2088
        %v2123 = vunpack.c.l.b16 %v2089
        %v2124 = vunpack.c.l.b16 %v2090
        %v2125 = vunpack.c.l.b16 %v2091
        %v2126 = vunpack.c.l.b16 %v2092
        %v2127 = vunpack.c.l.b16 %v2093
        %v2128 = vunpack.c.l.b16 %v2094
        %v2129 = vunpack.c.l.b16 %v2095
        %v2130 = vunpack.c.l.b16 %v2096
        %v2131 = vunpack.c.l.b16 %v2097
        %v2132 = vunpack.c.l.b16 %v2098
        %v2133 = vunpack.c.l.b16 %v2099
        %v2134 = vunpack.c.l.b16 %v2100
        %v2135 = vunpack.c.l.b16 %v2101
        %v2136 = vunpack.c.l.b16 %v2102
        %v2137 = vunpack.c.l.b16 %v2103
        %v2138 = vunpack.c.l.b16 %v2104
        %v2139 = vpack.c.b16 %v2123, %v2122
        %v2140 = vpack.c.b16 %v2125, %v2124
        %v2141 = vpack.c.b16 %v2127, %v2126
        %v2142 = vpack.c.b16 %v2129, %v2128
        %v2143 = vpack.c.b16 %v2131, %v2130
        %v2144 = vpack.c.b16 %v2133, %v2132
        %v2145 = vpack.c.b16 %v2135, %v2134
        %v2146 = vpack.c.b16 %v2137, %v2136
        %v2147 = vpack.c.b16 %v2138, %v2138
        %v2157 = vsel %vm836, %v2085, 0
        %v2160 = vsel %vm836, %v2087, 0
        %v2163 = vsel %vm843, %v2147, 0
        %2165 = vmatprep.subr.bf16.mxu0 0
        %2166 = vmatpush1.bf16.msra.mxu0 %v2139
        %2167 = vmatprep.subr.bf16.mxu0 0
        %2168 = vmatpush1.bf16.msra.mxu0 %v2140
        %2169 = vmatprep.subr.bf16.mxu0 0
        %2170 = vmatpush1.bf16.msra.mxu0 %v2141
        %2171 = vmatprep.subr.bf16.mxu0 0
        %2172 = vmatpush1.bf16.msra.mxu0 %v2142
        %2173 = vmatprep.subr.bf16.mxu0 0
        %2174 = vmatpush1.bf16.msra.mxu0 %v2143
        %2175 = vmatprep.subr.bf16.mxu0 0
        %2176 = vmatpush1.bf16.msra.mxu0 %v2144
        %2177 = vmatprep.subr.bf16.mxu0 0
        %2178 = vmatpush1.bf16.msra.mxu0 %v2145
        %2179 = vmatprep.subr.bf16.mxu0 0
        %2180 = vmatpush1.bf16.msra.mxu0 %v2146
        %2181 = vmatprep.subr.bf16.mxu0 0
        %2182 = vmatpush1.bf16.msra.mxu0 %v2163
        %2183 = vmatprep.subr.bf16.mxu0 0
        %2184 = vmatpush1.bf16.msra.mxu0 0
        %2185 = vmatprep.subr.bf16.mxu0 0
        %2186 = vmatpush1.bf16.msra.mxu0 0
        %2187 = vmatprep.subr.bf16.mxu0 0
        %2188 = vmatpush1.bf16.msra.mxu0 0
        %2189 = vmatprep.subr.bf16.mxu0 0
        %2190 = vmatpush1.bf16.msra.mxu0 0
        %2191 = vmatprep.subr.bf16.mxu0 0
        %2192 = vmatpush1.bf16.msra.mxu0 0
        %2193 = vmatprep.subr.bf16.mxu0 0
        %2194 = vmatpush1.bf16.msra.mxu0 0
        %2195 = vmatprep.subr.bf16.mxu0 0
        %2196 = vmatpush1.bf16.msra.mxu0 0
        %2197 = vmatprep.mubr.bf16.mxu0 %v2157
        %2198 = vmatmul.mubr.bf16.gmra.mrb[0].mxu0 %v2084
        %v2199 = vpop.f32.mrb[0].mxu0
        %v2200 = vadd.f32 0.0, %v2199
        %v2201 = vpop.f32.mrb[0].mxu0
        %v2202 = vpop.f32.mrb[0].mxu0
        %v2203 = vadd.f32 0.0, %v2202
        %v2204 = vpop.f32.mrb[0].mxu0
        %2205 = vmatprep.mubr.bf16.mxu0 %v2160
        %2206 = vmatmul.mubr.bf16.gmra.mrb[0].mxu0 %v2086
        %v2207 = vpop.f32.mrb[0].mxu0
        %v2208 = vadd.f32 0.0, %v2207
        %v2209 = vpop.f32.mrb[0].mxu0
        %v2210 = vpop.f32.mrb[0].mxu0
        %v2211 = vpop.f32.mrb[0].mxu0
        %2212 = vdwg.mxu0
        %v2213 = vld [vmem:[%s13] sm:$0xf]
        %v2214 = vld [vmem:[%s13 + $0x4] sm:$0xf]
        %v2215 = vpack.c.bf16 %v2203, %v2200
        %v2216 = vpack.c.bf16 %v2208, %v2208
        %s2217 = sld [smem:[#allocation17 + $0x3]]
        %v2218 = vstv %s2217
        %v2219 = vmul.f32 %v2218, %v704
        %v2220 = vmul.f32 %v2218, %v705
        %v2221 = vmul.f32 %v2218, %v706
        %v2222 = vmul.f32 %v2218, %v707
        %v2223 = vmul.f32 %v2218, %v708
        %v2224 = vmul.f32 %v2218, %v709
        %s2225 = sld [smem:[#allocation17 + $0x4]]
        %v2226 = vstv %s2225
        %v2227 = vmul.f32 %v2226, %v713
        %v2228 = vmul.f32 %v2226, %v714
        %v2229 = vmul.f32 %v2226, %v715
        %v2230 = vmul.f32 %v2226, %v716
        %v2231 = vmul.f32 %v2226, %v717
        %v2232 = vmul.f32 %v2226, %v718
        %v2233 = vadd.f32 %v2219, %v2227
        %v2234 = vadd.f32 %v2220, %v2228
        %v2235 = vadd.f32 %v2221, %v2229
        %v2236 = vadd.f32 %v2222, %v2230
        %v2237 = vadd.f32 %v2223, %v2231
        %v2238 = vadd.f32 %v2224, %v2232
        %s2239 = sld [smem:[#allocation17 + $0x5]]
        %v2240 = vstv %s2239
        %v2241 = vmul.f32 %v2240, %v722
        %v2242 = vmul.f32 %v2240, %v723
        %v2243 = vmul.f32 %v2240, %v724
        %v2244 = vmul.f32 %v2240, %v725
        %v2245 = vmul.f32 %v2240, %v726
        %v2246 = vmul.f32 %v2240, %v727
        %v2247 = vadd.f32 %v2233, %v2241
        %v2248 = vadd.f32 %v2234, %v2242
        %v2249 = vadd.f32 %v2235, %v2243
        %v2250 = vadd.f32 %v2236, %v2244
        %v2251 = vadd.f32 %v2237, %v2245
        %v2252 = vadd.f32 %v2238, %v2246
        %v2253 = vpack.c.bf16 %v2249, %v2247
        %v2254 = vpack.c.bf16 %v2250, %v2248
        %v2255 = vpack.c.bf16 %v2251, %v2251
        %v2256 = vpack.c.bf16 %v2252, %v2252
        %s2257 = scalar_lea.vmem [#allocation22], 68
        %v2258 = vld [vmem:[%s2257] sm:$0xf]
        %v2259 = vld [vmem:[%s2257 + $0x4] sm:$0xf]
        %v2260 = vld [vmem:[%s2257 + $0x8] sm:$0xf]
        %v2261 = vld [vmem:[%s2257 + $0xc] sm:$0xf]
        %v2262 = vld [vmem:[%s2257 + $0x10] sm:$0xf]
        %v2263 = vld [vmem:[%s2257 + $0x14] sm:$0xf]
        %v2264 = vld [vmem:[%s2257 + $0x18] sm:$0xf]
        %v2265 = vld [vmem:[%s2257 + $0x1c] sm:$0xf]
        %v2266 = vld [vmem:[%s2257 + $0x20] sm:$0xf]
        %v2267 = vld [vmem:[%s2257 + $0x24] sm:$0xf]
        %v2268 = vld [vmem:[%s2257 + $0x28] sm:$0xf]
        %v2269 = vld [vmem:[%s2257 + $0x2c] sm:$0xf]
        %v2270 = vld [vmem:[%s2257 + $0x30] sm:$0xf]
        %v2271 = vld [vmem:[%s2257 + $0x34] sm:$0xf]
        %v2272 = vld [vmem:[%s2257 + $0x38] sm:$0xf]
        %v2273 = vld [vmem:[%s2257 + $0x3c] sm:$0xf]
        %v2274 = vld [vmem:[%s2257 + $0x40] sm:$0xf]
        %v2292 = vunpack.c.l.b16 %v2258
        %v2293 = vunpack.c.l.b16 %v2259
        %v2294 = vunpack.c.l.b16 %v2260
        %v2295 = vunpack.c.l.b16 %v2261
        %v2296 = vunpack.c.l.b16 %v2262
        %v2297 = vunpack.c.l.b16 %v2263
        %v2298 = vunpack.c.l.b16 %v2264
        %v2299 = vunpack.c.l.b16 %v2265
        %v2300 = vunpack.c.l.b16 %v2266
        %v2301 = vunpack.c.l.b16 %v2267
        %v2302 = vunpack.c.l.b16 %v2268
        %v2303 = vunpack.c.l.b16 %v2269
        %v2304 = vunpack.c.l.b16 %v2270
        %v2305 = vunpack.c.l.b16 %v2271
        %v2306 = vunpack.c.l.b16 %v2272
        %v2307 = vunpack.c.l.b16 %v2273
        %v2308 = vunpack.c.l.b16 %v2274
        %v2309 = vpack.c.b16 %v2293, %v2292
        %v2310 = vpack.c.b16 %v2295, %v2294
        %v2311 = vpack.c.b16 %v2297, %v2296
        %v2312 = vpack.c.b16 %v2299, %v2298
        %v2313 = vpack.c.b16 %v2301, %v2300
        %v2314 = vpack.c.b16 %v2303, %v2302
        %v2315 = vpack.c.b16 %v2305, %v2304
        %v2316 = vpack.c.b16 %v2307, %v2306
        %v2317 = vpack.c.b16 %v2308, %v2308
        %v2327 = vsel %vm836, %v2254, 0
        %v2330 = vsel %vm836, %v2256, 0
        %v2333 = vsel %vm843, %v2317, 0
        %2335 = vmatprep.subr.bf16.mxu0 0
        %2336 = vmatpush1.bf16.msra.mxu0 %v2309
        %2337 = vmatprep.subr.bf16.mxu0 0
        %2338 = vmatpush1.bf16.msra.mxu0 %v2310
        %2339 = vmatprep.subr.bf16.mxu0 0
        %2340 = vmatpush1.bf16.msra.mxu0 %v2311
        %2341 = vmatprep.subr.bf16.mxu0 0
        %2342 = vmatpush1.bf16.msra.mxu0 %v2312
        %2343 = vmatprep.subr.bf16.mxu0 0
        %2344 = vmatpush1.bf16.msra.mxu0 %v2313
        %2345 = vmatprep.subr.bf16.mxu0 0
        %2346 = vmatpush1.bf16.msra.mxu0 %v2314
        %2347 = vmatprep.subr.bf16.mxu0 0
        %2348 = vmatpush1.bf16.msra.mxu0 %v2315
        %2349 = vmatprep.subr.bf16.mxu0 0
        %2350 = vmatpush1.bf16.msra.mxu0 %v2316
        %2351 = vmatprep.subr.bf16.mxu0 0
        %2352 = vmatpush1.bf16.msra.mxu0 %v2333
        %2353 = vmatprep.subr.bf16.mxu0 0
        %2354 = vmatpush1.bf16.msra.mxu0 0
        %2355 = vmatprep.subr.bf16.mxu0 0
        %2356 = vmatpush1.bf16.msra.mxu0 0
        %2357 = vmatprep.subr.bf16.mxu0 0
        %2358 = vmatpush1.bf16.msra.mxu0 0
        %2359 = vmatprep.subr.bf16.mxu0 0
        %2360 = vmatpush1.bf16.msra.mxu0 0
        %2361 = vmatprep.subr.bf16.mxu0 0
        %2362 = vmatpush1.bf16.msra.mxu0 0
        %2363 = vmatprep.subr.bf16.mxu0 0
        %2364 = vmatpush1.bf16.msra.mxu0 0
        %2365 = vmatprep.subr.bf16.mxu0 0
        %2366 = vmatpush1.bf16.msra.mxu0 0
        %2367 = vmatprep.mubr.bf16.mxu0 %v2327
        %2368 = vmatmul.mubr.bf16.gmra.mrb[0].mxu0 %v2253
        %v2369 = vpop.f32.mrb[0].mxu0
        %v2370 = vadd.f32 0.0, %v2369
        %v2371 = vpop.f32.mrb[0].mxu0
        %v2372 = vpop.f32.mrb[0].mxu0
        %v2373 = vadd.f32 0.0, %v2372
        %v2374 = vpop.f32.mrb[0].mxu0
        %2375 = vmatprep.mubr.bf16.mxu0 %v2330
        %2376 = vmatmul.mubr.bf16.gmra.mrb[0].mxu0 %v2255
        %v2377 = vpop.f32.mrb[0].mxu0
        %v2378 = vadd.f32 0.0, %v2377
        %v2379 = vpop.f32.mrb[0].mxu0
        %v2380 = vpop.f32.mrb[0].mxu0
        %v2381 = vpop.f32.mrb[0].mxu0
        %2382 = vdwg.mxu0
        %s2383 = scalar_lea.vmem %s13, 8
        %v2384 = vld [vmem:[%s2383] sm:$0xf]
        %v2385 = vld [vmem:[%s2383 + $0x4] sm:$0xf]
        %v2386 = vpack.c.bf16 %v2373, %v2370
        %v2387 = vpack.c.bf16 %v2378, %v2378
        %v2390 = vunpack.c.l.b16 %v2384
        %v2391 = vunpack.c.l.b16 %v2385
        %v2392 = vpack.c.b16 %v2391, %v2390
        %v2394 = vsel %vm1075, %v2392, 0
        %v2397 = vsel %vm843, %v2387, 0
        %2399 = vmatprep.subr.bf16.mxu0 0
        %2400 = vmatpush1.bf16.msra.mxu0 %v2386
        %2401 = vmatprep.subr.bf16.mxu0 0
        %2402 = vmatpush1.bf16.msra.mxu0 %v2397
        %2403 = vmatprep.subr.bf16.mxu0 0
        %2404 = vmatpush1.bf16.msra.mxu0 0
        %2405 = vmatprep.subr.bf16.mxu0 0
        %2406 = vmatpush1.bf16.msra.mxu0 0
        %2407 = vmatprep.subr.bf16.mxu0 0
        %2408 = vmatpush1.bf16.msra.mxu0 0
        %2409 = vmatprep.subr.bf16.mxu0 0
        %2410 = vmatpush1.bf16.msra.mxu0 0
        %2411 = vmatprep.subr.bf16.mxu0 0
        %2412 = vmatpush1.bf16.msra.mxu0 0
        %2413 = vmatprep.subr.bf16.mxu0 0
        %2414 = vmatpush1.bf16.msra.mxu0 0
        %2415 = vmatprep.subr.bf16.mxu0 0
        %2416 = vmatpush1.bf16.msra.mxu0 0
        %2417 = vmatprep.subr.bf16.mxu0 0
        %2418 = vmatpush1.bf16.msra.mxu0 0
        %2419 = vmatprep.subr.bf16.mxu0 0
        %2420 = vmatpush1.bf16.msra.mxu0 0
        %2421 = vmatprep.subr.bf16.mxu0 0
        %2422 = vmatpush1.bf16.msra.mxu0 0
        %2423 = vmatprep.subr.bf16.mxu0 0
        %2424 = vmatpush1.bf16.msra.mxu0 0
        %2425 = vmatprep.subr.bf16.mxu0 0
        %2426 = vmatpush1.bf16.msra.mxu0 0
        %2427 = vmatprep.subr.bf16.mxu0 0
        %2428 = vmatpush1.bf16.msra.mxu0 0
        %2429 = vmatprep.subr.bf16.mxu0 0
        %2430 = vmatpush1.bf16.msra.mxu0 0
        %2431 = vmatprep.mubr.bf16.mxu0 0
        %2432 = vmatmul.mubr.bf16.gmra.mrb[0].mxu0 %v2394
        %v2433 = vpop.f32.mrb[0].mxu0
        %v2434 = vadd.f32 0.0, %v2433
        %v2435 = vpop.f32.mrb[0].mxu0
        %v2436 = vpop.f32.mrb[0].mxu0
        %v2437 = vadd.f32 0.0, %v2436
        %v2438 = vpop.f32.mrb[0].mxu0
        %2439 = vdwg.mxu0
        %v2442 = vunpack.c.l.b16 %v2213
        %v2443 = vunpack.c.l.b16 %v2214
        %v2444 = vpack.c.b16 %v2443, %v2442
        %v2446 = vsel %vm1075, %v2444, 0
        %v2449 = vsel %vm843, %v2216, 0
        %2451 = vmatprep.subr.bf16.mxu0 0
        %2452 = vmatpush1.bf16.msra.mxu0 %v2215
        %2453 = vmatprep.subr.bf16.mxu0 0
        %2454 = vmatpush1.bf16.msra.mxu0 %v2449
        %2455 = vmatprep.subr.bf16.mxu0 0
        %2456 = vmatpush1.bf16.msra.mxu0 0
        %2457 = vmatprep.subr.bf16.mxu0 0
        %2458 = vmatpush1.bf16.msra.mxu0 0
        %2459 = vmatprep.subr.bf16.mxu0 0
        %2460 = vmatpush1.bf16.msra.mxu0 0
        %2461 = vmatprep.subr.bf16.mxu0 0
        %2462 = vmatpush1.bf16.msra.mxu0 0
        %2463 = vmatprep.subr.bf16.mxu0 0
        %2464 = vmatpush1.bf16.msra.mxu0 0
        %2465 = vmatprep.subr.bf16.mxu0 0
        %2466 = vmatpush1.bf16.msra.mxu0 0
        %2467 = vmatprep.subr.bf16.mxu0 0
        %2468 = vmatpush1.bf16.msra.mxu0 0
        %2469 = vmatprep.subr.bf16.mxu0 0
        %2470 = vmatpush1.bf16.msra.mxu0 0
        %2471 = vmatprep.subr.bf16.mxu0 0
        %2472 = vmatpush1.bf16.msra.mxu0 0
        %2473 = vmatprep.subr.bf16.mxu0 0
        %2474 = vmatpush1.bf16.msra.mxu0 0
        %2475 = vmatprep.subr.bf16.mxu0 0
        %2476 = vmatpush1.bf16.msra.mxu0 0
        %2477 = vmatprep.subr.bf16.mxu0 0
        %2478 = vmatpush1.bf16.msra.mxu0 0
        %2479 = vmatprep.subr.bf16.mxu0 0
        %2480 = vmatpush1.bf16.msra.mxu0 0
        %2481 = vmatprep.subr.bf16.mxu0 0
        %2482 = vmatpush1.bf16.msra.mxu0 0
        %2483 = vmatprep.mubr.bf16.mxu0 0
        %2484 = vmatmul.mubr.bf16.gmra.mrb[0].mxu0 %v2446
        %v2485 = vpop.f32.mrb[0].mxu0
        %v2486 = vadd.f32 %v2434, %v2485
        %v2487 = vpop.f32.mrb[0].mxu0
        %v2488 = vpop.f32.mrb[0].mxu0
        %v2489 = vadd.f32 %v2437, %v2488
        %v2490 = vpop.f32.mrb[0].mxu0
        %2491 = vdwg.mxu0
        %s2492 = sld [smem:[#allocation17 + $0x6]]
        %v2493 = vstv %s2492
        %v2494 = vmul.f32 %v2493, %v704
        %v2495 = vmul.f32 %v2493, %v705
        %v2496 = vmul.f32 %v2493, %v706
        %v2497 = vmul.f32 %v2493, %v707
        %v2498 = vmul.f32 %v2493, %v708
        %v2499 = vmul.f32 %v2493, %v709
        %s2500 = sld [smem:[#allocation17 + $0x7]]
        %v2501 = vstv %s2500
        %v2502 = vmul.f32 %v2501, %v713
        %v2503 = vmul.f32 %v2501, %v714
        %v2504 = vmul.f32 %v2501, %v715
        %v2505 = vmul.f32 %v2501, %v716
        %v2506 = vmul.f32 %v2501, %v717
        %v2507 = vmul.f32 %v2501, %v718
        %v2508 = vadd.f32 %v2494, %v2502
        %v2509 = vadd.f32 %v2495, %v2503
        %v2510 = vadd.f32 %v2496, %v2504
        %v2511 = vadd.f32 %v2497, %v2505
        %v2512 = vadd.f32 %v2498, %v2506
        %v2513 = vadd.f32 %v2499, %v2507
        %s2514 = sld [smem:[#allocation17 + $0x8]]
        %v2515 = vstv %s2514
        %v2516 = vmul.f32 %v2515, %v722
        %v2517 = vmul.f32 %v2515, %v723
        %v2518 = vmul.f32 %v2515, %v724
        %v2519 = vmul.f32 %v2515, %v725
        %v2520 = vmul.f32 %v2515, %v726
        %v2521 = vmul.f32 %v2515, %v727
        %v2522 = vadd.f32 %v2508, %v2516
        %v2523 = vadd.f32 %v2509, %v2517
        %v2524 = vadd.f32 %v2510, %v2518
        %v2525 = vadd.f32 %v2511, %v2519
        %v2526 = vadd.f32 %v2512, %v2520
        %v2527 = vadd.f32 %v2513, %v2521
        %v2528 = vpack.c.bf16 %v2524, %v2522
        %v2529 = vpack.c.bf16 %v2525, %v2523
        %v2530 = vpack.c.bf16 %v2526, %v2526
        %v2531 = vpack.c.bf16 %v2527, %v2527
        %s2532 = scalar_lea.vmem [#allocation22], 136
        %v2533 = vld [vmem:[%s2532] sm:$0xf]
        %v2534 = vld [vmem:[%s2532 + $0x4] sm:$0xf]
        %v2535 = vld [vmem:[%s2532 + $0x8] sm:$0xf]
        %v2536 = vld [vmem:[%s2532 + $0xc] sm:$0xf]
        %v2537 = vld [vmem:[%s2532 + $0x10] sm:$0xf]
        %v2538 = vld [vmem:[%s2532 + $0x14] sm:$0xf]
        %v2539 = vld [vmem:[%s2532 + $0x18] sm:$0xf]
        %v2540 = vld [vmem:[%s2532 + $0x1c] sm:$0xf]
        %v2541 = vld [vmem:[%s2532 + $0x20] sm:$0xf]
        %v2542 = vld [vmem:[%s2532 + $0x24] sm:$0xf]
        %v2543 = vld [vmem:[%s2532 + $0x28] sm:$0xf]
        %v2544 = vld [vmem:[%s2532 + $0x2c] sm:$0xf]
        %v2545 = vld [vmem:[%s2532 + $0x30] sm:$0xf]
        %v2546 = vld [vmem:[%s2532 + $0x34] sm:$0xf]
        %v2547 = vld [vmem:[%s2532 + $0x38] sm:$0xf]
        %v2548 = vld [vmem:[%s2532 + $0x3c] sm:$0xf]
        %v2549 = vld [vmem:[%s2532 + $0x40] sm:$0xf]
        %v2567 = vunpack.c.l.b16 %v2533
        %v2568 = vunpack.c.l.b16 %v2534
        %v2569 = vunpack.c.l.b16 %v2535
        %v2570 = vunpack.c.l.b16 %v2536
        %v2571 = vunpack.c.l.b16 %v2537
        %v2572 = vunpack.c.l.b16 %v2538
        %v2573 = vunpack.c.l.b16 %v2539
        %v2574 = vunpack.c.l.b16 %v2540
        %v2575 = vunpack.c.l.b16 %v2541
        %v2576 = vunpack.c.l.b16 %v2542
        %v2577 = vunpack.c.l.b16 %v2543
        %v2578 = vunpack.c.l.b16 %v2544
        %v2579 = vunpack.c.l.b16 %v2545
        %v2580 = vunpack.c.l.b16 %v2546
        %v2581 = vunpack.c.l.b16 %v2547
        %v2582 = vunpack.c.l.b16 %v2548
        %v2583 = vunpack.c.l.b16 %v2549
        %v2584 = vpack.c.b16 %v2568, %v2567
        %v2585 = vpack.c.b16 %v2570, %v2569
        %v2586 = vpack.c.b16 %v2572, %v2571
        %v2587 = vpack.c.b16 %v2574, %v2573
        %v2588 = vpack.c.b16 %v2576, %v2575
        %v2589 = vpack.c.b16 %v2578, %v2577
        %v2590 = vpack.c.b16 %v2580, %v2579
        %v2591 = vpack.c.b16 %v2582, %v2581
        %v2592 = vpack.c.b16 %v2583, %v2583
        %v2602 = vsel %vm836, %v2529, 0
        %v2605 = vsel %vm836, %v2531, 0
        %v2608 = vsel %vm843, %v2592, 0
        %2610 = vmatprep.subr.bf16.mxu0 0
        %2611 = vmatpush1.bf16.msra.mxu0 %v2584
        %2612 = vmatprep.subr.bf16.mxu0 0
        %2613 = vmatpush1.bf16.msra.mxu0 %v2585
        %2614 = vmatprep.subr.bf16.mxu0 0
        %2615 = vmatpush1.bf16.msra.mxu0 %v2586
        %2616 = vmatprep.subr.bf16.mxu0 0
        %2617 = vmatpush1.bf16.msra.mxu0 %v2587
        %2618 = vmatprep.subr.bf16.mxu0 0
        %2619 = vmatpush1.bf16.msra.mxu0 %v2588
        %2620 = vmatprep.subr.bf16.mxu0 0
        %2621 = vmatpush1.bf16.msra.mxu0 %v2589
        %2622 = vmatprep.subr.bf16.mxu0 0
        %2623 = vmatpush1.bf16.msra.mxu0 %v2590
        %2624 = vmatprep.subr.bf16.mxu0 0
        %2625 = vmatpush1.bf16.msra.mxu0 %v2591
        %2626 = vmatprep.subr.bf16.mxu0 0
        %2627 = vmatpush1.bf16.msra.mxu0 %v2608
        %2628 = vmatprep.subr.bf16.mxu0 0
        %2629 = vmatpush1.bf16.msra.mxu0 0
        %2630 = vmatprep.subr.bf16.mxu0 0
        %2631 = vmatpush1.bf16.msra.mxu0 0
        %2632 = vmatprep.subr.bf16.mxu0 0
        %2633 = vmatpush1.bf16.msra.mxu0 0
        %2634 = vmatprep.subr.bf16.mxu0 0
        %2635 = vmatpush1.bf16.msra.mxu0 0
        %2636 = vmatprep.subr.bf16.mxu0 0
        %2637 = vmatpush1.bf16.msra.mxu0 0
        %2638 = vmatprep.subr.bf16.mxu0 0
        %2639 = vmatpush1.bf16.msra.mxu0 0
        %2640 = vmatprep.subr.bf16.mxu0 0
        %2641 = vmatpush1.bf16.msra.mxu0 0
        %2642 = vmatprep.mubr.bf16.mxu0 %v2602
        %2643 = vmatmul.mubr.bf16.gmra.mrb[0].mxu0 %v2528
        %v2644 = vpop.f32.mrb[0].mxu0
        %v2645 = vadd.f32 0.0, %v2644
        %v2646 = vpop.f32.mrb[0].mxu0
        %v2647 = vpop.f32.mrb[0].mxu0
        %v2648 = vadd.f32 0.0, %v2647
        %v2649 = vpop.f32.mrb[0].mxu0
        %2650 = vmatprep.mubr.bf16.mxu0 %v2605
        %2651 = vmatmul.mubr.bf16.gmra.mrb[0].mxu0 %v2530
        %v2652 = vpop.f32.mrb[0].mxu0
        %v2653 = vadd.f32 0.0, %v2652
        %v2654 = vpop.f32.mrb[0].mxu0
        %v2655 = vpop.f32.mrb[0].mxu0
        %v2656 = vpop.f32.mrb[0].mxu0
        %2657 = vdwg.mxu0
        %s2658 = scalar_lea.vmem %s13, 16
        %v2659 = vld [vmem:[%s2658] sm:$0xf]
        %v2660 = vld [vmem:[%s2658 + $0x4] sm:$0xf]
        %v2661 = vpack.c.bf16 %v2648, %v2645
        %v2662 = vpack.c.bf16 %v2653, %v2653
        %v2665 = vunpack.c.l.b16 %v2659
        %v2666 = vunpack.c.l.b16 %v2660
        %v2667 = vpack.c.b16 %v2666, %v2665
        %v2669 = vsel %vm1075, %v2667, 0
        %v2672 = vsel %vm843, %v2662, 0
        %2674 = vmatprep.subr.bf16.mxu0 0
        %2675 = vmatpush1.bf16.msra.mxu0 %v2661
        %2676 = vmatprep.subr.bf16.mxu0 0
        %2677 = vmatpush1.bf16.msra.mxu0 %v2672
        %2678 = vmatprep.subr.bf16.mxu0 0
        %2679 = vmatpush1.bf16.msra.mxu0 0
        %2680 = vmatprep.subr.bf16.mxu0 0
        %2681 = vmatpush1.bf16.msra.mxu0 0
        %2682 = vmatprep.subr.bf16.mxu0 0
        %2683 = vmatpush1.bf16.msra.mxu0 0
        %2684 = vmatprep.subr.bf16.mxu0 0
        %2685 = vmatpush1.bf16.msra.mxu0 0
        %2686 = vmatprep.subr.bf16.mxu0 0
        %2687 = vmatpush1.bf16.msra.mxu0 0
        %2688 = vmatprep.subr.bf16.mxu0 0
        %2689 = vmatpush1.bf16.msra.mxu0 0
        %2690 = vmatprep.subr.bf16.mxu0 0
        %2691 = vmatpush1.bf16.msra.mxu0 0
        %2692 = vmatprep.subr.bf16.mxu0 0
        %2693 = vmatpush1.bf16.msra.mxu0 0
        %2694 = vmatprep.subr.bf16.mxu0 0
        %2695 = vmatpush1.bf16.msra.mxu0 0
        %2696 = vmatprep.subr.bf16.mxu0 0
        %2697 = vmatpush1.bf16.msra.mxu0 0
        %2698 = vmatprep.subr.bf16.mxu0 0
        %2699 = vmatpush1.bf16.msra.mxu0 0
        %2700 = vmatprep.subr.bf16.mxu0 0
        %2701 = vmatpush1.bf16.msra.mxu0 0
        %2702 = vmatprep.subr.bf16.mxu0 0
        %2703 = vmatpush1.bf16.msra.mxu0 0
        %2704 = vmatprep.subr.bf16.mxu0 0
        %2705 = vmatpush1.bf16.msra.mxu0 0
        %2706 = vmatprep.mubr.bf16.mxu0 0
        %2707 = vmatmul.mubr.bf16.gmra.mrb[0].mxu0 %v2669
        %v2708 = vpop.f32.mrb[0].mxu0
        %v2709 = vadd.f32 0.0, %v2708
        %v2710 = vpop.f32.mrb[0].mxu0
        %v2711 = vpop.f32.mrb[0].mxu0
        %v2712 = vadd.f32 0.0, %v2711
        %v2713 = vpop.f32.mrb[0].mxu0
        %2714 = vdwg.mxu0
        %v2715 = vadd.f32 %v2486, %v2709
        %v2716 = vadd.f32 %v2489, %v2712
        %s2717 = sld [smem:[#allocation17 + $0x9]]
        %v2718 = vstv %s2717
        %v2719 = vmul.f32 %v2718, %v704
        %v2720 = vmul.f32 %v2718, %v705
        %v2721 = vmul.f32 %v2718, %v706
        %v2722 = vmul.f32 %v2718, %v707
        %v2723 = vmul.f32 %v2718, %v708
        %v2724 = vmul.f32 %v2718, %v709
        %s2725 = sld [smem:[#allocation17 + $0xa]]
        %v2726 = vstv %s2725
        %v2727 = vmul.f32 %v2726, %v713
        %v2728 = vmul.f32 %v2726, %v714
        %v2729 = vmul.f32 %v2726, %v715
        %v2730 = vmul.f32 %v2726, %v716
        %v2731 = vmul.f32 %v2726, %v717
        %v2732 = vmul.f32 %v2726, %v718
        %v2733 = vadd.f32 %v2719, %v2727
        %v2734 = vadd.f32 %v2720, %v2728
        %v2735 = vadd.f32 %v2721, %v2729
        %v2736 = vadd.f32 %v2722, %v2730
        %v2737 = vadd.f32 %v2723, %v2731
        %v2738 = vadd.f32 %v2724, %v2732
        %s2739 = sld [smem:[#allocation17 + $0xb]]
        %v2740 = vstv %s2739
        %v2741 = vmul.f32 %v2740, %v722
        %v2742 = vmul.f32 %v2740, %v723
        %v2743 = vmul.f32 %v2740, %v724
        %v2744 = vmul.f32 %v2740, %v725
        %v2745 = vmul.f32 %v2740, %v726
        %v2746 = vmul.f32 %v2740, %v727
        %v2747 = vadd.f32 %v2733, %v2741
        %v2748 = vadd.f32 %v2734, %v2742
        %v2749 = vadd.f32 %v2735, %v2743
        %v2750 = vadd.f32 %v2736, %v2744
        %v2751 = vadd.f32 %v2737, %v2745
        %v2752 = vadd.f32 %v2738, %v2746
        %v2753 = vpack.c.bf16 %v2749, %v2747
        %v2754 = vpack.c.bf16 %v2750, %v2748
        %v2755 = vpack.c.bf16 %v2751, %v2751
        %v2756 = vpack.c.bf16 %v2752, %v2752
        %s2757 = scalar_lea.vmem [#allocation22], 204
        %v2758 = vld [vmem:[%s2757] sm:$0xf]
        %v2759 = vld [vmem:[%s2757 + $0x4] sm:$0xf]
        %v2760 = vld [vmem:[%s2757 + $0x8] sm:$0xf]
        %v2761 = vld [vmem:[%s2757 + $0xc] sm:$0xf]
        %v2762 = vld [vmem:[%s2757 + $0x10] sm:$0xf]
        %v2763 = vld [vmem:[%s2757 + $0x14] sm:$0xf]
        %v2764 = vld [vmem:[%s2757 + $0x18] sm:$0xf]
        %v2765 = vld [vmem:[%s2757 + $0x1c] sm:$0xf]
        %v2766 = vld [vmem:[%s2757 + $0x20] sm:$0xf]
        %v2767 = vld [vmem:[%s2757 + $0x24] sm:$0xf]
        %v2768 = vld [vmem:[%s2757 + $0x28] sm:$0xf]
        %v2769 = vld [vmem:[%s2757 + $0x2c] sm:$0xf]
        %v2770 = vld [vmem:[%s2757 + $0x30] sm:$0xf]
        %v2771 = vld [vmem:[%s2757 + $0x34] sm:$0xf]
        %v2772 = vld [vmem:[%s2757 + $0x38] sm:$0xf]
        %v2773 = vld [vmem:[%s2757 + $0x3c] sm:$0xf]
        %v2774 = vld [vmem:[%s2757 + $0x40] sm:$0xf]
        %v2792 = vunpack.c.l.b16 %v2758
        %v2793 = vunpack.c.l.b16 %v2759
        %v2794 = vunpack.c.l.b16 %v2760
        %v2795 = vunpack.c.l.b16 %v2761
        %v2796 = vunpack.c.l.b16 %v2762
        %v2797 = vunpack.c.l.b16 %v2763
        %v2798 = vunpack.c.l.b16 %v2764
        %v2799 = vunpack.c.l.b16 %v2765
        %v2800 = vunpack.c.l.b16 %v2766
        %v2801 = vunpack.c.l.b16 %v2767
        %v2802 = vunpack.c.l.b16 %v2768
        %v2803 = vunpack.c.l.b16 %v2769
        %v2804 = vunpack.c.l.b16 %v2770
        %v2805 = vunpack.c.l.b16 %v2771
        %v2806 = vunpack.c.l.b16 %v2772
        %v2807 = vunpack.c.l.b16 %v2773
        %v2808 = vunpack.c.l.b16 %v2774
        %v2809 = vpack.c.b16 %v2793, %v2792
        %v2810 = vpack.c.b16 %v2795, %v2794
        %v2811 = vpack.c.b16 %v2797, %v2796
        %v2812 = vpack.c.b16 %v2799, %v2798
        %v2813 = vpack.c.b16 %v2801, %v2800
        %v2814 = vpack.c.b16 %v2803, %v2802
        %v2815 = vpack.c.b16 %v2805, %v2804
        %v2816 = vpack.c.b16 %v2807, %v2806
        %v2817 = vpack.c.b16 %v2808, %v2808
        %v2827 = vsel %vm836, %v2754, 0
        %v2830 = vsel %vm836, %v2756, 0
        %v2833 = vsel %vm843, %v2817, 0
        %2835 = vmatprep.subr.bf16.mxu0 0
        %2836 = vmatpush1.bf16.msra.mxu0 %v2809
        %2837 = vmatprep.subr.bf16.mxu0 0
        %2838 = vmatpush1.bf16.msra.mxu0 %v2810
        %2839 = vmatprep.subr.bf16.mxu0 0
        %2840 = vmatpush1.bf16.msra.mxu0 %v2811
        %2841 = vmatprep.subr.bf16.mxu0 0
        %2842 = vmatpush1.bf16.msra.mxu0 %v2812
        %2843 = vmatprep.subr.bf16.mxu0 0
        %2844 = vmatpush1.bf16.msra.mxu0 %v2813
        %2845 = vmatprep.subr.bf16.mxu0 0
        %2846 = vmatpush1.bf16.msra.mxu0 %v2814
        %2847 = vmatprep.subr.bf16.mxu0 0
        %2848 = vmatpush1.bf16.msra.mxu0 %v2815
        %2849 = vmatprep.subr.bf16.mxu0 0
        %2850 = vmatpush1.bf16.msra.mxu0 %v2816
        %2851 = vmatprep.subr.bf16.mxu0 0
        %2852 = vmatpush1.bf16.msra.mxu0 %v2833
        %2853 = vmatprep.subr.bf16.mxu0 0
        %2854 = vmatpush1.bf16.msra.mxu0 0
        %2855 = vmatprep.subr.bf16.mxu0 0
        %2856 = vmatpush1.bf16.msra.mxu0 0
        %2857 = vmatprep.subr.bf16.mxu0 0
        %2858 = vmatpush1.bf16.msra.mxu0 0
        %2859 = vmatprep.subr.bf16.mxu0 0
        %2860 = vmatpush1.bf16.msra.mxu0 0
        %2861 = vmatprep.subr.bf16.mxu0 0
        %2862 = vmatpush1.bf16.msra.mxu0 0
        %2863 = vmatprep.subr.bf16.mxu0 0
        %2864 = vmatpush1.bf16.msra.mxu0 0
        %2865 = vmatprep.subr.bf16.mxu0 0
        %2866 = vmatpush1.bf16.msra.mxu0 0
        %2867 = vmatprep.mubr.bf16.mxu0 %v2827
        %2868 = vmatmul.mubr.bf16.gmra.mrb[0].mxu0 %v2753
        %v2869 = vpop.f32.mrb[0].mxu0
        %v2870 = vadd.f32 0.0, %v2869
        %v2871 = vpop.f32.mrb[0].mxu0
        %v2872 = vpop.f32.mrb[0].mxu0
        %v2873 = vadd.f32 0.0, %v2872
        %v2874 = vpop.f32.mrb[0].mxu0
        %2875 = vmatprep.mubr.bf16.mxu0 %v2830
        %2876 = vmatmul.mubr.bf16.gmra.mrb[0].mxu0 %v2755
        %v2877 = vpop.f32.mrb[0].mxu0
        %v2878 = vadd.f32 0.0, %v2877
        %v2879 = vpop.f32.mrb[0].mxu0
        %v2880 = vpop.f32.mrb[0].mxu0
        %v2881 = vpop.f32.mrb[0].mxu0
        %2882 = vdwg.mxu0
        %s2883 = scalar_lea.vmem %s13, 24
        %v2884 = vld [vmem:[%s2883] sm:$0xf]
        %v2885 = vld [vmem:[%s2883 + $0x4] sm:$0xf]
        %v2886 = vpack.c.bf16 %v2873, %v2870
        %v2887 = vpack.c.bf16 %v2878, %v2878
        %v2890 = vunpack.c.l.b16 %v2884
        %v2891 = vunpack.c.l.b16 %v2885
        %v2892 = vpack.c.b16 %v2891, %v2890
        %v2894 = vsel %vm1075, %v2892, 0
        %v2897 = vsel %vm843, %v2887, 0
        %2899 = vmatprep.subr.bf16.mxu0 0
        %2900 = vmatpush1.bf16.msra.mxu0 %v2886
        %2901 = vmatprep.subr.bf16.mxu0 0
        %2902 = vmatpush1.bf16.msra.mxu0 %v2897
        %2903 = vmatprep.subr.bf16.mxu0 0
        %2904 = vmatpush1.bf16.msra.mxu0 0
        %2905 = vmatprep.subr.bf16.mxu0 0
        %2906 = vmatpush1.bf16.msra.mxu0 0
        %2907 = vmatprep.subr.bf16.mxu0 0
        %2908 = vmatpush1.bf16.msra.mxu0 0
        %2909 = vmatprep.subr.bf16.mxu0 0
        %2910 = vmatpush1.bf16.msra.mxu0 0
        %2911 = vmatprep.subr.bf16.mxu0 0
        %2912 = vmatpush1.bf16.msra.mxu0 0
        %2913 = vmatprep.subr.bf16.mxu0 0
        %2914 = vmatpush1.bf16.msra.mxu0 0
        %2915 = vmatprep.subr.bf16.mxu0 0
        %2916 = vmatpush1.bf16.msra.mxu0 0
        %2917 = vmatprep.subr.bf16.mxu0 0
        %2918 = vmatpush1.bf16.msra.mxu0 0
        %2919 = vmatprep.subr.bf16.mxu0 0
        %2920 = vmatpush1.bf16.msra.mxu0 0
        %2921 = vmatprep.subr.bf16.mxu0 0
        %2922 = vmatpush1.bf16.msra.mxu0 0
        %2923 = vmatprep.subr.bf16.mxu0 0
        %2924 = vmatpush1.bf16.msra.mxu0 0
        %2925 = vmatprep.subr.bf16.mxu0 0
        %2926 = vmatpush1.bf16.msra.mxu0 0
        %2927 = vmatprep.subr.bf16.mxu0 0
        %2928 = vmatpush1.bf16.msra.mxu0 0
        %2929 = vmatprep.subr.bf16.mxu0 0
        %2930 = vmatpush1.bf16.msra.mxu0 0
        %2931 = vmatprep.mubr.bf16.mxu0 0
        %2932 = vmatmul.mubr.bf16.gmra.mrb[0].mxu0 %v2894
        %v2933 = vpop.f32.mrb[0].mxu0
        %v2934 = vadd.f32 0.0, %v2933
        %v2935 = vpop.f32.mrb[0].mxu0
        %v2936 = vpop.f32.mrb[0].mxu0
        %v2937 = vadd.f32 0.0, %v2936
        %v2938 = vpop.f32.mrb[0].mxu0
        %2939 = vdwg.mxu0
        %v2940 = vadd.f32 %v2715, %v2934
        %v2941 = vadd.f32 %v2716, %v2937
        %v2942 = vld [vmem:[%s694] sm:$0xff]
        %v2943 = vld [vmem:[%s694 + $0x8] sm:$0xff]
        %v2944 = vld [vmem:[%s694 + $0x10] sm:$0xff]
        %v2945 = vld [vmem:[%s694 + $0x18] sm:$0xff]
        %v2946 = vld [vmem:[%s694 + $0x20] sm:$0xff]
        %v2947 = vld [vmem:[%s694 + $0x28] sm:$0xff]
        %v2948 = vld [vmem:[%s694 + $0x30] sm:$0xff]
        %v2949 = vld [vmem:[%s694 + $0x38] sm:$0xff]
        %v2950 = vld [vmem:[%s694 + $0x40] sm:$0xff]
        %v2951 = vld [vmem:[%s694 + $0x48] sm:$0xff]
        %v2952 = vld [vmem:[%s694 + $0x50] sm:$0xff]
        %v2953 = vld [vmem:[%s694 + $0x58] sm:$0xff]
        %v2954 = vld [vmem:[%s694 + $0x60] sm:$0xff]
        %v2955 = vld [vmem:[%s694 + $0x68] sm:$0xff]
        %v2956 = vld [vmem:[%s694 + $0x70] sm:$0xff]
        %v2957 = vld [vmem:[%s694 + $0x78] sm:$0xff]
        %v2958 = vmax.f32 %v2942, %v2946
        %v2959 = vmax.f32 %v2944, %v2948
        %v2960 = vmax.f32 %v2958, %v2950
        %v2961 = vmax.f32 %v2959, %v2952
        %v2962 = vmax.f32 %v2960, %v2954
        %v2963 = vmax.f32 %v2961, %v2956
        %v2964 = vmax.f32 %v2962, %v2963
        %v2965 = vmax.f32 %v2943, %v2947
        %v2966 = vmax.f32 %v2945, %v2949
        %v2967 = vmax.f32 %v2965, %v2951
        %v2968 = vmax.f32 %v2966, %v2953
        %v2969 = vmax.f32 %v2967, %v2955
        %v2970 = vmax.f32 %v2968, %v2957
        %v2971 = vmax.f32 %v2969, %v2970
        %v2972 = vsub.f32 %v2942, %v2964
        %v2973 = vsub.f32 %v2943, %v2971
        %v2974 = vsub.f32 %v2944, %v2964
        %v2975 = vsub.f32 %v2945, %v2971
        %v2976 = vsub.f32 %v2946, %v2964
        %v2977 = vsub.f32 %v2947, %v2971
        %v2978 = vsub.f32 %v2948, %v2964
        %v2979 = vsub.f32 %v2949, %v2971
        %v2980 = vsub.f32 %v2950, %v2964
        %v2981 = vsub.f32 %v2951, %v2971
        %v2982 = vsub.f32 %v2952, %v2964
        %v2983 = vsub.f32 %v2953, %v2971
        %v2984 = vsub.f32 %v2954, %v2964
        %v2985 = vsub.f32 %v2955, %v2971
        %v2986 = vsub.f32 %v2956, %v2964
        %v2987 = vsub.f32 %v2957, %v2971
        %v2988 = vmul.f32 %v2972, 1.442695
        %v2989 = vpow.pop %v2988
        %v2990 = vmul.f32 %v2973, 1.442695
        %v2991 = vpow.pop %v2990
        %v2992 = vmul.f32 %v2974, 1.442695
        %v2993 = vpow.pop %v2992
        %v2994 = vmul.f32 %v2975, 1.442695
        %v2995 = vpow.pop %v2994
        %v2996 = vmul.f32 %v2976, 1.442695
        %v2997 = vpow.pop %v2996
        %v2998 = vmul.f32 %v2977, 1.442695
        %v2999 = vpow.pop %v2998
        %v3000 = vmul.f32 %v2978, 1.442695
        %v3001 = vpow.pop %v3000
        %v3002 = vmul.f32 %v2979, 1.442695
        %v3003 = vpow.pop %v3002
        %v3004 = vmul.f32 %v2980, 1.442695
        %v3005 = vpow.pop %v3004
        %v3006 = vmul.f32 %v2981, 1.442695
        %v3007 = vpow.pop %v3006
        %v3008 = vmul.f32 %v2982, 1.442695
        %v3009 = vpow.pop %v3008
        %v3010 = vmul.f32 %v2983, 1.442695
        %v3011 = vpow.pop %v3010
        %v3012 = vmul.f32 %v2984, 1.442695
        %v3013 = vpow.pop %v3012
        %v3014 = vmul.f32 %v2985, 1.442695
        %v3015 = vpow.pop %v3014
        %v3016 = vmul.f32 %v2986, 1.442695
        %v3017 = vpow.pop %v3016
        %v3018 = vmul.f32 %v2987, 1.442695
        %v3019 = vpow.pop %v3018
        %v3020 = vadd.f32 %v2989, %v2993
        %v3021 = vadd.f32 %v3020, %v2997
        %v3022 = vadd.f32 %v3021, %v3001
        %v3023 = vadd.f32 %v3022, %v3005
        %v3024 = vadd.f32 %v3023, %v3009
        %v3025 = vadd.f32 %v3024, %v3013
        %v3026 = vadd.f32 %v3025, %v3017
        %v3027 = vadd.f32 %v2991, %v2995
        %v3028 = vadd.f32 %v3027, %v2999
        %v3029 = vadd.f32 %v3028, %v3003
        %v3030 = vadd.f32 %v3029, %v3007
        %v3031 = vadd.f32 %v3030, %v3011
        %v3032 = vadd.f32 %v3031, %v3015
        %v3033 = vadd.f32 %v3032, %v3019
        %v3034 = vrcp.pop %v3026
        %v3035 = vrcp.pop %v3033
        %v3036 = vmul.f32 %v2989, %v3034
        %v3037 = vmul.f32 %v2991, %v3035
        %v3038 = vmul.f32 %v2993, %v3034
        %v3039 = vmul.f32 %v2995, %v3035
        %v3040 = vmul.f32 %v2997, %v3034
        %v3041 = vmul.f32 %v2999, %v3035
        %v3042 = vmul.f32 %v3001, %v3034
        %v3043 = vmul.f32 %v3003, %v3035
        %v3044 = vmul.f32 %v3005, %v3034
        %v3045 = vmul.f32 %v3007, %v3035
        %v3046 = vmul.f32 %v3009, %v3034
        %v3047 = vmul.f32 %v3011, %v3035
        %v3048 = vmul.f32 %v3013, %v3034
        %v3049 = vmul.f32 %v3015, %v3035
        %v3050 = vmul.f32 %v3017, %v3034
        %v3051 = vmul.f32 %v3019, %v3035
        %v3052 = vmul.f32 %v3036, %v2940
        %v3053 = vmul.f32 %v3037, %v2941
        %v3054 = vmul.f32 %v3038, %v2940
        %v3055 = vmul.f32 %v3039, %v2941
        %v3056 = vmul.f32 %v3040, %v2940
        %v3057 = vmul.f32 %v3041, %v2941
        %v3058 = vmul.f32 %v3042, %v2940
        %v3059 = vmul.f32 %v3043, %v2941
        %v3060 = vmul.f32 %v3044, %v2940
        %v3061 = vmul.f32 %v3045, %v2941
        %v3062 = vmul.f32 %v3046, %v2940
        %v3063 = vmul.f32 %v3047, %v2941
        %v3064 = vmul.f32 %v3048, %v2940
        %v3065 = vmul.f32 %v3049, %v2941
        %v3066 = vmul.f32 %v3050, %v2940
        %v3067 = vmul.f32 %v3051, %v2941
        %s3068 = sld [smem:[#allocation3]]
        %v3069 = vstv %s3068
        %v3070 = vadd.f32 %v3052, %v3069
        %v3071 = vadd.f32 %v3053, %v3069
        %v3072 = vadd.f32 %v3054, %v3069
        %v3073 = vadd.f32 %v3055, %v3069
        %v3074 = vadd.f32 %v3056, %v3069
        %v3075 = vadd.f32 %v3057, %v3069
        %v3076 = vadd.f32 %v3058, %v3069
        %v3077 = vadd.f32 %v3059, %v3069
        %v3078 = vadd.f32 %v3060, %v3069
        %v3079 = vadd.f32 %v3061, %v3069
        %v3080 = vadd.f32 %v3062, %v3069
        %v3081 = vadd.f32 %v3063, %v3069
        %v3082 = vadd.f32 %v3064, %v3069
        %v3083 = vadd.f32 %v3065, %v3069
        %v3084 = vadd.f32 %v3066, %v3069
        %v3085 = vadd.f32 %v3067, %v3069
        %v3086 = vmax.f32 %v3070, 0.0
        %v3087 = vmax.f32 %v3071, 0.0
        %v3088 = vmax.f32 %v3072, 0.0
        %v3089 = vmax.f32 %v3073, 0.0
        %v3090 = vmax.f32 %v3074, 0.0
        %v3091 = vmax.f32 %v3075, 0.0
        %v3092 = vmax.f32 %v3076, 0.0
        %v3093 = vmax.f32 %v3077, 0.0
        %v3094 = vmax.f32 %v3078, 0.0
        %v3095 = vmax.f32 %v3079, 0.0
        %v3096 = vmax.f32 %v3080, 0.0
        %v3097 = vmax.f32 %v3081, 0.0
        %v3098 = vmax.f32 %v3082, 0.0
        %v3099 = vmax.f32 %v3083, 0.0
        %v3100 = vmax.f32 %v3084, 0.0
        %v3101 = vmax.f32 %v3085, 0.0
        %v3102 = vpack.c.bf16 %v3087, %v3086
        %v3103 = vpack.c.bf16 %v3089, %v3088
        %v3104 = vpack.c.bf16 %v3091, %v3090
        %v3105 = vpack.c.bf16 %v3093, %v3092
        %v3106 = vpack.c.bf16 %v3095, %v3094
        %v3107 = vpack.c.bf16 %v3097, %v3096
        %v3108 = vpack.c.bf16 %v3099, %v3098
        %v3109 = vpack.c.bf16 %v3101, %v3100
        %v3110 = vld [vmem:[#allocation20] sm:$0xf]
        %v3111 = vld [vmem:[#allocation20 + $0x4] sm:$0xf]
        %v3112 = vld [vmem:[#allocation20 + $0x8] sm:$0xf]
        %v3113 = vld [vmem:[#allocation20 + $0xc] sm:$0xf]
        %v3114 = vld [vmem:[#allocation20 + $0x10] sm:$0xf]
        %v3115 = vld [vmem:[#allocation20 + $0x14] sm:$0xf]
        %v3116 = vld [vmem:[#allocation20 + $0x18] sm:$0xf]
        %v3117 = vld [vmem:[#allocation20 + $0x1c] sm:$0xf]
        %v3118 = vld [vmem:[#allocation20 + $0x20] sm:$0xf]
        %v3119 = vld [vmem:[#allocation20 + $0x24] sm:$0xf]
        %v3120 = vld [vmem:[#allocation20 + $0x28] sm:$0xf]
        %v3121 = vld [vmem:[#allocation20 + $0x2c] sm:$0xf]
        %v3122 = vld [vmem:[#allocation20 + $0x30] sm:$0xf]
        %v3123 = vld [vmem:[#allocation20 + $0x34] sm:$0xf]
        %v3124 = vld [vmem:[#allocation20 + $0x38] sm:$0xf]
        %v3125 = vld [vmem:[#allocation20 + $0x3c] sm:$0xf]
        %v3142 = vunpack.c.l.b16 %v3110
        %v3143 = vunpack.c.l.b16 %v3111
        %v3144 = vunpack.c.l.b16 %v3112
        %v3145 = vunpack.c.l.b16 %v3113
        %v3146 = vunpack.c.l.b16 %v3114
        %v3147 = vunpack.c.l.b16 %v3115
        %v3148 = vunpack.c.l.b16 %v3116
        %v3149 = vunpack.c.l.b16 %v3117
        %v3150 = vunpack.c.l.b16 %v3118
        %v3151 = vunpack.c.l.b16 %v3119
        %v3152 = vunpack.c.l.b16 %v3120
        %v3153 = vunpack.c.l.b16 %v3121
        %v3154 = vunpack.c.l.b16 %v3122
        %v3155 = vunpack.c.l.b16 %v3123
        %v3156 = vunpack.c.l.b16 %v3124
        %v3157 = vunpack.c.l.b16 %v3125
        %v3158 = vpack.c.b16 %v3143, %v3142
        %v3159 = vpack.c.b16 %v3145, %v3144
        %v3160 = vpack.c.b16 %v3147, %v3146
        %v3161 = vpack.c.b16 %v3149, %v3148
        %v3162 = vpack.c.b16 %v3151, %v3150
        %v3163 = vpack.c.b16 %v3153, %v3152
        %v3164 = vpack.c.b16 %v3155, %v3154
        %v3165 = vpack.c.b16 %v3157, %v3156
        %3174 = vmatprep.subr.bf16.mxu0 0
        %3175 = vmatpush1.bf16.msra.mxu0 %v3102
        %3176 = vmatprep.subr.bf16.mxu0 0
        %3177 = vmatpush1.bf16.msra.mxu0 %v3103
        %3178 = vmatprep.subr.bf16.mxu0 0
        %3179 = vmatpush1.bf16.msra.mxu0 %v3104
        %3180 = vmatprep.subr.bf16.mxu0 0
        %3181 = vmatpush1.bf16.msra.mxu0 %v3105
        %3182 = vmatprep.subr.bf16.mxu0 0
        %3183 = vmatpush1.bf16.msra.mxu0 %v3106
        %3184 = vmatprep.subr.bf16.mxu0 0
        %3185 = vmatpush1.bf16.msra.mxu0 %v3107
        %3186 = vmatprep.subr.bf16.mxu0 0
        %3187 = vmatpush1.bf16.msra.mxu0 %v3108
        %3188 = vmatprep.subr.bf16.mxu0 0
        %3189 = vmatpush1.bf16.msra.mxu0 %v3109
        %3190 = vmatprep.subr.bf16.mxu0 0
        %3191 = vmatpush1.bf16.msra.mxu0 0
        %3192 = vmatprep.subr.bf16.mxu0 0
        %3193 = vmatpush1.bf16.msra.mxu0 0
        %3194 = vmatprep.subr.bf16.mxu0 0
        %3195 = vmatpush1.bf16.msra.mxu0 0
        %3196 = vmatprep.subr.bf16.mxu0 0
        %3197 = vmatpush1.bf16.msra.mxu0 0
        %3198 = vmatprep.subr.bf16.mxu0 0
        %3199 = vmatpush1.bf16.msra.mxu0 0
        %3200 = vmatprep.subr.bf16.mxu0 0
        %3201 = vmatpush1.bf16.msra.mxu0 0
        %3202 = vmatprep.subr.bf16.mxu0 0
        %3203 = vmatpush1.bf16.msra.mxu0 0
        %3204 = vmatprep.subr.bf16.mxu0 0
        %3205 = vmatpush1.bf16.msra.mxu0 0
        %3206 = vmatprep.mubr.bf16.mxu0 0
        %3207 = vmatmul.mubr.bf16.gmra.mrb[0].mxu0 %v3158
        %v3208 = vpop.f32.mrb[0].mxu0
        %v3209 = vadd.f32 0.0, %v3208
        %v3210 = vpop.f32.mrb[0].mxu0
        %v3211 = vpop.f32.mrb[0].mxu0
        %v3212 = vadd.f32 0.0, %v3211
        %v3213 = vpop.f32.mrb[0].mxu0
        %3214 = vmatprep.mubr.bf16.mxu0 0
        %3215 = vmatmul.mubr.bf16.gmra.mrb[0].mxu0 %v3159
        %v3216 = vpop.f32.mrb[0].mxu0
        %v3217 = vadd.f32 0.0, %v3216
        %v3218 = vpop.f32.mrb[0].mxu0
        %v3219 = vpop.f32.mrb[0].mxu0
        %v3220 = vadd.f32 0.0, %v3219
        %v3221 = vpop.f32.mrb[0].mxu0
        %3222 = vmatprep.mubr.bf16.mxu0 0
        %3223 = vmatmul.mubr.bf16.gmra.mrb[0].mxu0 %v3160
        %v3224 = vpop.f32.mrb[0].mxu0
        %v3225 = vadd.f32 0.0, %v3224
        %v3226 = vpop.f32.mrb[0].mxu0
        %v3227 = vpop.f32.mrb[0].mxu0
        %v3228 = vadd.f32 0.0, %v3227
        %v3229 = vpop.f32.mrb[0].mxu0
        %3230 = vmatprep.mubr.bf16.mxu0 0
        %3231 = vmatmul.mubr.bf16.gmra.mrb[0].mxu0 %v3161
        %v3232 = vpop.f32.mrb[0].mxu0
        %v3233 = vadd.f32 0.0, %v3232
        %v3234 = vpop.f32.mrb[0].mxu0
        %v3235 = vpop.f32.mrb[0].mxu0
        %v3236 = vadd.f32 0.0, %v3235
        %v3237 = vpop.f32.mrb[0].mxu0
        %3238 = vmatprep.mubr.bf16.mxu0 0
        %3239 = vmatmul.mubr.bf16.gmra.mrb[0].mxu0 %v3162
        %v3240 = vpop.f32.mrb[0].mxu0
        %v3241 = vadd.f32 0.0, %v3240
        %v3242 = vpop.f32.mrb[0].mxu0
        %v3243 = vpop.f32.mrb[0].mxu0
        %v3244 = vadd.f32 0.0, %v3243
        %v3245 = vpop.f32.mrb[0].mxu0
        %3246 = vmatprep.mubr.bf16.mxu0 0
        %3247 = vmatmul.mubr.bf16.gmra.mrb[0].mxu0 %v3163
        %v3248 = vpop.f32.mrb[0].mxu0
        %v3249 = vadd.f32 0.0, %v3248
        %v3250 = vpop.f32.mrb[0].mxu0
        %v3251 = vpop.f32.mrb[0].mxu0
        %v3252 = vadd.f32 0.0, %v3251
        %v3253 = vpop.f32.mrb[0].mxu0
        %3254 = vmatprep.mubr.bf16.mxu0 0
        %3255 = vmatmul.mubr.bf16.gmra.mrb[0].mxu0 %v3164
        %v3256 = vpop.f32.mrb[0].mxu0
        %v3257 = vadd.f32 0.0, %v3256
        %v3258 = vpop.f32.mrb[0].mxu0
        %v3259 = vpop.f32.mrb[0].mxu0
        %v3260 = vadd.f32 0.0, %v3259
        %v3261 = vpop.f32.mrb[0].mxu0
        %3262 = vmatprep.mubr.bf16.mxu0 0
        %3263 = vmatmul.mubr.bf16.gmra.mrb[0].mxu0 %v3165
        %v3264 = vpop.f32.mrb[0].mxu0
        %v3265 = vadd.f32 0.0, %v3264
        %v3266 = vpop.f32.mrb[0].mxu0
        %v3267 = vpop.f32.mrb[0].mxu0
        %v3268 = vadd.f32 0.0, %v3267
        %v3269 = vpop.f32.mrb[0].mxu0
        %3270 = vdwg.mxu0
        %v3271 = vld [vmem:[%s694] sm:$0xff]
        %v3272 = vld [vmem:[%s694 + $0x8] sm:$0xff]
        %s3273 = sld [smem:[#allocation18]]
        %v3274 = vstv %s3273
        %v3275 = vadd.f32 %v3209, %v3274
        %v3276 = vadd.f32 %v3212, %v3274
        %v3277 = vsub.f32 %v3271, %v3275
        %v3278 = vsub.f32 %v3272, %v3276
        %3279 = vst [vmem:[%s694] sm:$0xff] %v3277
        %3280 = vst [vmem:[%s694 + $0x8] sm:$0xff] %v3278
        %v3281 = vld [vmem:[%s1973] sm:$0xff]
        %v3282 = vld [vmem:[%s1973 + $0x8] sm:$0xff]
        %s3283 = sld [smem:[#allocation18 + $0x1]]
        %v3284 = vstv %s3283
        %v3285 = vadd.f32 %v3217, %v3284
        %v3286 = vadd.f32 %v3220, %v3284
        %v3287 = vsub.f32 %v3281, %v3285
        %v3288 = vsub.f32 %v3282, %v3286
        %3289 = vst [vmem:[%s1973] sm:$0xff] %v3287
        %3290 = vst [vmem:[%s1973 + $0x8] sm:$0xff] %v3288
        %v3291 = vld [vmem:[%s1985] sm:$0xff]
        %v3292 = vld [vmem:[%s1985 + $0x8] sm:$0xff]
        %s3293 = sld [smem:[#allocation18 + $0x2]]
        %v3294 = vstv %s3293
        %v3295 = vadd.f32 %v3225, %v3294
        %v3296 = vadd.f32 %v3228, %v3294
        %v3297 = vsub.f32 %v3291, %v3295
        %v3298 = vsub.f32 %v3292, %v3296
        %3299 = vst [vmem:[%s1985] sm:$0xff] %v3297
        %3300 = vst [vmem:[%s1985 + $0x8] sm:$0xff] %v3298
        %v3301 = vld [vmem:[%s1997] sm:$0xff]
        %v3302 = vld [vmem:[%s1997 + $0x8] sm:$0xff]
        %s3303 = sld [smem:[#allocation18 + $0x3]]
        %v3304 = vstv %s3303
        %v3305 = vadd.f32 %v3233, %v3304
        %v3306 = vadd.f32 %v3236, %v3304
        %v3307 = vsub.f32 %v3301, %v3305
        %v3308 = vsub.f32 %v3302, %v3306
        %3309 = vst [vmem:[%s1997] sm:$0xff] %v3307
        %3310 = vst [vmem:[%s1997 + $0x8] sm:$0xff] %v3308
        %v3311 = vld [vmem:[%s2009] sm:$0xff]
        %v3312 = vld [vmem:[%s2009 + $0x8] sm:$0xff]
        %s3313 = sld [smem:[#allocation18 + $0x4]]
        %v3314 = vstv %s3313
        %v3315 = vadd.f32 %v3241, %v3314
        %v3316 = vadd.f32 %v3244, %v3314
        %v3317 = vsub.f32 %v3311, %v3315
        %v3318 = vsub.f32 %v3312, %v3316
        %3319 = vst [vmem:[%s2009] sm:$0xff] %v3317
        %3320 = vst [vmem:[%s2009 + $0x8] sm:$0xff] %v3318
        %v3321 = vld [vmem:[%s2021] sm:$0xff]
        %v3322 = vld [vmem:[%s2021 + $0x8] sm:$0xff]
        %s3323 = sld [smem:[#allocation18 + $0x5]]
        %v3324 = vstv %s3323
        %v3325 = vadd.f32 %v3249, %v3324
        %v3326 = vadd.f32 %v3252, %v3324
        %v3327 = vsub.f32 %v3321, %v3325
        %v3328 = vsub.f32 %v3322, %v3326
        %3329 = vst [vmem:[%s2021] sm:$0xff] %v3327
        %3330 = vst [vmem:[%s2021 + $0x8] sm:$0xff] %v3328
        %v3331 = vld [vmem:[%s2033] sm:$0xff]
        %v3332 = vld [vmem:[%s2033 + $0x8] sm:$0xff]
        %s3333 = sld [smem:[#allocation18 + $0x6]]
        %v3334 = vstv %s3333
        %v3335 = vadd.f32 %v3257, %v3334
        %v3336 = vadd.f32 %v3260, %v3334
        %v3337 = vsub.f32 %v3331, %v3335
        %v3338 = vsub.f32 %v3332, %v3336
        %3339 = vst [vmem:[%s2033] sm:$0xff] %v3337
        %3340 = vst [vmem:[%s2033 + $0x8] sm:$0xff] %v3338
        %v3341 = vld [vmem:[%s2045] sm:$0xff]
        %v3342 = vld [vmem:[%s2045 + $0x8] sm:$0xff]
        %s3343 = sld [smem:[#allocation18 + $0x7]]
        %v3344 = vstv %s3343
        %v3345 = vadd.f32 %v3265, %v3344
        %v3346 = vadd.f32 %v3268, %v3344
        %v3347 = vsub.f32 %v3341, %v3345
        %v3348 = vsub.f32 %v3342, %v3346
        %3349 = vst [vmem:[%s2045] sm:$0xff] %v3347
        %3350 = vst [vmem:[%s2045 + $0x8] sm:$0xff] %v3348
        %s3351 = sand.u32 %s369, 1
        %s3352 = scalar_lea.sflag [#allocation6], %s3351
        %s3353 = sand.u32 %s369, 1
        %s3354 = smul.addr %s3353, 128
        %s3355 = scalar_lea.vmem [#allocation23], %s3354
        // Predicated region
        $region121: #{tpu_custom_call.1} parent=75 // pred_check
          %p3356 = pneg %p379
        $region122: #{tpu_custom_call.1} parent=75 // pred_check_branch
          %3358 = sbr.rel (%p3356) target = $region124
        $region123: #{tpu_custom_call.1} parent=75 // pred_region
          #allocation27 [shape = 'u32[6]{0}', space=smem, size = 0x18, scoped, tag = 'DMA stride descriptor']
          %s3359 = smul.u32 2, %s46
          %s3361 = ssub.s32 2048, 2048
          %3362 = vsyncadd %s3352, %s3361
          %s3363 = smul.addr %s45, 32
          %s3364 = sadd.s32 %s3359, %s3363
          %s3365 = smul.addr %s3364, 128
          %s3366 = scalar_lea.hbm %s14, %s3365
          %s3368 = sshll.u32 1, 14
          %s3369 = sxor.u32 4294967295, %s3368
          %s3372 = sshll.u32 7, 18
          %s3373 = sxor.u32 4294967295, %s3372
          %s3374 = sand.u32 0, %s3373
          %s3376 = sor.u32 %s3374, 0
          %s3378 = sshll.u32 3, 24
          %s3379 = sxor.u32 4294967295, %s3378
          %s3380 = sand.u32 %s3376, %s3379
          %s3382 = sor.u32 %s3380, 0
          %s3383 = sshll.u32 %s3355, 4
          %s3384 = int_to_ptr.vmem [resolvable:$true] %s3383
          %3390 = sst [smem:[#allocation27]] 256
          %s3391 = scalar_lea.smem [#allocation27], 1
          %3392 = sst [smem:[%s3391]] 512
          %s3393 = scalar_lea.smem [#allocation27], 2
          %3394 = sst [smem:[%s3393]] 2
          %s3395 = scalar_lea.smem [#allocation27], 3
          %3396 = sst [smem:[%s3395]] 128
          %s3397 = scalar_lea.smem [#allocation27], 4
          %3398 = sst [smem:[%s3397]] 128
          %s3399 = scalar_lea.smem [#allocation27], 5
          %3400 = sst [smem:[%s3399]] 8
          %3402 = dma.general %s3384, 2048, %s3366, %s3352, [#allocation26], [#allocation27], %s3382, 0
        $region124: #{tpu_custom_call.1} parent=75 // pred_fallthru
          _
      $region76: #{tpu_custom_call.1} parent=5 // pred_fallthru
        _
      %p3403 = scmp.le.s32.totalorder 2, %s36
      // Predicated region
      $region125: #{tpu_custom_call.1} parent=5 // pred_check
        %p3404 = pneg %p3403
      $region126: #{tpu_custom_call.1} parent=5 // pred_check_branch
        %3406 = sbr.rel (%p3404) target = $region128
      $region127: #{tpu_custom_call.1} parent=5 // pred_region
        %s3407 = ssub.s32 %s36, 2
        // Predicated region
        $region129: #{tpu_custom_call.1} parent=127 // pred_check
          %p3408 = pneg %p385
        $region130: #{tpu_custom_call.1} parent=127 // pred_check_branch
          %3410 = sbr.rel (%p3408) target = $region132
        $region131: #{tpu_custom_call.1} parent=127 // pred_region
          %s3411 = sand.u32 %s370, 1
          %s3412 = scalar_lea.sflag [#allocation6], %s3411
          %s3413 = sand.u32 %s370, 1
          %s3414 = smul.addr %s3413, 128
          %s3415 = scalar_lea.vmem [#allocation23], %s3414
          %3416 = dma.done %s3412, 2048
        $region132: #{tpu_custom_call.1} parent=127 // pred_fallthru
          _
      $region128: #{tpu_custom_call.1} parent=5 // pred_fallthru
        _
    $region6: #{tpu_custom_call.1} parent=1 // loop_footer
      %s40 = sadd.s32 1, %s36
    $region7: #{tpu_custom_call.1} parent=1 // loop_footer_branch
      %35 = sbr.rel target = $region3
    $region8: #{tpu_custom_call.1} parent=1 // loop_exit
      _
    %3417 = vsyncpa [#allocation5], 1
    %s3418 = scalar_lea.sflag [#allocation5], 1
    %3419 = vsyncpa %s3418, 1
    %3420 = vsyncpa [#allocation9], 1
    %s3421 = scalar_lea.sflag [#allocation9], 1
    %3422 = vsyncpa %s3421, 1
    %3423 = vsyncpa [#allocation15], 1
    %3424 = vsyncpa [#allocation21], 1
    %3425 = vsyncpa [#allocation6], 1
    %s3426 = scalar_lea.sflag [#allocation6], 1
    %3427 = vsyncpa %s3426, 1
    %3428 = vsyncpa [#allocation7], 1
    %s3429 = scalar_lea.sflag [#allocation7], 1
    %3430 = vsyncpa %s3429, 1
    %3431 = vsyncpa [#allocation12], 1
    %3432 = vsyncpa [#allocation19], 1

</llo_original>
